<compile_context>
chip_gen: v7x
topology: tpu7x:2x2x1
jax: 0.10.0
libtpu: 0.0.40
codegen_flags: <defaults>
</compile_context>

<pallas_src>
import numpy as np

import jax
import jax.numpy as jnp
from jax.experimental import pallas as pl
from jax.experimental.pallas import tpu as pltpu

# ----- configuration mirroring ResnetClassifier.__init__ -------------------
N, C, H, W = 2, 4, 16, 16        # feature_shape
NCLASSES = 10
K = 4                            # avgpool_resnet_classifier (assumed)
HP, WP = H // K, W // K
FEATURE_SIZE = C * HP * WP       # == self.feature_size
EPS = 1e-5

# hw -> pooled-cell index, built once with numpy at module scope (hoisted).
_idx = np.arange(H * W)
_POOL_COL = ((_idx // W) // K) * WP + ((_idx % W) // K)          # (H*W,)
POOL_COL = jnp.asarray(_POOL_COL, dtype=jnp.int32)


def resnet_classifier_kernel(x_ref, gamma_ref, beta_ref, wf_ref, b_ref, o_ref):
    """x_ref: (C, N, H*W) f32; gamma/beta: (C,1,1); wf: (C, H*W, NCLASSES) fused
    avg-pool+fc weight; b: (1, NCLASSES); o: (N, NCLASSES)."""
    x = x_ref[...]
    inv_cnt = jnp.float32(1.0 / (N * H * W))

    # --- BatchNorm2d (training-mode batch stats, biased variance) ---
    # Per-channel reductions: lanes (H*W) then sublanes (N) — no MXU involved.
    mean = jnp.sum(jnp.sum(x, axis=2, keepdims=True), axis=1, keepdims=True) * inv_cnt
    d = x - mean
    var = jnp.sum(jnp.sum(d * d, axis=2, keepdims=True), axis=1, keepdims=True) * inv_cnt
    y = d * jax.lax.rsqrt(var + EPS) * gamma_ref[...] + beta_ref[...]

    # --- ReLU ---
    y = jnp.maximum(y, 0.0)

    # --- AvgPool2d(K,K) + flatten + Linear, fused into one batched matmul ---
    # z[c, n, m] = sum_hw y[c, n, hw] * wf[c, hw, m];  logits = sum_c z + b.
    z = jnp.einsum(
        "cnh,chm->cnm", y, wf_ref[...],
        precision=jax.lax.Precision.HIGHEST,
        preferred_element_type=jnp.float32)                      # (C, N, NCLASSES)
    o_ref[...] = jnp.sum(z, axis=0) + b_ref[...]


@jax.jit
def resnet_classifier_forward(x, gamma, beta, fc_w, fc_b):
    """x: (N, C, H, W) NCHW float32 -> logits (N, NCLASSES)."""
    # Channel-major layout so per-channel BN stats are lane/sublane reductions.
    x_k = x.transpose(1, 0, 2, 3).reshape(C, N, H * W)
    gamma_k = gamma.reshape(C, 1, 1)
    beta_k = beta.reshape(C, 1, 1)

    # Fuse AvgPool(K) + flatten + fc into a per-channel weight:
    #   wf[c, hw, m] = fc_w[m, c*HP*WP + pool_col(hw)] / K^2        (exact: /16)
    w3 = fc_w.reshape(NCLASSES, C, HP * WP).transpose(1, 2, 0)       # (C, HP*WP, NC)
    wf = w3[:, POOL_COL, :] * (1.0 / (K * K))                        # (C, H*W, NC)
    b_k = fc_b.reshape(1, NCLASSES)

    vmem = lambda: pl.BlockSpec(memory_space=pltpu.MemorySpace.VMEM)
    return pl.pallas_call(
        resnet_classifier_kernel,
        out_shape=jax.ShapeDtypeStruct((N, NCLASSES), jnp.float32),
        in_specs=[vmem() for _ in range(5)],
        out_specs=vmem(),
    )(x_k, gamma_k, beta_k, wf, b_k)


def _reference(x, gamma, beta, fc_w, fc_b):
    mean = x.mean(axis=(0, 2, 3), keepdims=True)
    var = ((x - mean) ** 2).mean(axis=(0, 2, 3), keepdims=True)
    y = (x - mean) / jnp.sqrt(var + EPS) * gamma.reshape(1, -1, 1, 1) \
        + beta.reshape(1, -1, 1, 1)
    y = jnp.maximum(y, 0.0)
    y = y.reshape(N, C, HP, K, WP, K).mean(axis=(3, 5))
    feat = y.reshape(N, -1)
    return feat @ fc_w.T + fc_b


if __name__ == "__main__":
    key = jax.random.PRNGKey(0)
    kx, kg, kb, kw, kbias = jax.random.split(key, 5)

    x = jax.random.normal(kx, (N, C, H, W), dtype=jnp.float32)
    gamma = 1.0 + 0.1 * jax.random.normal(kg, (C,), dtype=jnp.float32)
    beta = 0.1 * jax.random.normal(kb, (C,), dtype=jnp.float32)
    fc_w = 0.1 * jax.random.normal(kw, (NCLASSES, FEATURE_SIZE), dtype=jnp.float32)
    fc_b = 0.1 * jax.random.normal(kbias, (NCLASSES,), dtype=jnp.float32)

    out = resnet_classifier_forward(x, gamma, beta, fc_w, fc_b)
    out = jax.block_until_ready(out)

    ref = _reference(x, gamma, beta, fc_w, fc_b)
    assert out.shape == (N, NCLASSES)
    assert jnp.allclose(out, ref, atol=1e-4, rtol=1e-4), (out, ref)

    print("KERNEL_OK")
</pallas_src>

<mosaic_0001>
module attributes {stable_mosaic.version = 11 : i64} {
  func.func @resnet_classifier_kernel(%arg0: memref<4x2x256xf32, #tpu.memory_space<vmem>>, %arg1: memref<4x1x1xf32, #tpu.memory_space<vmem>>, %arg2: memref<4x1x1xf32, #tpu.memory_space<vmem>>, %arg3: memref<4x256x10xf32, #tpu.memory_space<vmem>>, %arg4: memref<1x10xf32, #tpu.memory_space<vmem>>, %arg5: memref<2x10xf32, #tpu.memory_space<vmem>>) attributes {dimension_semantics = [], scalar_prefetch = 0 : i64, scratch_operands = 0 : i64, tpu.core_type = #tpu.core_type<tc>} {
    %c0 = arith.constant 0 : index
    %c0_0 = arith.constant 0 : index
    %c0_1 = arith.constant 0 : index
    %0 = vector.load %arg0[%c0, %c0_0, %c0_1] : memref<4x2x256xf32, #tpu.memory_space<vmem>>, vector<4x2x256xf32>
    %cst = arith.constant dense<0.000000e+00> : vector<4x2xf32>
    %1 = vector.multi_reduction <add>, %0, %cst [2] : vector<4x2x256xf32> to vector<4x2xf32>
    %2 = vector.shape_cast %1 : vector<4x2xf32> to vector<4x2x1xf32>
    %cst_2 = arith.constant dense<0.000000e+00> : vector<4x1xf32>
    %3 = vector.multi_reduction <add>, %2, %cst_2 [1] : vector<4x2x1xf32> to vector<4x1xf32>
    %4 = vector.shape_cast %3 : vector<4x1xf32> to vector<4x1x1xf32>
    %cst_3 = arith.constant 0.001953125 : f32
    %5 = vector.broadcast %cst_3 : f32 to vector<4x1x1xf32>
    %6 = arith.mulf %4, %5 : vector<4x1x1xf32>
    %7 = vector.broadcast %6 : vector<4x1x1xf32> to vector<4x2x256xf32>
    %8 = arith.subf %0, %7 : vector<4x2x256xf32>
    %9 = arith.mulf %8, %8 : vector<4x2x256xf32>
    %cst_4 = arith.constant dense<0.000000e+00> : vector<4x2xf32>
    %10 = vector.multi_reduction <add>, %9, %cst_4 [2] : vector<4x2x256xf32> to vector<4x2xf32>
    %11 = vector.shape_cast %10 : vector<4x2xf32> to vector<4x2x1xf32>
    %cst_5 = arith.constant dense<0.000000e+00> : vector<4x1xf32>
    %12 = vector.multi_reduction <add>, %11, %cst_5 [1] : vector<4x2x1xf32> to vector<4x1xf32>
    %13 = vector.shape_cast %12 : vector<4x1xf32> to vector<4x1x1xf32>
    %cst_6 = arith.constant 0.001953125 : f32
    %14 = vector.broadcast %cst_6 : f32 to vector<4x1x1xf32>
    %15 = arith.mulf %13, %14 : vector<4x1x1xf32>
    %cst_7 = arith.constant 9.99999974E-6 : f32
    %16 = vector.broadcast %cst_7 : f32 to vector<4x1x1xf32>
    %17 = arith.addf %15, %16 : vector<4x1x1xf32>
    %18 = math.rsqrt %17 : vector<4x1x1xf32>
    %19 = vector.broadcast %18 : vector<4x1x1xf32> to vector<4x2x256xf32>
    %20 = arith.mulf %8, %19 : vector<4x2x256xf32>
    %c0_8 = arith.constant 0 : index
    %c0_9 = arith.constant 0 : index
    %c0_10 = arith.constant 0 : index
    %21 = vector.load %arg1[%c0_8, %c0_9, %c0_10] : memref<4x1x1xf32, #tpu.memory_space<vmem>>, vector<4x1x1xf32>
    %22 = vector.broadcast %21 : vector<4x1x1xf32> to vector<4x2x256xf32>
    %23 = arith.mulf %20, %22 : vector<4x2x256xf32>
    %c0_11 = arith.constant 0 : index
    %c0_12 = arith.constant 0 : index
    %c0_13 = arith.constant 0 : index
    %24 = vector.load %arg2[%c0_11, %c0_12, %c0_13] : memref<4x1x1xf32, #tpu.memory_space<vmem>>, vector<4x1x1xf32>
    %25 = vector.broadcast %24 : vector<4x1x1xf32> to vector<4x2x256xf32>
    %26 = arith.addf %23, %25 : vector<4x2x256xf32>
    %cst_14 = arith.constant 0.000000e+00 : f32
    %27 = vector.broadcast %cst_14 : f32 to vector<4x2x256xf32>
    %28 = arith.maximumf %26, %27 : vector<4x2x256xf32>
    %c0_15 = arith.constant 0 : index
    %c0_16 = arith.constant 0 : index
    %c0_17 = arith.constant 0 : index
    %29 = vector.load %arg3[%c0_15, %c0_16, %c0_17] : memref<4x256x10xf32, #tpu.memory_space<vmem>>, vector<4x256x10xf32>
    "tpu.trace_start"() <{level = 10 : i32, message = "cnh,chm->cnm"}> : () -> ()
    %cst_18 = arith.constant dense<0.000000e+00> : vector<4x2x10xf32>
    %30 = tpu.matmul %28, %29, %cst_18 {dimension_numbers = #tpu.dot_dimension_numbers<[2], [1], [1], [2], [0, 0, 0, 1, 1, 2], [0], [0]>, precision = #tpu.contract_precision<fp32>} : vector<4x2x256xf32>, vector<4x256x10xf32>, vector<4x2x10xf32> -> vector<4x2x10xf32>
    "tpu.trace_stop"() : () -> ()
    %cst_19 = arith.constant dense<0.000000e+00> : vector<2x10xf32>
    %31 = vector.multi_reduction <add>, %30, %cst_19 [0] : vector<4x2x10xf32> to vector<2x10xf32>
    %c0_20 = arith.constant 0 : index
    %c0_21 = arith.constant 0 : index
    %32 = vector.load %arg4[%c0_20, %c0_21] : memref<1x10xf32, #tpu.memory_space<vmem>>, vector<1x10xf32>
    %33 = vector.broadcast %32 : vector<1x10xf32> to vector<2x10xf32>
    %34 = arith.addf %31, %33 : vector<2x10xf32>
    %c0_22 = arith.constant 0 : index
    %c0_23 = arith.constant 0 : index
    %35 = vector.load %arg5[%c0_22, %c0_23] : memref<2x10xf32, #tpu.memory_space<vmem>>, vector<2x10xf32>
    tpu.vector_store %arg5[%c0_22, %c0_23], %34 {strides = array<i32>} : memref<2x10xf32, #tpu.memory_space<vmem>>, vector<2x10xf32>,
    return
  }
}

</mosaic_0001>

<llo_original>
// kernel: resnet_classifier_forward.1
$region0: #{resnet_classifier_forward.1}
  #allocation0 [shape = 'u32[]', space=smem, size = 0x4, offset = 0x4, fixed_abs, tag = 'smem constant byte address 0x4 - core index']
  #allocation1 [shape = 'u32[144,128]{1,0:T(1,128)}', space=vmem, size = 0x12000, scoped, tag = 'internal scratch']
  %s0 = inlined_call_operand.vmem [shape: f32[4,2,256], index: 0, kind: input, shape index: {}]
  %s1 = inlined_call_operand.vmem [shape: f32[4,1,1], index: 1, kind: input, shape index: {}]
  %s2 = inlined_call_operand.vmem [shape: f32[4,1,1], index: 2, kind: input, shape index: {}]
  %s3 = inlined_call_operand.vmem [shape: f32[4,256,10], index: 3, kind: input, shape index: {}]
  %s4 = inlined_call_operand.vmem [shape: f32[1,10], index: 4, kind: input, shape index: {}]
  %s5 = inlined_call_operand.hbm [shape: f32[2,10], index: 5, kind: output, shape index: {}]
  %s6 = sld [smem:[#allocation0]]
  $region30: #{resnet_classifier_forward.1} parent=0
    _
  %s8 = ssub.s32 1, %s6
  %s9 = scalar_select 0, %s8, %s6
  $region1: #{resnet_classifier_forward.1} parent=0
    #allocation2 [shape = 'u8[1024]{0}', space=vmem, size = 0x400, scoped, tag = 'output window, operand 0, single buffered']
    #allocation3 [shape = 's32[1]{0}', space=sflag, size = 0x4, scoped, tag = 'scoped memory for resnet_classifier_forward.1']
    %10 = vsyncpa [#allocation3], 0
    // Predicated region
    $region2: #{resnet_classifier_forward.1} parent=1 // pred_check
      _
    $region3: #{resnet_classifier_forward.1} parent=1 // pred_check_branch
      %12 = sbr.rel (0) target = $region5
    $region4: #{resnet_classifier_forward.1} parent=1 // pred_region
      _
    $region5: #{resnet_classifier_forward.1} parent=1 // pred_fallthru
      _
    // Predicated region
    $region6: #{resnet_classifier_forward.1} parent=1 // pred_check
      _
    $region7: #{resnet_classifier_forward.1} parent=1 // pred_check_branch
      %14 = sbr.rel (0) target = $region9
    $region8: #{resnet_classifier_forward.1} parent=1 // pred_region
      _
    $region9: #{resnet_classifier_forward.1} parent=1 // pred_fallthru
      _
    // Predicated region
    $region10: #{resnet_classifier_forward.1} parent=1 // pred_check
      _
    $region11: #{resnet_classifier_forward.1} parent=1 // pred_check_branch
      %16 = sbr.rel (0) target = $region13
    $region12: #{resnet_classifier_forward.1} parent=1 // pred_region
      _
    $region13: #{resnet_classifier_forward.1} parent=1 // pred_fallthru
      _
    // Predicated region
    $region14: #{resnet_classifier_forward.1} parent=1 // pred_check
      _
    $region15: #{resnet_classifier_forward.1} parent=1 // pred_check_branch
      %18 = sbr.rel (0) target = $region17
    $region16: #{resnet_classifier_forward.1} parent=1 // pred_region
      _
    $region17: #{resnet_classifier_forward.1} parent=1 // pred_fallthru
      _
    // Predicated region
    $region18: #{resnet_classifier_forward.1} parent=1 // pred_check
      _
    $region19: #{resnet_classifier_forward.1} parent=1 // pred_check_branch
      %20 = sbr.rel (0) target = $region21
    $region20: #{resnet_classifier_forward.1} parent=1 // pred_region
      _
    $region21: #{resnet_classifier_forward.1} parent=1 // pred_fallthru
      _
    %v21 = vld [vmem:[%s0] sm:$0xf]
    %v22 = vld [vmem:[%s0 + $0x4] sm:$0xf]
    %v23 = vld [vmem:[%s0 + $0x8] sm:$0xf]
    %v24 = vld [vmem:[%s0 + $0xc] sm:$0xf]
    %v30 = vunpack.c.l.s4 1983009808
    %v31 = vunpack.c.0.s8 %v30
    %v32 = vlaneseq
    %v33 = vshrl.u32 %v32, 7
    %v34 = vsub.s32 %v31, %v33
    %v35 = vrot.slane %v21, %v34
    %v36 = vcombine.high %v35, %v35
    %v38 = vunpack.c.l.s4 1983009808
    %v39 = vunpack.c.0.s8 %v38
    %v40 = vlaneseq
    %v41 = vshrl.u32 %v40, 7
    %v42 = vsub.s32 %v39, %v41
    %v43 = vrot.slane %v22, %v42
    %v44 = vcombine.high %v43, %v43
    %v46 = vunpack.c.l.s4 1983009808
    %v47 = vunpack.c.0.s8 %v46
    %v48 = vlaneseq
    %v49 = vshrl.u32 %v48, 7
    %v50 = vsub.s32 %v47, %v49
    %v51 = vrot.slane %v23, %v50
    %v52 = vcombine.high %v51, %v51
    %v54 = vunpack.c.l.s4 1983009808
    %v55 = vunpack.c.0.s8 %v54
    %v56 = vlaneseq
    %v57 = vshrl.u32 %v56, 7
    %v58 = vsub.s32 %v55, %v57
    %v59 = vrot.slane %v24, %v58
    %v60 = vcombine.high %v59, %v59
    %vm69 = vcmask 1041408
    %v70 = vsel %vm69, %v35, 0.0
    %v71 = vsel %vm69, %v36, 0.0
    %v72 = vadd.f32 %v70, %v71
    %73 = vadd.xlane.f32.xlu0 %v72
    %v74 = vpop.xlane.xlu0 %73
    %v75 = vsel %vm69, %v43, 0.0
    %v76 = vsel %vm69, %v44, 0.0
    %v77 = vadd.f32 %v75, %v76
    %78 = vadd.xlane.f32.xlu0 %v77
    %v79 = vpop.xlane.xlu0 %78
    %v80 = vsel %vm69, %v51, 0.0
    %v81 = vsel %vm69, %v52, 0.0
    %v82 = vadd.f32 %v80, %v81
    %83 = vadd.xlane.f32.xlu0 %v82
    %v84 = vpop.xlane.xlu0 %83
    %v85 = vsel %vm69, %v59, 0.0
    %v86 = vsel %vm69, %v60, 0.0
    %v87 = vadd.f32 %v85, %v86
    %88 = vadd.xlane.f32.xlu0 %v87
    %v89 = vpop.xlane.xlu0 %88
    %v90 = vsel %vm69, %v74, 0.0
    %v91 = vrot.slane %v90, 4
    %v92 = vadd.f32 %v90, %v91
    %v93 = vrot.slane %v92, 2
    %v94 = vadd.f32 %v92, %v93
    %v95 = vrot.slane %v94, 1
    %v96 = vadd.f32 %v94, %v95
    %v97 = vsel %vm69, %v79, 0.0
    %v98 = vrot.slane %v97, 4
    %v99 = vadd.f32 %v97, %v98
    %v100 = vrot.slane %v99, 2
    %v101 = vadd.f32 %v99, %v100
    %v102 = vrot.slane %v101, 1
    %v103 = vadd.f32 %v101, %v102
    %v104 = vsel %vm69, %v84, 0.0
    %v105 = vrot.slane %v104, 4
    %v106 = vadd.f32 %v104, %v105
    %v107 = vrot.slane %v106, 2
    %v108 = vadd.f32 %v106, %v107
    %v109 = vrot.slane %v108, 1
    %v110 = vadd.f32 %v108, %v109
    %v111 = vsel %vm69, %v89, 0.0
    %v112 = vrot.slane %v111, 4
    %v113 = vadd.f32 %v111, %v112
    %v114 = vrot.slane %v113, 2
    %v115 = vadd.f32 %v113, %v114
    %v116 = vrot.slane %v115, 1
    %v117 = vadd.f32 %v115, %v116
    %v118 = vmul.f32 %v96, 0.001953125
    %v119 = vmul.f32 %v103, 0.001953125
    %v120 = vmul.f32 %v110, 0.001953125
    %v121 = vmul.f32 %v117, 0.001953125
    %v122 = vsub.f32 %v21, %v118
    %v123 = vsub.f32 %v22, %v119
    %v124 = vsub.f32 %v23, %v120
    %v125 = vsub.f32 %v24, %v121
    %v126 = vmul.f32 %v122, %v122
    %v127 = vmul.f32 %v123, %v123
    %v128 = vmul.f32 %v124, %v124
    %v129 = vmul.f32 %v125, %v125
    %v135 = vunpack.c.l.s4 1983009808
    %v136 = vunpack.c.0.s8 %v135
    %v137 = vlaneseq
    %v138 = vshrl.u32 %v137, 7
    %v139 = vsub.s32 %v136, %v138
    %v140 = vrot.slane %v126, %v139
    %v141 = vcombine.high %v140, %v140
    %v143 = vunpack.c.l.s4 1983009808
    %v144 = vunpack.c.0.s8 %v143
    %v145 = vlaneseq
    %v146 = vshrl.u32 %v145, 7
    %v147 = vsub.s32 %v144, %v146
    %v148 = vrot.slane %v127, %v147
    %v149 = vcombine.high %v148, %v148
    %v151 = vunpack.c.l.s4 1983009808
    %v152 = vunpack.c.0.s8 %v151
    %v153 = vlaneseq
    %v154 = vshrl.u32 %v153, 7
    %v155 = vsub.s32 %v152, %v154
    %v156 = vrot.slane %v128, %v155
    %v157 = vcombine.high %v156, %v156
    %v159 = vunpack.c.l.s4 1983009808
    %v160 = vunpack.c.0.s8 %v159
    %v161 = vlaneseq
    %v162 = vshrl.u32 %v161, 7
    %v163 = vsub.s32 %v160, %v162
    %v164 = vrot.slane %v129, %v163
    %v165 = vcombine.high %v164, %v164
    %v174 = vsel %vm69, %v140, 0.0
    %v175 = vsel %vm69, %v141, 0.0
    %v176 = vadd.f32 %v174, %v175
    %177 = vadd.xlane.f32.xlu0 %v176
    %v178 = vpop.xlane.xlu0 %177
    %v179 = vsel %vm69, %v148, 0.0
    %v180 = vsel %vm69, %v149, 0.0
    %v181 = vadd.f32 %v179, %v180
    %182 = vadd.xlane.f32.xlu0 %v181
    %v183 = vpop.xlane.xlu0 %182
    %v184 = vsel %vm69, %v156, 0.0
    %v185 = vsel %vm69, %v157, 0.0
    %v186 = vadd.f32 %v184, %v185
    %187 = vadd.xlane.f32.xlu0 %v186
    %v188 = vpop.xlane.xlu0 %187
    %v189 = vsel %vm69, %v164, 0.0
    %v190 = vsel %vm69, %v165, 0.0
    %v191 = vadd.f32 %v189, %v190
    %192 = vadd.xlane.f32.xlu0 %v191
    %v193 = vpop.xlane.xlu0 %192
    %v194 = vsel %vm69, %v178, 0.0
    %v195 = vrot.slane %v194, 4
    %v196 = vadd.f32 %v194, %v195
    %v197 = vrot.slane %v196, 2
    %v198 = vadd.f32 %v196, %v197
    %v199 = vrot.slane %v198, 1
    %v200 = vadd.f32 %v198, %v199
    %v201 = vsel %vm69, %v183, 0.0
    %v202 = vrot.slane %v201, 4
    %v203 = vadd.f32 %v201, %v202
    %v204 = vrot.slane %v203, 2
    %v205 = vadd.f32 %v203, %v204
    %v206 = vrot.slane %v205, 1
    %v207 = vadd.f32 %v205, %v206
    %v208 = vsel %vm69, %v188, 0.0
    %v209 = vrot.slane %v208, 4
    %v210 = vadd.f32 %v208, %v209
    %v211 = vrot.slane %v210, 2
    %v212 = vadd.f32 %v210, %v211
    %v213 = vrot.slane %v212, 1
    %v214 = vadd.f32 %v212, %v213
    %v215 = vsel %vm69, %v193, 0.0
    %v216 = vrot.slane %v215, 4
    %v217 = vadd.f32 %v215, %v216
    %v218 = vrot.slane %v217, 2
    %v219 = vadd.f32 %v217, %v218
    %v220 = vrot.slane %v219, 1
    %v221 = vadd.f32 %v219, %v220
    %v222 = vmul.f32 %v200, 0.001953125
    %v223 = vmul.f32 %v207, 0.001953125
    %v224 = vmul.f32 %v214, 0.001953125
    %v225 = vmul.f32 %v221, 0.001953125
    %v226 = vadd.f32 %v222, 1e-05
    %v227 = vadd.f32 %v223, 1e-05
    %v228 = vadd.f32 %v224, 1e-05
    %v229 = vadd.f32 %v225, 1e-05
    %v230 = vrsqrt.pop %v226
    %v231 = vrsqrt.pop %v227
    %v232 = vrsqrt.pop %v228
    %v233 = vrsqrt.pop %v229
    %v234 = vmul.f32 %v122, %v230
    %v235 = vmul.f32 %v123, %v231
    %v236 = vmul.f32 %v124, %v232
    %v237 = vmul.f32 %v125, %v233
    %v238 = vld [vmem:[%s1] sm:$0x1]
    %v239 = vld [vmem:[%s1 + $0x1] sm:$0x1]
    %v240 = vld [vmem:[%s1 + $0x2] sm:$0x1]
    %v241 = vld [vmem:[%s1 + $0x3] sm:$0x1]
    %v246 = vlaneseq
    %v247 = vshrl.u32 %v246, 7
    %v248 = vsub.s32 0, %v247
    %v249 = vrot.slane %v238, %v248
    %v250 = vlaneseq
    %v251 = vshrl.u32 %v250, 7
    %v252 = vsub.s32 0, %v251
    %v253 = vrot.slane %v239, %v252
    %v254 = vlaneseq
    %v255 = vshrl.u32 %v254, 7
    %v256 = vsub.s32 0, %v255
    %v257 = vrot.slane %v240, %v256
    %v258 = vlaneseq
    %v259 = vshrl.u32 %v258, 7
    %v260 = vsub.s32 0, %v259
    %v261 = vrot.slane %v241, %v260
    %262 = vset.pattern.permute.xlu0 0
    %263 = vperm.xlu0 %262, %v249
    %v264 = vpop.permute.xlu0 %263
    %266 = vset.pattern.permute.xlu0 0
    %267 = vperm.xlu0 %266, %v253
    %v268 = vpop.permute.xlu0 %267
    %270 = vset.pattern.permute.xlu0 0
    %271 = vperm.xlu0 %270, %v257
    %v272 = vpop.permute.xlu0 %271
    %274 = vset.pattern.permute.xlu0 0
    %275 = vperm.xlu0 %274, %v261
    %v276 = vpop.permute.xlu0 %275
    %v278 = vmul.f32 %v234, %v264
    %v279 = vmul.f32 %v235, %v268
    %v280 = vmul.f32 %v236, %v272
    %v281 = vmul.f32 %v237, %v276
    %v282 = vld [vmem:[%s2] sm:$0x1]
    %v283 = vld [vmem:[%s2 + $0x1] sm:$0x1]
    %v284 = vld [vmem:[%s2 + $0x2] sm:$0x1]
    %v285 = vld [vmem:[%s2 + $0x3] sm:$0x1]
    %v290 = vlaneseq
    %v291 = vshrl.u32 %v290, 7
    %v292 = vsub.s32 0, %v291
    %v293 = vrot.slane %v282, %v292
    %v294 = vlaneseq
    %v295 = vshrl.u32 %v294, 7
    %v296 = vsub.s32 0, %v295
    %v297 = vrot.slane %v283, %v296
    %v298 = vlaneseq
    %v299 = vshrl.u32 %v298, 7
    %v300 = vsub.s32 0, %v299
    %v301 = vrot.slane %v284, %v300
    %v302 = vlaneseq
    %v303 = vshrl.u32 %v302, 7
    %v304 = vsub.s32 0, %v303
    %v305 = vrot.slane %v285, %v304
    %306 = vset.pattern.permute.xlu0 0
    %307 = vperm.xlu0 %306, %v293
    %v308 = vpop.permute.xlu0 %307
    %310 = vset.pattern.permute.xlu0 0
    %311 = vperm.xlu0 %310, %v297
    %v312 = vpop.permute.xlu0 %311
    %314 = vset.pattern.permute.xlu0 0
    %315 = vperm.xlu0 %314, %v301
    %v316 = vpop.permute.xlu0 %315
    %318 = vset.pattern.permute.xlu0 0
    %319 = vperm.xlu0 %318, %v305
    %v320 = vpop.permute.xlu0 %319
    %v322 = vadd.f32 %v278, %v308
    %v323 = vadd.f32 %v279, %v312
    %v324 = vadd.f32 %v280, %v316
    %v325 = vadd.f32 %v281, %v320
    %v326 = vmax.f32 %v322, 0.0
    %v327 = vmax.f32 %v323, 0.0
    %v328 = vmax.f32 %v324, 0.0
    %v329 = vmax.f32 %v325, 0.0
    %v330 = vld [vmem:[%s3] sm:$0xff]
    %v331 = vld [vmem:[%s3 + $0x8] sm:$0xff]
    %v332 = vld [vmem:[%s3 + $0x10] sm:$0xff]
    %v333 = vld [vmem:[%s3 + $0x18] sm:$0xff]
    %v334 = vld [vmem:[%s3 + $0x20] sm:$0xff]
    %v335 = vld [vmem:[%s3 + $0x28] sm:$0xff]
    %v336 = vld [vmem:[%s3 + $0x30] sm:$0xff]
    %v337 = vld [vmem:[%s3 + $0x38] sm:$0xff]
    %v338 = vld [vmem:[%s3 + $0x40] sm:$0xff]
    %v339 = vld [vmem:[%s3 + $0x48] sm:$0xff]
    %v340 = vld [vmem:[%s3 + $0x50] sm:$0xff]
    %v341 = vld [vmem:[%s3 + $0x58] sm:$0xff]
    %v342 = vld [vmem:[%s3 + $0x60] sm:$0xff]
    %v343 = vld [vmem:[%s3 + $0x68] sm:$0xff]
    %v344 = vld [vmem:[%s3 + $0x70] sm:$0xff]
    %v345 = vld [vmem:[%s3 + $0x78] sm:$0xff]
    %v346 = vld [vmem:[%s3 + $0x80] sm:$0xff]
    %v347 = vld [vmem:[%s3 + $0x88] sm:$0xff]
    %v348 = vld [vmem:[%s3 + $0x90] sm:$0xff]
    %v349 = vld [vmem:[%s3 + $0x98] sm:$0xff]
    %v350 = vld [vmem:[%s3 + $0xa0] sm:$0xff]
    %v351 = vld [vmem:[%s3 + $0xa8] sm:$0xff]
    %v352 = vld [vmem:[%s3 + $0xb0] sm:$0xff]
    %v353 = vld [vmem:[%s3 + $0xb8] sm:$0xff]
    %v354 = vld [vmem:[%s3 + $0xc0] sm:$0xff]
    %v355 = vld [vmem:[%s3 + $0xc8] sm:$0xff]
    %v356 = vld [vmem:[%s3 + $0xd0] sm:$0xff]
    %v357 = vld [vmem:[%s3 + $0xd8] sm:$0xff]
    %v358 = vld [vmem:[%s3 + $0xe0] sm:$0xff]
    %v359 = vld [vmem:[%s3 + $0xe8] sm:$0xff]
    %v360 = vld [vmem:[%s3 + $0xf0] sm:$0xff]
    %v361 = vld [vmem:[%s3 + $0xf8] sm:$0xff]
    %v362 = vld [vmem:[%s3 + $0x100] sm:$0xff]
    %v363 = vld [vmem:[%s3 + $0x108] sm:$0xff]
    %v364 = vld [vmem:[%s3 + $0x110] sm:$0xff]
    %v365 = vld [vmem:[%s3 + $0x118] sm:$0xff]
    %v366 = vld [vmem:[%s3 + $0x120] sm:$0xff]
    %v367 = vld [vmem:[%s3 + $0x128] sm:$0xff]
    %v368 = vld [vmem:[%s3 + $0x130] sm:$0xff]
    %v369 = vld [vmem:[%s3 + $0x138] sm:$0xff]
    %v370 = vld [vmem:[%s3 + $0x140] sm:$0xff]
    %v371 = vld [vmem:[%s3 + $0x148] sm:$0xff]
    %v372 = vld [vmem:[%s3 + $0x150] sm:$0xff]
    %v373 = vld [vmem:[%s3 + $0x158] sm:$0xff]
    %v374 = vld [vmem:[%s3 + $0x160] sm:$0xff]
    %v375 = vld [vmem:[%s3 + $0x168] sm:$0xff]
    %v376 = vld [vmem:[%s3 + $0x170] sm:$0xff]
    %v377 = vld [vmem:[%s3 + $0x178] sm:$0xff]
    %v378 = vld [vmem:[%s3 + $0x180] sm:$0xff]
    %v379 = vld [vmem:[%s3 + $0x188] sm:$0xff]
    %v380 = vld [vmem:[%s3 + $0x190] sm:$0xff]
    %v381 = vld [vmem:[%s3 + $0x198] sm:$0xff]
    %v382 = vld [vmem:[%s3 + $0x1a0] sm:$0xff]
    %v383 = vld [vmem:[%s3 + $0x1a8] sm:$0xff]
    %v384 = vld [vmem:[%s3 + $0x1b0] sm:$0xff]
    %v385 = vld [vmem:[%s3 + $0x1b8] sm:$0xff]
    %v386 = vld [vmem:[%s3 + $0x1c0] sm:$0xff]
    %v387 = vld [vmem:[%s3 + $0x1c8] sm:$0xff]
    %v388 = vld [vmem:[%s3 + $0x1d0] sm:$0xff]
    %v389 = vld [vmem:[%s3 + $0x1d8] sm:$0xff]
    %v390 = vld [vmem:[%s3 + $0x1e0] sm:$0xff]
    %v391 = vld [vmem:[%s3 + $0x1e8] sm:$0xff]
    %v392 = vld [vmem:[%s3 + $0x1f0] sm:$0xff]
    %v393 = vld [vmem:[%s3 + $0x1f8] sm:$0xff]
    %v394 = vld [vmem:[%s3 + $0x200] sm:$0xff]
    %v395 = vld [vmem:[%s3 + $0x208] sm:$0xff]
    %v396 = vld [vmem:[%s3 + $0x210] sm:$0xff]
    %v397 = vld [vmem:[%s3 + $0x218] sm:$0xff]
    %v398 = vld [vmem:[%s3 + $0x220] sm:$0xff]
    %v399 = vld [vmem:[%s3 + $0x228] sm:$0xff]
    %v400 = vld [vmem:[%s3 + $0x230] sm:$0xff]
    %v401 = vld [vmem:[%s3 + $0x238] sm:$0xff]
    %v402 = vld [vmem:[%s3 + $0x240] sm:$0xff]
    %v403 = vld [vmem:[%s3 + $0x248] sm:$0xff]
    %v404 = vld [vmem:[%s3 + $0x250] sm:$0xff]
    %v405 = vld [vmem:[%s3 + $0x258] sm:$0xff]
    %v406 = vld [vmem:[%s3 + $0x260] sm:$0xff]
    %v407 = vld [vmem:[%s3 + $0x268] sm:$0xff]
    %v408 = vld [vmem:[%s3 + $0x270] sm:$0xff]
    %v409 = vld [vmem:[%s3 + $0x278] sm:$0xff]
    %v410 = vld [vmem:[%s3 + $0x280] sm:$0xff]
    %v411 = vld [vmem:[%s3 + $0x288] sm:$0xff]
    %v412 = vld [vmem:[%s3 + $0x290] sm:$0xff]
    %v413 = vld [vmem:[%s3 + $0x298] sm:$0xff]
    %v414 = vld [vmem:[%s3 + $0x2a0] sm:$0xff]
    %v415 = vld [vmem:[%s3 + $0x2a8] sm:$0xff]
    %v416 = vld [vmem:[%s3 + $0x2b0] sm:$0xff]
    %v417 = vld [vmem:[%s3 + $0x2b8] sm:$0xff]
    %v418 = vld [vmem:[%s3 + $0x2c0] sm:$0xff]
    %v419 = vld [vmem:[%s3 + $0x2c8] sm:$0xff]
    %v420 = vld [vmem:[%s3 + $0x2d0] sm:$0xff]
    %v421 = vld [vmem:[%s3 + $0x2d8] sm:$0xff]
    %v422 = vld [vmem:[%s3 + $0x2e0] sm:$0xff]
    %v423 = vld [vmem:[%s3 + $0x2e8] sm:$0xff]
    %v424 = vld [vmem:[%s3 + $0x2f0] sm:$0xff]
    %v425 = vld [vmem:[%s3 + $0x2f8] sm:$0xff]
    %v426 = vld [vmem:[%s3 + $0x300] sm:$0xff]
    %v427 = vld [vmem:[%s3 + $0x308] sm:$0xff]
    %v428 = vld [vmem:[%s3 + $0x310] sm:$0xff]
    %v429 = vld [vmem:[%s3 + $0x318] sm:$0xff]
    %v430 = vld [vmem:[%s3 + $0x320] sm:$0xff]
    %v431 = vld [vmem:[%s3 + $0x328] sm:$0xff]
    %v432 = vld [vmem:[%s3 + $0x330] sm:$0xff]
    %v433 = vld [vmem:[%s3 + $0x338] sm:$0xff]
    %v434 = vld [vmem:[%s3 + $0x340] sm:$0xff]
    %v435 = vld [vmem:[%s3 + $0x348] sm:$0xff]
    %v436 = vld [vmem:[%s3 + $0x350] sm:$0xff]
    %v437 = vld [vmem:[%s3 + $0x358] sm:$0xff]
    %v438 = vld [vmem:[%s3 + $0x360] sm:$0xff]
    %v439 = vld [vmem:[%s3 + $0x368] sm:$0xff]
    %v440 = vld [vmem:[%s3 + $0x370] sm:$0xff]
    %v441 = vld [vmem:[%s3 + $0x378] sm:$0xff]
    %v442 = vld [vmem:[%s3 + $0x380] sm:$0xff]
    %v443 = vld [vmem:[%s3 + $0x388] sm:$0xff]
    %v444 = vld [vmem:[%s3 + $0x390] sm:$0xff]
    %v445 = vld [vmem:[%s3 + $0x398] sm:$0xff]
    %v446 = vld [vmem:[%s3 + $0x3a0] sm:$0xff]
    %v447 = vld [vmem:[%s3 + $0x3a8] sm:$0xff]
    %v448 = vld [vmem:[%s3 + $0x3b0] sm:$0xff]
    %v449 = vld [vmem:[%s3 + $0x3b8] sm:$0xff]
    %v450 = vld [vmem:[%s3 + $0x3c0] sm:$0xff]
    %v451 = vld [vmem:[%s3 + $0x3c8] sm:$0xff]
    %v452 = vld [vmem:[%s3 + $0x3d0] sm:$0xff]
    %v453 = vld [vmem:[%s3 + $0x3d8] sm:$0xff]
    %v454 = vld [vmem:[%s3 + $0x3e0] sm:$0xff]
    %v455 = vld [vmem:[%s3 + $0x3e8] sm:$0xff]
    %v456 = vld [vmem:[%s3 + $0x3f0] sm:$0xff]
    %v457 = vld [vmem:[%s3 + $0x3f8] sm:$0xff]
    %v460 = vunpack.c.l.s4 1983009808
    %v461 = vunpack.c.0.s8 %v460
    %v462 = vlaneseq
    %v463 = vshrl.u32 %v462, 7
    %v464 = vsub.s32 %v461, %v463
    %v465 = vrot.slane %v326, %v464
    %v466 = vcombine.high %v465, %v465
    %469 = vmatprep.subr.mxu0 0.0
    %v470 = vand.u32 %v330, 4294901760
    %471 = vmatpush1.msra.mxu0 %v470
    %472 = vmatprep.subr.mxu0 0.0
    %v473 = vand.u32 %v331, 4294901760
    %474 = vmatpush1.msra.mxu0 %v473
    %475 = vmatprep.subr.mxu0 0.0
    %v476 = vand.u32 %v332, 4294901760
    %477 = vmatpush1.msra.mxu0 %v476
    %478 = vmatprep.subr.mxu0 0.0
    %v479 = vand.u32 %v333, 4294901760
    %480 = vmatpush1.msra.mxu0 %v479
    %481 = vmatprep.subr.mxu0 0.0
    %v482 = vand.u32 %v334, 4294901760
    %483 = vmatpush1.msra.mxu0 %v482
    %484 = vmatprep.subr.mxu0 0.0
    %v485 = vand.u32 %v335, 4294901760
    %486 = vmatpush1.msra.mxu0 %v485
    %487 = vmatprep.subr.mxu0 0.0
    %v488 = vand.u32 %v336, 4294901760
    %489 = vmatpush1.msra.mxu0 %v488
    %490 = vmatprep.subr.mxu0 0.0
    %v491 = vand.u32 %v337, 4294901760
    %492 = vmatpush1.msra.mxu0 %v491
    %493 = vmatprep.subr.mxu0 0.0
    %v494 = vand.u32 %v338, 4294901760
    %495 = vmatpush1.msra.mxu0 %v494
    %496 = vmatprep.subr.mxu0 0.0
    %v497 = vand.u32 %v339, 4294901760
    %498 = vmatpush1.msra.mxu0 %v497
    %499 = vmatprep.subr.mxu0 0.0
    %v500 = vand.u32 %v340, 4294901760
    %501 = vmatpush1.msra.mxu0 %v500
    %502 = vmatprep.subr.mxu0 0.0
    %v503 = vand.u32 %v341, 4294901760
    %504 = vmatpush1.msra.mxu0 %v503
    %505 = vmatprep.subr.mxu0 0.0
    %v506 = vand.u32 %v342, 4294901760
    %507 = vmatpush1.msra.mxu0 %v506
    %508 = vmatprep.subr.mxu0 0.0
    %v509 = vand.u32 %v343, 4294901760
    %510 = vmatpush1.msra.mxu0 %v509
    %511 = vmatprep.subr.mxu0 0.0
    %v512 = vand.u32 %v344, 4294901760
    %513 = vmatpush1.msra.mxu0 %v512
    %514 = vmatprep.subr.mxu0 0.0
    %v515 = vand.u32 %v345, 4294901760
    %516 = vmatpush1.msra.mxu0 %v515
    %517 = vmatprep.subr.mxu0 0.0
    %v518 = vand.u32 %v346, 4294901760
    %519 = vmatpush1.msra.mxu0 %v518
    %520 = vmatprep.subr.mxu0 0.0
    %v521 = vand.u32 %v347, 4294901760
    %522 = vmatpush1.msra.mxu0 %v521
    %523 = vmatprep.subr.mxu0 0.0
    %v524 = vand.u32 %v348, 4294901760
    %525 = vmatpush1.msra.mxu0 %v524
    %526 = vmatprep.subr.mxu0 0.0
    %v527 = vand.u32 %v349, 4294901760
    %528 = vmatpush1.msra.mxu0 %v527
    %529 = vmatprep.subr.mxu0 0.0
    %v530 = vand.u32 %v350, 4294901760
    %531 = vmatpush1.msra.mxu0 %v530
    %532 = vmatprep.subr.mxu0 0.0
    %v533 = vand.u32 %v351, 4294901760
    %534 = vmatpush1.msra.mxu0 %v533
    %535 = vmatprep.subr.mxu0 0.0
    %v536 = vand.u32 %v352, 4294901760
    %537 = vmatpush1.msra.mxu0 %v536
    %538 = vmatprep.subr.mxu0 0.0
    %v539 = vand.u32 %v353, 4294901760
    %540 = vmatpush1.msra.mxu0 %v539
    %541 = vmatprep.subr.mxu0 0.0
    %v542 = vand.u32 %v354, 4294901760
    %543 = vmatpush1.msra.mxu0 %v542
    %544 = vmatprep.subr.mxu0 0.0
    %v545 = vand.u32 %v355, 4294901760
    %546 = vmatpush1.msra.mxu0 %v545
    %547 = vmatprep.subr.mxu0 0.0
    %v548 = vand.u32 %v356, 4294901760
    %549 = vmatpush1.msra.mxu0 %v548
    %550 = vmatprep.subr.mxu0 0.0
    %v551 = vand.u32 %v357, 4294901760
    %552 = vmatpush1.msra.mxu0 %v551
    %553 = vmatprep.subr.mxu0 0.0
    %v554 = vand.u32 %v358, 4294901760
    %555 = vmatpush1.msra.mxu0 %v554
    %556 = vmatprep.subr.mxu0 0.0
    %v557 = vand.u32 %v359, 4294901760
    %558 = vmatpush1.msra.mxu0 %v557
    %559 = vmatprep.subr.mxu0 0.0
    %v560 = vand.u32 %v360, 4294901760
    %561 = vmatpush1.msra.mxu0 %v560
    %562 = vmatprep.subr.mxu0 0.0
    %v563 = vand.u32 %v361, 4294901760
    %564 = vmatpush1.msra.mxu0 %v563
    %v565 = vand.u32 %v466, 4294901760
    %v566 = vsub.f32 %v466, %v565
    %v567 = vand.u32 %v566, 4294901760
    %v568 = vsub.f32 %v566, %v567
    %v569 = vand.u32 %v568, 4294901760
    %570 = vmatprep.mubr.f32.mxu0 %v569
    %v571 = vand.u32 %v465, 4294901760
    %v572 = vsub.f32 %v465, %v571
    %v573 = vand.u32 %v572, 4294901760
    %v574 = vsub.f32 %v572, %v573
    %v575 = vand.u32 %v574, 4294901760
    %576 = vmatmul.mubr.f32.gmra.mrb[0].mxu0 %v575
    %v577 = vpop.f32.mrb[0].mxu0
    %v578 = vadd.f32 0.0, %v577
    %v579 = vpop.f32.mrb[0].mxu0
    %580 = vdwg.mxu0
    %581 = vmatprep.subr.mxu0 0.0
    %v582 = vand.u32 %v330, 4294901760
    %v583 = vsub.f32 %v330, %v582
    %v584 = vand.u32 %v583, 4294901760
    %v585 = vsub.f32 %v583, %v584
    %v586 = vand.u32 %v585, 4294901760
    %587 = vmatpush1.msra.mxu0 %v586
    %588 = vmatprep.subr.mxu0 0.0
    %v589 = vand.u32 %v331, 4294901760
    %v590 = vsub.f32 %v331, %v589
    %v591 = vand.u32 %v590, 4294901760
    %v592 = vsub.f32 %v590, %v591
    %v593 = vand.u32 %v592, 4294901760
    %594 = vmatpush1.msra.mxu0 %v593
    %595 = vmatprep.subr.mxu0 0.0
    %v596 = vand.u32 %v332, 4294901760
    %v597 = vsub.f32 %v332, %v596
    %v598 = vand.u32 %v597, 4294901760
    %v599 = vsub.f32 %v597, %v598
    %v600 = vand.u32 %v599, 4294901760
    %601 = vmatpush1.msra.mxu0 %v600
    %602 = vmatprep.subr.mxu0 0.0
    %v603 = vand.u32 %v333, 4294901760
    %v604 = vsub.f32 %v333, %v603
    %v605 = vand.u32 %v604, 4294901760
    %v606 = vsub.f32 %v604, %v605
    %v607 = vand.u32 %v606, 4294901760
    %608 = vmatpush1.msra.mxu0 %v607
    %609 = vmatprep.subr.mxu0 0.0
    %v610 = vand.u32 %v334, 4294901760
    %v611 = vsub.f32 %v334, %v610
    %v612 = vand.u32 %v611, 4294901760
    %v613 = vsub.f32 %v611, %v612
    %v614 = vand.u32 %v613, 4294901760
    %615 = vmatpush1.msra.mxu0 %v614
    %616 = vmatprep.subr.mxu0 0.0
    %v617 = vand.u32 %v335, 4294901760
    %v618 = vsub.f32 %v335, %v617
    %v619 = vand.u32 %v618, 4294901760
    %v620 = vsub.f32 %v618, %v619
    %v621 = vand.u32 %v620, 4294901760
    %622 = vmatpush1.msra.mxu0 %v621
    %623 = vmatprep.subr.mxu0 0.0
    %v624 = vand.u32 %v336, 4294901760
    %v625 = vsub.f32 %v336, %v624
    %v626 = vand.u32 %v625, 4294901760
    %v627 = vsub.f32 %v625, %v626
    %v628 = vand.u32 %v627, 4294901760
    %629 = vmatpush1.msra.mxu0 %v628
    %630 = vmatprep.subr.mxu0 0.0
    %v631 = vand.u32 %v337, 4294901760
    %v632 = vsub.f32 %v337, %v631
    %v633 = vand.u32 %v632, 4294901760
    %v634 = vsub.f32 %v632, %v633
    %v635 = vand.u32 %v634, 4294901760
    %636 = vmatpush1.msra.mxu0 %v635
    %637 = vmatprep.subr.mxu0 0.0
    %v638 = vand.u32 %v338, 4294901760
    %v639 = vsub.f32 %v338, %v638
    %v640 = vand.u32 %v639, 4294901760
    %v641 = vsub.f32 %v639, %v640
    %v642 = vand.u32 %v641, 4294901760
    %643 = vmatpush1.msra.mxu0 %v642
    %644 = vmatprep.subr.mxu0 0.0
    %v645 = vand.u32 %v339, 4294901760
    %v646 = vsub.f32 %v339, %v645
    %v647 = vand.u32 %v646, 4294901760
    %v648 = vsub.f32 %v646, %v647
    %v649 = vand.u32 %v648, 4294901760
    %650 = vmatpush1.msra.mxu0 %v649
    %651 = vmatprep.subr.mxu0 0.0
    %v652 = vand.u32 %v340, 4294901760
    %v653 = vsub.f32 %v340, %v652
    %v654 = vand.u32 %v653, 4294901760
    %v655 = vsub.f32 %v653, %v654
    %v656 = vand.u32 %v655, 4294901760
    %657 = vmatpush1.msra.mxu0 %v656
    %658 = vmatprep.subr.mxu0 0.0
    %v659 = vand.u32 %v341, 4294901760
    %v660 = vsub.f32 %v341, %v659
    %v661 = vand.u32 %v660, 4294901760
    %v662 = vsub.f32 %v660, %v661
    %v663 = vand.u32 %v662, 4294901760
    %664 = vmatpush1.msra.mxu0 %v663
    %665 = vmatprep.subr.mxu0 0.0
    %v666 = vand.u32 %v342, 4294901760
    %v667 = vsub.f32 %v342, %v666
    %v668 = vand.u32 %v667, 4294901760
    %v669 = vsub.f32 %v667, %v668
    %v670 = vand.u32 %v669, 4294901760
    %671 = vmatpush1.msra.mxu0 %v670
    %672 = vmatprep.subr.mxu0 0.0
    %v673 = vand.u32 %v343, 4294901760
    %v674 = vsub.f32 %v343, %v673
    %v675 = vand.u32 %v674, 4294901760
    %v676 = vsub.f32 %v674, %v675
    %v677 = vand.u32 %v676, 4294901760
    %678 = vmatpush1.msra.mxu0 %v677
    %679 = vmatprep.subr.mxu0 0.0
    %v680 = vand.u32 %v344, 4294901760
    %v681 = vsub.f32 %v344, %v680
    %v682 = vand.u32 %v681, 4294901760
    %v683 = vsub.f32 %v681, %v682
    %v684 = vand.u32 %v683, 4294901760
    %685 = vmatpush1.msra.mxu0 %v684
    %686 = vmatprep.subr.mxu0 0.0
    %v687 = vand.u32 %v345, 4294901760
    %v688 = vsub.f32 %v345, %v687
    %v689 = vand.u32 %v688, 4294901760
    %v690 = vsub.f32 %v688, %v689
    %v691 = vand.u32 %v690, 4294901760
    %692 = vmatpush1.msra.mxu0 %v691
    %693 = vmatprep.subr.mxu0 0.0
    %v694 = vand.u32 %v346, 4294901760
    %v695 = vsub.f32 %v346, %v694
    %v696 = vand.u32 %v695, 4294901760
    %v697 = vsub.f32 %v695, %v696
    %v698 = vand.u32 %v697, 4294901760
    %699 = vmatpush1.msra.mxu0 %v698
    %700 = vmatprep.subr.mxu0 0.0
    %v701 = vand.u32 %v347, 4294901760
    %v702 = vsub.f32 %v347, %v701
    %v703 = vand.u32 %v702, 4294901760
    %v704 = vsub.f32 %v702, %v703
    %v705 = vand.u32 %v704, 4294901760
    %706 = vmatpush1.msra.mxu0 %v705
    %707 = vmatprep.subr.mxu0 0.0
    %v708 = vand.u32 %v348, 4294901760
    %v709 = vsub.f32 %v348, %v708
    %v710 = vand.u32 %v709, 4294901760
    %v711 = vsub.f32 %v709, %v710
    %v712 = vand.u32 %v711, 4294901760
    %713 = vmatpush1.msra.mxu0 %v712
    %714 = vmatprep.subr.mxu0 0.0
    %v715 = vand.u32 %v349, 4294901760
    %v716 = vsub.f32 %v349, %v715
    %v717 = vand.u32 %v716, 4294901760
    %v718 = vsub.f32 %v716, %v717
    %v719 = vand.u32 %v718, 4294901760
    %720 = vmatpush1.msra.mxu0 %v719
    %721 = vmatprep.subr.mxu0 0.0
    %v722 = vand.u32 %v350, 4294901760
    %v723 = vsub.f32 %v350, %v722
    %v724 = vand.u32 %v723, 4294901760
    %v725 = vsub.f32 %v723, %v724
    %v726 = vand.u32 %v725, 4294901760
    %727 = vmatpush1.msra.mxu0 %v726
    %728 = vmatprep.subr.mxu0 0.0
    %v729 = vand.u32 %v351, 4294901760
    %v730 = vsub.f32 %v351, %v729
    %v731 = vand.u32 %v730, 4294901760
    %v732 = vsub.f32 %v730, %v731
    %v733 = vand.u32 %v732, 4294901760
    %734 = vmatpush1.msra.mxu0 %v733
    %735 = vmatprep.subr.mxu0 0.0
    %v736 = vand.u32 %v352, 4294901760
    %v737 = vsub.f32 %v352, %v736
    %v738 = vand.u32 %v737, 4294901760
    %v739 = vsub.f32 %v737, %v738
    %v740 = vand.u32 %v739, 4294901760
    %741 = vmatpush1.msra.mxu0 %v740
    %742 = vmatprep.subr.mxu0 0.0
    %v743 = vand.u32 %v353, 4294901760
    %v744 = vsub.f32 %v353, %v743
    %v745 = vand.u32 %v744, 4294901760
    %v746 = vsub.f32 %v744, %v745
    %v747 = vand.u32 %v746, 4294901760
    %748 = vmatpush1.msra.mxu0 %v747
    %749 = vmatprep.subr.mxu0 0.0
    %v750 = vand.u32 %v354, 4294901760
    %v751 = vsub.f32 %v354, %v750
    %v752 = vand.u32 %v751, 4294901760
    %v753 = vsub.f32 %v751, %v752
    %v754 = vand.u32 %v753, 4294901760
    %755 = vmatpush1.msra.mxu0 %v754
    %756 = vmatprep.subr.mxu0 0.0
    %v757 = vand.u32 %v355, 4294901760
    %v758 = vsub.f32 %v355, %v757
    %v759 = vand.u32 %v758, 4294901760
    %v760 = vsub.f32 %v758, %v759
    %v761 = vand.u32 %v760, 4294901760
    %762 = vmatpush1.msra.mxu0 %v761
    %763 = vmatprep.subr.mxu0 0.0
    %v764 = vand.u32 %v356, 4294901760
    %v765 = vsub.f32 %v356, %v764
    %v766 = vand.u32 %v765, 4294901760
    %v767 = vsub.f32 %v765, %v766
    %v768 = vand.u32 %v767, 4294901760
    %769 = vmatpush1.msra.mxu0 %v768
    %770 = vmatprep.subr.mxu0 0.0
    %v771 = vand.u32 %v357, 4294901760
    %v772 = vsub.f32 %v357, %v771
    %v773 = vand.u32 %v772, 4294901760
    %v774 = vsub.f32 %v772, %v773
    %v775 = vand.u32 %v774, 4294901760
    %776 = vmatpush1.msra.mxu0 %v775
    %777 = vmatprep.subr.mxu0 0.0
    %v778 = vand.u32 %v358, 4294901760
    %v779 = vsub.f32 %v358, %v778
    %v780 = vand.u32 %v779, 4294901760
    %v781 = vsub.f32 %v779, %v780
    %v782 = vand.u32 %v781, 4294901760
    %783 = vmatpush1.msra.mxu0 %v782
    %784 = vmatprep.subr.mxu0 0.0
    %v785 = vand.u32 %v359, 4294901760
    %v786 = vsub.f32 %v359, %v785
    %v787 = vand.u32 %v786, 4294901760
    %v788 = vsub.f32 %v786, %v787
    %v789 = vand.u32 %v788, 4294901760
    %790 = vmatpush1.msra.mxu0 %v789
    %791 = vmatprep.subr.mxu0 0.0
    %v792 = vand.u32 %v360, 4294901760
    %v793 = vsub.f32 %v360, %v792
    %v794 = vand.u32 %v793, 4294901760
    %v795 = vsub.f32 %v793, %v794
    %v796 = vand.u32 %v795, 4294901760
    %797 = vmatpush1.msra.mxu0 %v796
    %798 = vmatprep.subr.mxu0 0.0
    %v799 = vand.u32 %v361, 4294901760
    %v800 = vsub.f32 %v361, %v799
    %v801 = vand.u32 %v800, 4294901760
    %v802 = vsub.f32 %v800, %v801
    %v803 = vand.u32 %v802, 4294901760
    %804 = vmatpush1.msra.mxu0 %v803
    %v805 = vand.u32 %v466, 4294901760
    %806 = vmatprep.mubr.f32.mxu0 %v805
    %v807 = vand.u32 %v465, 4294901760
    %808 = vmatmul.mubr.f32.gmra.mrb[0].mxu0 %v807
    %v809 = vpop.f32.mrb[0].mxu0
    %v810 = vadd.f32 %v578, %v809
    %v811 = vpop.f32.mrb[0].mxu0
    %812 = vdwg.mxu0
    %813 = vmatprep.subr.mxu0 0.0
    %v814 = vand.u32 %v330, 4294901760
    %v815 = vsub.f32 %v330, %v814
    %816 = vmatpush1.msra.mxu0 %v815
    %817 = vmatprep.subr.mxu0 0.0
    %v818 = vand.u32 %v331, 4294901760
    %v819 = vsub.f32 %v331, %v818
    %820 = vmatpush1.msra.mxu0 %v819
    %821 = vmatprep.subr.mxu0 0.0
    %v822 = vand.u32 %v332, 4294901760
    %v823 = vsub.f32 %v332, %v822
    %824 = vmatpush1.msra.mxu0 %v823
    %825 = vmatprep.subr.mxu0 0.0
    %v826 = vand.u32 %v333, 4294901760
    %v827 = vsub.f32 %v333, %v826
    %828 = vmatpush1.msra.mxu0 %v827
    %829 = vmatprep.subr.mxu0 0.0
    %v830 = vand.u32 %v334, 4294901760
    %v831 = vsub.f32 %v334, %v830
    %832 = vmatpush1.msra.mxu0 %v831
    %833 = vmatprep.subr.mxu0 0.0
    %v834 = vand.u32 %v335, 4294901760
    %v835 = vsub.f32 %v335, %v834
    %836 = vmatpush1.msra.mxu0 %v835
    %837 = vmatprep.subr.mxu0 0.0
    %v838 = vand.u32 %v336, 4294901760
    %v839 = vsub.f32 %v336, %v838
    %840 = vmatpush1.msra.mxu0 %v839
    %841 = vmatprep.subr.mxu0 0.0
    %v842 = vand.u32 %v337, 4294901760
    %v843 = vsub.f32 %v337, %v842
    %844 = vmatpush1.msra.mxu0 %v843
    %845 = vmatprep.subr.mxu0 0.0
    %v846 = vand.u32 %v338, 4294901760
    %v847 = vsub.f32 %v338, %v846
    %848 = vmatpush1.msra.mxu0 %v847
    %849 = vmatprep.subr.mxu0 0.0
    %v850 = vand.u32 %v339, 4294901760
    %v851 = vsub.f32 %v339, %v850
    %852 = vmatpush1.msra.mxu0 %v851
    %853 = vmatprep.subr.mxu0 0.0
    %v854 = vand.u32 %v340, 4294901760
    %v855 = vsub.f32 %v340, %v854
    %856 = vmatpush1.msra.mxu0 %v855
    %857 = vmatprep.subr.mxu0 0.0
    %v858 = vand.u32 %v341, 4294901760
    %v859 = vsub.f32 %v341, %v858
    %860 = vmatpush1.msra.mxu0 %v859
    %861 = vmatprep.subr.mxu0 0.0
    %v862 = vand.u32 %v342, 4294901760
    %v863 = vsub.f32 %v342, %v862
    %864 = vmatpush1.msra.mxu0 %v863
    %865 = vmatprep.subr.mxu0 0.0
    %v866 = vand.u32 %v343, 4294901760
    %v867 = vsub.f32 %v343, %v866
    %868 = vmatpush1.msra.mxu0 %v867
    %869 = vmatprep.subr.mxu0 0.0
    %v870 = vand.u32 %v344, 4294901760
    %v871 = vsub.f32 %v344, %v870
    %872 = vmatpush1.msra.mxu0 %v871
    %873 = vmatprep.subr.mxu0 0.0
    %v874 = vand.u32 %v345, 4294901760
    %v875 = vsub.f32 %v345, %v874
    %876 = vmatpush1.msra.mxu0 %v875
    %877 = vmatprep.subr.mxu0 0.0
    %v878 = vand.u32 %v346, 4294901760
    %v879 = vsub.f32 %v346, %v878
    %880 = vmatpush1.msra.mxu0 %v879
    %881 = vmatprep.subr.mxu0 0.0
    %v882 = vand.u32 %v347, 4294901760
    %v883 = vsub.f32 %v347, %v882
    %884 = vmatpush1.msra.mxu0 %v883
    %885 = vmatprep.subr.mxu0 0.0
    %v886 = vand.u32 %v348, 4294901760
    %v887 = vsub.f32 %v348, %v886
    %888 = vmatpush1.msra.mxu0 %v887
    %889 = vmatprep.subr.mxu0 0.0
    %v890 = vand.u32 %v349, 4294901760
    %v891 = vsub.f32 %v349, %v890
    %892 = vmatpush1.msra.mxu0 %v891
    %893 = vmatprep.subr.mxu0 0.0
    %v894 = vand.u32 %v350, 4294901760
    %v895 = vsub.f32 %v350, %v894
    %896 = vmatpush1.msra.mxu0 %v895
    %897 = vmatprep.subr.mxu0 0.0
    %v898 = vand.u32 %v351, 4294901760
    %v899 = vsub.f32 %v351, %v898
    %900 = vmatpush1.msra.mxu0 %v899
    %901 = vmatprep.subr.mxu0 0.0
    %v902 = vand.u32 %v352, 4294901760
    %v903 = vsub.f32 %v352, %v902
    %904 = vmatpush1.msra.mxu0 %v903
    %905 = vmatprep.subr.mxu0 0.0
    %v906 = vand.u32 %v353, 4294901760
    %v907 = vsub.f32 %v353, %v906
    %908 = vmatpush1.msra.mxu0 %v907
    %909 = vmatprep.subr.mxu0 0.0
    %v910 = vand.u32 %v354, 4294901760
    %v911 = vsub.f32 %v354, %v910
    %912 = vmatpush1.msra.mxu0 %v911
    %913 = vmatprep.subr.mxu0 0.0
    %v914 = vand.u32 %v355, 4294901760
    %v915 = vsub.f32 %v355, %v914
    %916 = vmatpush1.msra.mxu0 %v915
    %917 = vmatprep.subr.mxu0 0.0
    %v918 = vand.u32 %v356, 4294901760
    %v919 = vsub.f32 %v356, %v918
    %920 = vmatpush1.msra.mxu0 %v919
    %921 = vmatprep.subr.mxu0 0.0
    %v922 = vand.u32 %v357, 4294901760
    %v923 = vsub.f32 %v357, %v922
    %924 = vmatpush1.msra.mxu0 %v923
    %925 = vmatprep.subr.mxu0 0.0
    %v926 = vand.u32 %v358, 4294901760
    %v927 = vsub.f32 %v358, %v926
    %928 = vmatpush1.msra.mxu0 %v927
    %929 = vmatprep.subr.mxu0 0.0
    %v930 = vand.u32 %v359, 4294901760
    %v931 = vsub.f32 %v359, %v930
    %932 = vmatpush1.msra.mxu0 %v931
    %933 = vmatprep.subr.mxu0 0.0
    %v934 = vand.u32 %v360, 4294901760
    %v935 = vsub.f32 %v360, %v934
    %936 = vmatpush1.msra.mxu0 %v935
    %937 = vmatprep.subr.mxu0 0.0
    %v938 = vand.u32 %v361, 4294901760
    %v939 = vsub.f32 %v361, %v938
    %940 = vmatpush1.msra.mxu0 %v939
    %v941 = vand.u32 %v466, 4294901760
    %v942 = vsub.f32 %v466, %v941
    %943 = vmatprep.mubr.f32.mxu0 %v942
    %v944 = vand.u32 %v465, 4294901760
    %v945 = vsub.f32 %v465, %v944
    %946 = vmatmul.mubr.f32.gmra.mrb[0].mxu0 %v945
    %v947 = vpop.f32.mrb[0].mxu0
    %v948 = vadd.f32 %v810, %v947
    %v949 = vpop.f32.mrb[0].mxu0
    %950 = vdwg.mxu0
    %951 = vmatprep.subr.mxu0 0.0
    %v952 = vand.u32 %v330, 4294901760
    %953 = vmatpush1.msra.mxu0 %v952
    %954 = vmatprep.subr.mxu0 0.0
    %v955 = vand.u32 %v331, 4294901760
    %956 = vmatpush1.msra.mxu0 %v955
    %957 = vmatprep.subr.mxu0 0.0
    %v958 = vand.u32 %v332, 4294901760
    %959 = vmatpush1.msra.mxu0 %v958
    %960 = vmatprep.subr.mxu0 0.0
    %v961 = vand.u32 %v333, 4294901760
    %962 = vmatpush1.msra.mxu0 %v961
    %963 = vmatprep.subr.mxu0 0.0
    %v964 = vand.u32 %v334, 4294901760
    %965 = vmatpush1.msra.mxu0 %v964
    %966 = vmatprep.subr.mxu0 0.0
    %v967 = vand.u32 %v335, 4294901760
    %968 = vmatpush1.msra.mxu0 %v967
    %969 = vmatprep.subr.mxu0 0.0
    %v970 = vand.u32 %v336, 4294901760
    %971 = vmatpush1.msra.mxu0 %v970
    %972 = vmatprep.subr.mxu0 0.0
    %v973 = vand.u32 %v337, 4294901760
    %974 = vmatpush1.msra.mxu0 %v973
    %975 = vmatprep.subr.mxu0 0.0
    %v976 = vand.u32 %v338, 4294901760
    %977 = vmatpush1.msra.mxu0 %v976
    %978 = vmatprep.subr.mxu0 0.0
    %v979 = vand.u32 %v339, 4294901760
    %980 = vmatpush1.msra.mxu0 %v979
    %981 = vmatprep.subr.mxu0 0.0
    %v982 = vand.u32 %v340, 4294901760
    %983 = vmatpush1.msra.mxu0 %v982
    %984 = vmatprep.subr.mxu0 0.0
    %v985 = vand.u32 %v341, 4294901760
    %986 = vmatpush1.msra.mxu0 %v985
    %987 = vmatprep.subr.mxu0 0.0
    %v988 = vand.u32 %v342, 4294901760
    %989 = vmatpush1.msra.mxu0 %v988
    %990 = vmatprep.subr.mxu0 0.0
    %v991 = vand.u32 %v343, 4294901760
    %992 = vmatpush1.msra.mxu0 %v991
    %993 = vmatprep.subr.mxu0 0.0
    %v994 = vand.u32 %v344, 4294901760
    %995 = vmatpush1.msra.mxu0 %v994
    %996 = vmatprep.subr.mxu0 0.0
    %v997 = vand.u32 %v345, 4294901760
    %998 = vmatpush1.msra.mxu0 %v997
    %999 = vmatprep.subr.mxu0 0.0
    %v1000 = vand.u32 %v346, 4294901760
    %1001 = vmatpush1.msra.mxu0 %v1000
    %1002 = vmatprep.subr.mxu0 0.0
    %v1003 = vand.u32 %v347, 4294901760
    %1004 = vmatpush1.msra.mxu0 %v1003
    %1005 = vmatprep.subr.mxu0 0.0
    %v1006 = vand.u32 %v348, 4294901760
    %1007 = vmatpush1.msra.mxu0 %v1006
    %1008 = vmatprep.subr.mxu0 0.0
    %v1009 = vand.u32 %v349, 4294901760
    %1010 = vmatpush1.msra.mxu0 %v1009
    %1011 = vmatprep.subr.mxu0 0.0
    %v1012 = vand.u32 %v350, 4294901760
    %1013 = vmatpush1.msra.mxu0 %v1012
    %1014 = vmatprep.subr.mxu0 0.0
    %v1015 = vand.u32 %v351, 4294901760
    %1016 = vmatpush1.msra.mxu0 %v1015
    %1017 = vmatprep.subr.mxu0 0.0
    %v1018 = vand.u32 %v352, 4294901760
    %1019 = vmatpush1.msra.mxu0 %v1018
    %1020 = vmatprep.subr.mxu0 0.0
    %v1021 = vand.u32 %v353, 4294901760
    %1022 = vmatpush1.msra.mxu0 %v1021
    %1023 = vmatprep.subr.mxu0 0.0
    %v1024 = vand.u32 %v354, 4294901760
    %1025 = vmatpush1.msra.mxu0 %v1024
    %1026 = vmatprep.subr.mxu0 0.0
    %v1027 = vand.u32 %v355, 4294901760
    %1028 = vmatpush1.msra.mxu0 %v1027
    %1029 = vmatprep.subr.mxu0 0.0
    %v1030 = vand.u32 %v356, 4294901760
    %1031 = vmatpush1.msra.mxu0 %v1030
    %1032 = vmatprep.subr.mxu0 0.0
    %v1033 = vand.u32 %v357, 4294901760
    %1034 = vmatpush1.msra.mxu0 %v1033
    %1035 = vmatprep.subr.mxu0 0.0
    %v1036 = vand.u32 %v358, 4294901760
    %1037 = vmatpush1.msra.mxu0 %v1036
    %1038 = vmatprep.subr.mxu0 0.0
    %v1039 = vand.u32 %v359, 4294901760
    %1040 = vmatpush1.msra.mxu0 %v1039
    %1041 = vmatprep.subr.mxu0 0.0
    %v1042 = vand.u32 %v360, 4294901760
    %1043 = vmatpush1.msra.mxu0 %v1042
    %1044 = vmatprep.subr.mxu0 0.0
    %v1045 = vand.u32 %v361, 4294901760
    %1046 = vmatpush1.msra.mxu0 %v1045
    %v1047 = vand.u32 %v466, 4294901760
    %v1048 = vsub.f32 %v466, %v1047
    %v1049 = vand.u32 %v1048, 4294901760
    %1050 = vmatprep.mubr.f32.mxu0 %v1049
    %v1051 = vand.u32 %v465, 4294901760
    %v1052 = vsub.f32 %v465, %v1051
    %v1053 = vand.u32 %v1052, 4294901760
    %1054 = vmatmul.mubr.f32.gmra.mrb[0].mxu0 %v1053
    %v1055 = vpop.f32.mrb[0].mxu0
    %v1056 = vadd.f32 %v948, %v1055
    %v1057 = vpop.f32.mrb[0].mxu0
    %1058 = vdwg.mxu0
    %1059 = vmatprep.subr.mxu0 0.0
    %v1060 = vand.u32 %v330, 4294901760
    %v1061 = vsub.f32 %v330, %v1060
    %v1062 = vand.u32 %v1061, 4294901760
    %1063 = vmatpush1.msra.mxu0 %v1062
    %1064 = vmatprep.subr.mxu0 0.0
    %v1065 = vand.u32 %v331, 4294901760
    %v1066 = vsub.f32 %v331, %v1065
    %v1067 = vand.u32 %v1066, 4294901760
    %1068 = vmatpush1.msra.mxu0 %v1067
    %1069 = vmatprep.subr.mxu0 0.0
    %v1070 = vand.u32 %v332, 4294901760
    %v1071 = vsub.f32 %v332, %v1070
    %v1072 = vand.u32 %v1071, 4294901760
    %1073 = vmatpush1.msra.mxu0 %v1072
    %1074 = vmatprep.subr.mxu0 0.0
    %v1075 = vand.u32 %v333, 4294901760
    %v1076 = vsub.f32 %v333, %v1075
    %v1077 = vand.u32 %v1076, 4294901760
    %1078 = vmatpush1.msra.mxu0 %v1077
    %1079 = vmatprep.subr.mxu0 0.0
    %v1080 = vand.u32 %v334, 4294901760
    %v1081 = vsub.f32 %v334, %v1080
    %v1082 = vand.u32 %v1081, 4294901760
    %1083 = vmatpush1.msra.mxu0 %v1082
    %1084 = vmatprep.subr.mxu0 0.0
    %v1085 = vand.u32 %v335, 4294901760
    %v1086 = vsub.f32 %v335, %v1085
    %v1087 = vand.u32 %v1086, 4294901760
    %1088 = vmatpush1.msra.mxu0 %v1087
    %1089 = vmatprep.subr.mxu0 0.0
    %v1090 = vand.u32 %v336, 4294901760
    %v1091 = vsub.f32 %v336, %v1090
    %v1092 = vand.u32 %v1091, 4294901760
    %1093 = vmatpush1.msra.mxu0 %v1092
    %1094 = vmatprep.subr.mxu0 0.0
    %v1095 = vand.u32 %v337, 4294901760
    %v1096 = vsub.f32 %v337, %v1095
    %v1097 = vand.u32 %v1096, 4294901760
    %1098 = vmatpush1.msra.mxu0 %v1097
    %1099 = vmatprep.subr.mxu0 0.0
    %v1100 = vand.u32 %v338, 4294901760
    %v1101 = vsub.f32 %v338, %v1100
    %v1102 = vand.u32 %v1101, 4294901760
    %1103 = vmatpush1.msra.mxu0 %v1102
    %1104 = vmatprep.subr.mxu0 0.0
    %v1105 = vand.u32 %v339, 4294901760
    %v1106 = vsub.f32 %v339, %v1105
    %v1107 = vand.u32 %v1106, 4294901760
    %1108 = vmatpush1.msra.mxu0 %v1107
    %1109 = vmatprep.subr.mxu0 0.0
    %v1110 = vand.u32 %v340, 4294901760
    %v1111 = vsub.f32 %v340, %v1110
    %v1112 = vand.u32 %v1111, 4294901760
    %1113 = vmatpush1.msra.mxu0 %v1112
    %1114 = vmatprep.subr.mxu0 0.0
    %v1115 = vand.u32 %v341, 4294901760
    %v1116 = vsub.f32 %v341, %v1115
    %v1117 = vand.u32 %v1116, 4294901760
    %1118 = vmatpush1.msra.mxu0 %v1117
    %1119 = vmatprep.subr.mxu0 0.0
    %v1120 = vand.u32 %v342, 4294901760
    %v1121 = vsub.f32 %v342, %v1120
    %v1122 = vand.u32 %v1121, 4294901760
    %1123 = vmatpush1.msra.mxu0 %v1122
    %1124 = vmatprep.subr.mxu0 0.0
    %v1125 = vand.u32 %v343, 4294901760
    %v1126 = vsub.f32 %v343, %v1125
    %v1127 = vand.u32 %v1126, 4294901760
    %1128 = vmatpush1.msra.mxu0 %v1127
    %1129 = vmatprep.subr.mxu0 0.0
    %v1130 = vand.u32 %v344, 4294901760
    %v1131 = vsub.f32 %v344, %v1130
    %v1132 = vand.u32 %v1131, 4294901760
    %1133 = vmatpush1.msra.mxu0 %v1132
    %1134 = vmatprep.subr.mxu0 0.0
    %v1135 = vand.u32 %v345, 4294901760
    %v1136 = vsub.f32 %v345, %v1135
    %v1137 = vand.u32 %v1136, 4294901760
    %1138 = vmatpush1.msra.mxu0 %v1137
    %1139 = vmatprep.subr.mxu0 0.0
    %v1140 = vand.u32 %v346, 4294901760
    %v1141 = vsub.f32 %v346, %v1140
    %v1142 = vand.u32 %v1141, 4294901760
    %1143 = vmatpush1.msra.mxu0 %v1142
    %1144 = vmatprep.subr.mxu0 0.0
    %v1145 = vand.u32 %v347, 4294901760
    %v1146 = vsub.f32 %v347, %v1145
    %v1147 = vand.u32 %v1146, 4294901760
    %1148 = vmatpush1.msra.mxu0 %v1147
    %1149 = vmatprep.subr.mxu0 0.0
    %v1150 = vand.u32 %v348, 4294901760
    %v1151 = vsub.f32 %v348, %v1150
    %v1152 = vand.u32 %v1151, 4294901760
    %1153 = vmatpush1.msra.mxu0 %v1152
    %1154 = vmatprep.subr.mxu0 0.0
    %v1155 = vand.u32 %v349, 4294901760
    %v1156 = vsub.f32 %v349, %v1155
    %v1157 = vand.u32 %v1156, 4294901760
    %1158 = vmatpush1.msra.mxu0 %v1157
    %1159 = vmatprep.subr.mxu0 0.0
    %v1160 = vand.u32 %v350, 4294901760
    %v1161 = vsub.f32 %v350, %v1160
    %v1162 = vand.u32 %v1161, 4294901760
    %1163 = vmatpush1.msra.mxu0 %v1162
    %1164 = vmatprep.subr.mxu0 0.0
    %v1165 = vand.u32 %v351, 4294901760
    %v1166 = vsub.f32 %v351, %v1165
    %v1167 = vand.u32 %v1166, 4294901760
    %1168 = vmatpush1.msra.mxu0 %v1167
    %1169 = vmatprep.subr.mxu0 0.0
    %v1170 = vand.u32 %v352, 4294901760
    %v1171 = vsub.f32 %v352, %v1170
    %v1172 = vand.u32 %v1171, 4294901760
    %1173 = vmatpush1.msra.mxu0 %v1172
    %1174 = vmatprep.subr.mxu0 0.0
    %v1175 = vand.u32 %v353, 4294901760
    %v1176 = vsub.f32 %v353, %v1175
    %v1177 = vand.u32 %v1176, 4294901760
    %1178 = vmatpush1.msra.mxu0 %v1177
    %1179 = vmatprep.subr.mxu0 0.0
    %v1180 = vand.u32 %v354, 4294901760
    %v1181 = vsub.f32 %v354, %v1180
    %v1182 = vand.u32 %v1181, 4294901760
    %1183 = vmatpush1.msra.mxu0 %v1182
    %1184 = vmatprep.subr.mxu0 0.0
    %v1185 = vand.u32 %v355, 4294901760
    %v1186 = vsub.f32 %v355, %v1185
    %v1187 = vand.u32 %v1186, 4294901760
    %1188 = vmatpush1.msra.mxu0 %v1187
    %1189 = vmatprep.subr.mxu0 0.0
    %v1190 = vand.u32 %v356, 4294901760
    %v1191 = vsub.f32 %v356, %v1190
    %v1192 = vand.u32 %v1191, 4294901760
    %1193 = vmatpush1.msra.mxu0 %v1192
    %1194 = vmatprep.subr.mxu0 0.0
    %v1195 = vand.u32 %v357, 4294901760
    %v1196 = vsub.f32 %v357, %v1195
    %v1197 = vand.u32 %v1196, 4294901760
    %1198 = vmatpush1.msra.mxu0 %v1197
    %1199 = vmatprep.subr.mxu0 0.0
    %v1200 = vand.u32 %v358, 4294901760
    %v1201 = vsub.f32 %v358, %v1200
    %v1202 = vand.u32 %v1201, 4294901760
    %1203 = vmatpush1.msra.mxu0 %v1202
    %1204 = vmatprep.subr.mxu0 0.0
    %v1205 = vand.u32 %v359, 4294901760
    %v1206 = vsub.f32 %v359, %v1205
    %v1207 = vand.u32 %v1206, 4294901760
    %1208 = vmatpush1.msra.mxu0 %v1207
    %1209 = vmatprep.subr.mxu0 0.0
    %v1210 = vand.u32 %v360, 4294901760
    %v1211 = vsub.f32 %v360, %v1210
    %v1212 = vand.u32 %v1211, 4294901760
    %1213 = vmatpush1.msra.mxu0 %v1212
    %1214 = vmatprep.subr.mxu0 0.0
    %v1215 = vand.u32 %v361, 4294901760
    %v1216 = vsub.f32 %v361, %v1215
    %v1217 = vand.u32 %v1216, 4294901760
    %1218 = vmatpush1.msra.mxu0 %v1217
    %v1219 = vand.u32 %v466, 4294901760
    %1220 = vmatprep.mubr.f32.mxu0 %v1219
    %v1221 = vand.u32 %v465, 4294901760
    %1222 = vmatmul.mubr.f32.gmra.mrb[0].mxu0 %v1221
    %v1223 = vpop.f32.mrb[0].mxu0
    %v1224 = vadd.f32 %v1056, %v1223
    %v1225 = vpop.f32.mrb[0].mxu0
    %1226 = vdwg.mxu0
    %1227 = vmatprep.subr.mxu0 0.0
    %v1228 = vand.u32 %v330, 4294901760
    %1229 = vmatpush1.msra.mxu0 %v1228
    %1230 = vmatprep.subr.mxu0 0.0
    %v1231 = vand.u32 %v331, 4294901760
    %1232 = vmatpush1.msra.mxu0 %v1231
    %1233 = vmatprep.subr.mxu0 0.0
    %v1234 = vand.u32 %v332, 4294901760
    %1235 = vmatpush1.msra.mxu0 %v1234
    %1236 = vmatprep.subr.mxu0 0.0
    %v1237 = vand.u32 %v333, 4294901760
    %1238 = vmatpush1.msra.mxu0 %v1237
    %1239 = vmatprep.subr.mxu0 0.0
    %v1240 = vand.u32 %v334, 4294901760
    %1241 = vmatpush1.msra.mxu0 %v1240
    %1242 = vmatprep.subr.mxu0 0.0
    %v1243 = vand.u32 %v335, 4294901760
    %1244 = vmatpush1.msra.mxu0 %v1243
    %1245 = vmatprep.subr.mxu0 0.0
    %v1246 = vand.u32 %v336, 4294901760
    %1247 = vmatpush1.msra.mxu0 %v1246
    %1248 = vmatprep.subr.mxu0 0.0
    %v1249 = vand.u32 %v337, 4294901760
    %1250 = vmatpush1.msra.mxu0 %v1249
    %1251 = vmatprep.subr.mxu0 0.0
    %v1252 = vand.u32 %v338, 4294901760
    %1253 = vmatpush1.msra.mxu0 %v1252
    %1254 = vmatprep.subr.mxu0 0.0
    %v1255 = vand.u32 %v339, 4294901760
    %1256 = vmatpush1.msra.mxu0 %v1255
    %1257 = vmatprep.subr.mxu0 0.0
    %v1258 = vand.u32 %v340, 4294901760
    %1259 = vmatpush1.msra.mxu0 %v1258
    %1260 = vmatprep.subr.mxu0 0.0
    %v1261 = vand.u32 %v341, 4294901760
    %1262 = vmatpush1.msra.mxu0 %v1261
    %1263 = vmatprep.subr.mxu0 0.0
    %v1264 = vand.u32 %v342, 4294901760
    %1265 = vmatpush1.msra.mxu0 %v1264
    %1266 = vmatprep.subr.mxu0 0.0
    %v1267 = vand.u32 %v343, 4294901760
    %1268 = vmatpush1.msra.mxu0 %v1267
    %1269 = vmatprep.subr.mxu0 0.0
    %v1270 = vand.u32 %v344, 4294901760
    %1271 = vmatpush1.msra.mxu0 %v1270
    %1272 = vmatprep.subr.mxu0 0.0
    %v1273 = vand.u32 %v345, 4294901760
    %1274 = vmatpush1.msra.mxu0 %v1273
    %1275 = vmatprep.subr.mxu0 0.0
    %v1276 = vand.u32 %v346, 4294901760
    %1277 = vmatpush1.msra.mxu0 %v1276
    %1278 = vmatprep.subr.mxu0 0.0
    %v1279 = vand.u32 %v347, 4294901760
    %1280 = vmatpush1.msra.mxu0 %v1279
    %1281 = vmatprep.subr.mxu0 0.0
    %v1282 = vand.u32 %v348, 4294901760
    %1283 = vmatpush1.msra.mxu0 %v1282
    %1284 = vmatprep.subr.mxu0 0.0
    %v1285 = vand.u32 %v349, 4294901760
    %1286 = vmatpush1.msra.mxu0 %v1285
    %1287 = vmatprep.subr.mxu0 0.0
    %v1288 = vand.u32 %v350, 4294901760
    %1289 = vmatpush1.msra.mxu0 %v1288
    %1290 = vmatprep.subr.mxu0 0.0
    %v1291 = vand.u32 %v351, 4294901760
    %1292 = vmatpush1.msra.mxu0 %v1291
    %1293 = vmatprep.subr.mxu0 0.0
    %v1294 = vand.u32 %v352, 4294901760
    %1295 = vmatpush1.msra.mxu0 %v1294
    %1296 = vmatprep.subr.mxu0 0.0
    %v1297 = vand.u32 %v353, 4294901760
    %1298 = vmatpush1.msra.mxu0 %v1297
    %1299 = vmatprep.subr.mxu0 0.0
    %v1300 = vand.u32 %v354, 4294901760
    %1301 = vmatpush1.msra.mxu0 %v1300
    %1302 = vmatprep.subr.mxu0 0.0
    %v1303 = vand.u32 %v355, 4294901760
    %1304 = vmatpush1.msra.mxu0 %v1303
    %1305 = vmatprep.subr.mxu0 0.0
    %v1306 = vand.u32 %v356, 4294901760
    %1307 = vmatpush1.msra.mxu0 %v1306
    %1308 = vmatprep.subr.mxu0 0.0
    %v1309 = vand.u32 %v357, 4294901760
    %1310 = vmatpush1.msra.mxu0 %v1309
    %1311 = vmatprep.subr.mxu0 0.0
    %v1312 = vand.u32 %v358, 4294901760
    %1313 = vmatpush1.msra.mxu0 %v1312
    %1314 = vmatprep.subr.mxu0 0.0
    %v1315 = vand.u32 %v359, 4294901760
    %1316 = vmatpush1.msra.mxu0 %v1315
    %1317 = vmatprep.subr.mxu0 0.0
    %v1318 = vand.u32 %v360, 4294901760
    %1319 = vmatpush1.msra.mxu0 %v1318
    %1320 = vmatprep.subr.mxu0 0.0
    %v1321 = vand.u32 %v361, 4294901760
    %1322 = vmatpush1.msra.mxu0 %v1321
    %v1323 = vand.u32 %v466, 4294901760
    %1324 = vmatprep.mubr.f32.mxu0 %v1323
    %v1325 = vand.u32 %v465, 4294901760
    %1326 = vmatmul.mubr.f32.gmra.mrb[0].mxu0 %v1325
    %v1327 = vpop.f32.mrb[0].mxu0
    %v1328 = vadd.f32 %v1224, %v1327
    %v1329 = vpop.f32.mrb[0].mxu0
    %1330 = vdwg.mxu0
    %v1333 = vunpack.c.l.s4 1983009808
    %v1334 = vunpack.c.0.s8 %v1333
    %v1335 = vlaneseq
    %v1336 = vshrl.u32 %v1335, 7
    %v1337 = vsub.s32 %v1334, %v1336
    %v1338 = vrot.slane %v327, %v1337
    %v1339 = vcombine.high %v1338, %v1338
    %1342 = vmatprep.subr.mxu0 0.0
    %v1343 = vand.u32 %v362, 4294901760
    %1344 = vmatpush1.msra.mxu0 %v1343
    %1345 = vmatprep.subr.mxu0 0.0
    %v1346 = vand.u32 %v363, 4294901760
    %1347 = vmatpush1.msra.mxu0 %v1346
    %1348 = vmatprep.subr.mxu0 0.0
    %v1349 = vand.u32 %v364, 4294901760
    %1350 = vmatpush1.msra.mxu0 %v1349
    %1351 = vmatprep.subr.mxu0 0.0
    %v1352 = vand.u32 %v365, 4294901760
    %1353 = vmatpush1.msra.mxu0 %v1352
    %1354 = vmatprep.subr.mxu0 0.0
    %v1355 = vand.u32 %v366, 4294901760
    %1356 = vmatpush1.msra.mxu0 %v1355
    %1357 = vmatprep.subr.mxu0 0.0
    %v1358 = vand.u32 %v367, 4294901760
    %1359 = vmatpush1.msra.mxu0 %v1358
    %1360 = vmatprep.subr.mxu0 0.0
    %v1361 = vand.u32 %v368, 4294901760
    %1362 = vmatpush1.msra.mxu0 %v1361
    %1363 = vmatprep.subr.mxu0 0.0
    %v1364 = vand.u32 %v369, 4294901760
    %1365 = vmatpush1.msra.mxu0 %v1364
    %1366 = vmatprep.subr.mxu0 0.0
    %v1367 = vand.u32 %v370, 4294901760
    %1368 = vmatpush1.msra.mxu0 %v1367
    %1369 = vmatprep.subr.mxu0 0.0
    %v1370 = vand.u32 %v371, 4294901760
    %1371 = vmatpush1.msra.mxu0 %v1370
    %1372 = vmatprep.subr.mxu0 0.0
    %v1373 = vand.u32 %v372, 4294901760
    %1374 = vmatpush1.msra.mxu0 %v1373
    %1375 = vmatprep.subr.mxu0 0.0
    %v1376 = vand.u32 %v373, 4294901760
    %1377 = vmatpush1.msra.mxu0 %v1376
    %1378 = vmatprep.subr.mxu0 0.0
    %v1379 = vand.u32 %v374, 4294901760
    %1380 = vmatpush1.msra.mxu0 %v1379
    %1381 = vmatprep.subr.mxu0 0.0
    %v1382 = vand.u32 %v375, 4294901760
    %1383 = vmatpush1.msra.mxu0 %v1382
    %1384 = vmatprep.subr.mxu0 0.0
    %v1385 = vand.u32 %v376, 4294901760
    %1386 = vmatpush1.msra.mxu0 %v1385
    %1387 = vmatprep.subr.mxu0 0.0
    %v1388 = vand.u32 %v377, 4294901760
    %1389 = vmatpush1.msra.mxu0 %v1388
    %1390 = vmatprep.subr.mxu0 0.0
    %v1391 = vand.u32 %v378, 4294901760
    %1392 = vmatpush1.msra.mxu0 %v1391
    %1393 = vmatprep.subr.mxu0 0.0
    %v1394 = vand.u32 %v379, 4294901760
    %1395 = vmatpush1.msra.mxu0 %v1394
    %1396 = vmatprep.subr.mxu0 0.0
    %v1397 = vand.u32 %v380, 4294901760
    %1398 = vmatpush1.msra.mxu0 %v1397
    %1399 = vmatprep.subr.mxu0 0.0
    %v1400 = vand.u32 %v381, 4294901760
    %1401 = vmatpush1.msra.mxu0 %v1400
    %1402 = vmatprep.subr.mxu0 0.0
    %v1403 = vand.u32 %v382, 4294901760
    %1404 = vmatpush1.msra.mxu0 %v1403
    %1405 = vmatprep.subr.mxu0 0.0
    %v1406 = vand.u32 %v383, 4294901760
    %1407 = vmatpush1.msra.mxu0 %v1406
    %1408 = vmatprep.subr.mxu0 0.0
    %v1409 = vand.u32 %v384, 4294901760
    %1410 = vmatpush1.msra.mxu0 %v1409
    %1411 = vmatprep.subr.mxu0 0.0
    %v1412 = vand.u32 %v385, 4294901760
    %1413 = vmatpush1.msra.mxu0 %v1412
    %1414 = vmatprep.subr.mxu0 0.0
    %v1415 = vand.u32 %v386, 4294901760
    %1416 = vmatpush1.msra.mxu0 %v1415
    %1417 = vmatprep.subr.mxu0 0.0
    %v1418 = vand.u32 %v387, 4294901760
    %1419 = vmatpush1.msra.mxu0 %v1418
    %1420 = vmatprep.subr.mxu0 0.0
    %v1421 = vand.u32 %v388, 4294901760
    %1422 = vmatpush1.msra.mxu0 %v1421
    %1423 = vmatprep.subr.mxu0 0.0
    %v1424 = vand.u32 %v389, 4294901760
    %1425 = vmatpush1.msra.mxu0 %v1424
    %1426 = vmatprep.subr.mxu0 0.0
    %v1427 = vand.u32 %v390, 4294901760
    %1428 = vmatpush1.msra.mxu0 %v1427
    %1429 = vmatprep.subr.mxu0 0.0
    %v1430 = vand.u32 %v391, 4294901760
    %1431 = vmatpush1.msra.mxu0 %v1430
    %1432 = vmatprep.subr.mxu0 0.0
    %v1433 = vand.u32 %v392, 4294901760
    %1434 = vmatpush1.msra.mxu0 %v1433
    %1435 = vmatprep.subr.mxu0 0.0
    %v1436 = vand.u32 %v393, 4294901760
    %1437 = vmatpush1.msra.mxu0 %v1436
    %v1438 = vand.u32 %v1339, 4294901760
    %v1439 = vsub.f32 %v1339, %v1438
    %v1440 = vand.u32 %v1439, 4294901760
    %v1441 = vsub.f32 %v1439, %v1440
    %v1442 = vand.u32 %v1441, 4294901760
    %1443 = vmatprep.mubr.f32.mxu0 %v1442
    %v1444 = vand.u32 %v1338, 4294901760
    %v1445 = vsub.f32 %v1338, %v1444
    %v1446 = vand.u32 %v1445, 4294901760
    %v1447 = vsub.f32 %v1445, %v1446
    %v1448 = vand.u32 %v1447, 4294901760
    %1449 = vmatmul.mubr.f32.gmra.mrb[0].mxu0 %v1448
    %v1450 = vpop.f32.mrb[0].mxu0
    %v1451 = vadd.f32 0.0, %v1450
    %v1452 = vpop.f32.mrb[0].mxu0
    %1453 = vdwg.mxu0
    %1454 = vmatprep.subr.mxu0 0.0
    %v1455 = vand.u32 %v362, 4294901760
    %v1456 = vsub.f32 %v362, %v1455
    %v1457 = vand.u32 %v1456, 4294901760
    %v1458 = vsub.f32 %v1456, %v1457
    %v1459 = vand.u32 %v1458, 4294901760
    %1460 = vmatpush1.msra.mxu0 %v1459
    %1461 = vmatprep.subr.mxu0 0.0
    %v1462 = vand.u32 %v363, 4294901760
    %v1463 = vsub.f32 %v363, %v1462
    %v1464 = vand.u32 %v1463, 4294901760
    %v1465 = vsub.f32 %v1463, %v1464
    %v1466 = vand.u32 %v1465, 4294901760
    %1467 = vmatpush1.msra.mxu0 %v1466
    %1468 = vmatprep.subr.mxu0 0.0
    %v1469 = vand.u32 %v364, 4294901760
    %v1470 = vsub.f32 %v364, %v1469
    %v1471 = vand.u32 %v1470, 4294901760
    %v1472 = vsub.f32 %v1470, %v1471
    %v1473 = vand.u32 %v1472, 4294901760
    %1474 = vmatpush1.msra.mxu0 %v1473
    %1475 = vmatprep.subr.mxu0 0.0
    %v1476 = vand.u32 %v365, 4294901760
    %v1477 = vsub.f32 %v365, %v1476
    %v1478 = vand.u32 %v1477, 4294901760
    %v1479 = vsub.f32 %v1477, %v1478
    %v1480 = vand.u32 %v1479, 4294901760
    %1481 = vmatpush1.msra.mxu0 %v1480
    %1482 = vmatprep.subr.mxu0 0.0
    %v1483 = vand.u32 %v366, 4294901760
    %v1484 = vsub.f32 %v366, %v1483
    %v1485 = vand.u32 %v1484, 4294901760
    %v1486 = vsub.f32 %v1484, %v1485
    %v1487 = vand.u32 %v1486, 4294901760
    %1488 = vmatpush1.msra.mxu0 %v1487
    %1489 = vmatprep.subr.mxu0 0.0
    %v1490 = vand.u32 %v367, 4294901760
    %v1491 = vsub.f32 %v367, %v1490
    %v1492 = vand.u32 %v1491, 4294901760
    %v1493 = vsub.f32 %v1491, %v1492
    %v1494 = vand.u32 %v1493, 4294901760
    %1495 = vmatpush1.msra.mxu0 %v1494
    %1496 = vmatprep.subr.mxu0 0.0
    %v1497 = vand.u32 %v368, 4294901760
    %v1498 = vsub.f32 %v368, %v1497
    %v1499 = vand.u32 %v1498, 4294901760
    %v1500 = vsub.f32 %v1498, %v1499
    %v1501 = vand.u32 %v1500, 4294901760
    %1502 = vmatpush1.msra.mxu0 %v1501
    %1503 = vmatprep.subr.mxu0 0.0
    %v1504 = vand.u32 %v369, 4294901760
    %v1505 = vsub.f32 %v369, %v1504
    %v1506 = vand.u32 %v1505, 4294901760
    %v1507 = vsub.f32 %v1505, %v1506
    %v1508 = vand.u32 %v1507, 4294901760
    %1509 = vmatpush1.msra.mxu0 %v1508
    %1510 = vmatprep.subr.mxu0 0.0
    %v1511 = vand.u32 %v370, 4294901760
    %v1512 = vsub.f32 %v370, %v1511
    %v1513 = vand.u32 %v1512, 4294901760
    %v1514 = vsub.f32 %v1512, %v1513
    %v1515 = vand.u32 %v1514, 4294901760
    %1516 = vmatpush1.msra.mxu0 %v1515
    %1517 = vmatprep.subr.mxu0 0.0
    %v1518 = vand.u32 %v371, 4294901760
    %v1519 = vsub.f32 %v371, %v1518
    %v1520 = vand.u32 %v1519, 4294901760
    %v1521 = vsub.f32 %v1519, %v1520
    %v1522 = vand.u32 %v1521, 4294901760
    %1523 = vmatpush1.msra.mxu0 %v1522
    %1524 = vmatprep.subr.mxu0 0.0
    %v1525 = vand.u32 %v372, 4294901760
    %v1526 = vsub.f32 %v372, %v1525
    %v1527 = vand.u32 %v1526, 4294901760
    %v1528 = vsub.f32 %v1526, %v1527
    %v1529 = vand.u32 %v1528, 4294901760
    %1530 = vmatpush1.msra.mxu0 %v1529
    %1531 = vmatprep.subr.mxu0 0.0
    %v1532 = vand.u32 %v373, 4294901760
    %v1533 = vsub.f32 %v373, %v1532
    %v1534 = vand.u32 %v1533, 4294901760
    %v1535 = vsub.f32 %v1533, %v1534
    %v1536 = vand.u32 %v1535, 4294901760
    %1537 = vmatpush1.msra.mxu0 %v1536
    %1538 = vmatprep.subr.mxu0 0.0
    %v1539 = vand.u32 %v374, 4294901760
    %v1540 = vsub.f32 %v374, %v1539
    %v1541 = vand.u32 %v1540, 4294901760
    %v1542 = vsub.f32 %v1540, %v1541
    %v1543 = vand.u32 %v1542, 4294901760
    %1544 = vmatpush1.msra.mxu0 %v1543
    %1545 = vmatprep.subr.mxu0 0.0
    %v1546 = vand.u32 %v375, 4294901760
    %v1547 = vsub.f32 %v375, %v1546
    %v1548 = vand.u32 %v1547, 4294901760
    %v1549 = vsub.f32 %v1547, %v1548
    %v1550 = vand.u32 %v1549, 4294901760
    %1551 = vmatpush1.msra.mxu0 %v1550
    %1552 = vmatprep.subr.mxu0 0.0
    %v1553 = vand.u32 %v376, 4294901760
    %v1554 = vsub.f32 %v376, %v1553
    %v1555 = vand.u32 %v1554, 4294901760
    %v1556 = vsub.f32 %v1554, %v1555
    %v1557 = vand.u32 %v1556, 4294901760
    %1558 = vmatpush1.msra.mxu0 %v1557
    %1559 = vmatprep.subr.mxu0 0.0
    %v1560 = vand.u32 %v377, 4294901760
    %v1561 = vsub.f32 %v377, %v1560
    %v1562 = vand.u32 %v1561, 4294901760
    %v1563 = vsub.f32 %v1561, %v1562
    %v1564 = vand.u32 %v1563, 4294901760
    %1565 = vmatpush1.msra.mxu0 %v1564
    %1566 = vmatprep.subr.mxu0 0.0
    %v1567 = vand.u32 %v378, 4294901760
    %v1568 = vsub.f32 %v378, %v1567
    %v1569 = vand.u32 %v1568, 4294901760
    %v1570 = vsub.f32 %v1568, %v1569
    %v1571 = vand.u32 %v1570, 4294901760
    %1572 = vmatpush1.msra.mxu0 %v1571
    %1573 = vmatprep.subr.mxu0 0.0
    %v1574 = vand.u32 %v379, 4294901760
    %v1575 = vsub.f32 %v379, %v1574
    %v1576 = vand.u32 %v1575, 4294901760
    %v1577 = vsub.f32 %v1575, %v1576
    %v1578 = vand.u32 %v1577, 4294901760
    %1579 = vmatpush1.msra.mxu0 %v1578
    %1580 = vmatprep.subr.mxu0 0.0
    %v1581 = vand.u32 %v380, 4294901760
    %v1582 = vsub.f32 %v380, %v1581
    %v1583 = vand.u32 %v1582, 4294901760
    %v1584 = vsub.f32 %v1582, %v1583
    %v1585 = vand.u32 %v1584, 4294901760
    %1586 = vmatpush1.msra.mxu0 %v1585
    %1587 = vmatprep.subr.mxu0 0.0
    %v1588 = vand.u32 %v381, 4294901760
    %v1589 = vsub.f32 %v381, %v1588
    %v1590 = vand.u32 %v1589, 4294901760
    %v1591 = vsub.f32 %v1589, %v1590
    %v1592 = vand.u32 %v1591, 4294901760
    %1593 = vmatpush1.msra.mxu0 %v1592
    %1594 = vmatprep.subr.mxu0 0.0
    %v1595 = vand.u32 %v382, 4294901760
    %v1596 = vsub.f32 %v382, %v1595
    %v1597 = vand.u32 %v1596, 4294901760
    %v1598 = vsub.f32 %v1596, %v1597
    %v1599 = vand.u32 %v1598, 4294901760
    %1600 = vmatpush1.msra.mxu0 %v1599
    %1601 = vmatprep.subr.mxu0 0.0
    %v1602 = vand.u32 %v383, 4294901760
    %v1603 = vsub.f32 %v383, %v1602
    %v1604 = vand.u32 %v1603, 4294901760
    %v1605 = vsub.f32 %v1603, %v1604
    %v1606 = vand.u32 %v1605, 4294901760
    %1607 = vmatpush1.msra.mxu0 %v1606
    %1608 = vmatprep.subr.mxu0 0.0
    %v1609 = vand.u32 %v384, 4294901760
    %v1610 = vsub.f32 %v384, %v1609
    %v1611 = vand.u32 %v1610, 4294901760
    %v1612 = vsub.f32 %v1610, %v1611
    %v1613 = vand.u32 %v1612, 4294901760
    %1614 = vmatpush1.msra.mxu0 %v1613
    %1615 = vmatprep.subr.mxu0 0.0
    %v1616 = vand.u32 %v385, 4294901760
    %v1617 = vsub.f32 %v385, %v1616
    %v1618 = vand.u32 %v1617, 4294901760
    %v1619 = vsub.f32 %v1617, %v1618
    %v1620 = vand.u32 %v1619, 4294901760
    %1621 = vmatpush1.msra.mxu0 %v1620
    %1622 = vmatprep.subr.mxu0 0.0
    %v1623 = vand.u32 %v386, 4294901760
    %v1624 = vsub.f32 %v386, %v1623
    %v1625 = vand.u32 %v1624, 4294901760
    %v1626 = vsub.f32 %v1624, %v1625
    %v1627 = vand.u32 %v1626, 4294901760
    %1628 = vmatpush1.msra.mxu0 %v1627
    %1629 = vmatprep.subr.mxu0 0.0
    %v1630 = vand.u32 %v387, 4294901760
    %v1631 = vsub.f32 %v387, %v1630
    %v1632 = vand.u32 %v1631, 4294901760
    %v1633 = vsub.f32 %v1631, %v1632
    %v1634 = vand.u32 %v1633, 4294901760
    %1635 = vmatpush1.msra.mxu0 %v1634
    %1636 = vmatprep.subr.mxu0 0.0
    %v1637 = vand.u32 %v388, 4294901760
    %v1638 = vsub.f32 %v388, %v1637
    %v1639 = vand.u32 %v1638, 4294901760
    %v1640 = vsub.f32 %v1638, %v1639
    %v1641 = vand.u32 %v1640, 4294901760
    %1642 = vmatpush1.msra.mxu0 %v1641
    %1643 = vmatprep.subr.mxu0 0.0
    %v1644 = vand.u32 %v389, 4294901760
    %v1645 = vsub.f32 %v389, %v1644
    %v1646 = vand.u32 %v1645, 4294901760
    %v1647 = vsub.f32 %v1645, %v1646
    %v1648 = vand.u32 %v1647, 4294901760
    %1649 = vmatpush1.msra.mxu0 %v1648
    %1650 = vmatprep.subr.mxu0 0.0
    %v1651 = vand.u32 %v390, 4294901760
    %v1652 = vsub.f32 %v390, %v1651
    %v1653 = vand.u32 %v1652, 4294901760
    %v1654 = vsub.f32 %v1652, %v1653
    %v1655 = vand.u32 %v1654, 4294901760
    %1656 = vmatpush1.msra.mxu0 %v1655
    %1657 = vmatprep.subr.mxu0 0.0
    %v1658 = vand.u32 %v391, 4294901760
    %v1659 = vsub.f32 %v391, %v1658
    %v1660 = vand.u32 %v1659, 4294901760
    %v1661 = vsub.f32 %v1659, %v1660
    %v1662 = vand.u32 %v1661, 4294901760
    %1663 = vmatpush1.msra.mxu0 %v1662
    %1664 = vmatprep.subr.mxu0 0.0
    %v1665 = vand.u32 %v392, 4294901760
    %v1666 = vsub.f32 %v392, %v1665
    %v1667 = vand.u32 %v1666, 4294901760
    %v1668 = vsub.f32 %v1666, %v1667
    %v1669 = vand.u32 %v1668, 4294901760
    %1670 = vmatpush1.msra.mxu0 %v1669
    %1671 = vmatprep.subr.mxu0 0.0
    %v1672 = vand.u32 %v393, 4294901760
    %v1673 = vsub.f32 %v393, %v1672
    %v1674 = vand.u32 %v1673, 4294901760
    %v1675 = vsub.f32 %v1673, %v1674
    %v1676 = vand.u32 %v1675, 4294901760
    %1677 = vmatpush1.msra.mxu0 %v1676
    %v1678 = vand.u32 %v1339, 4294901760
    %1679 = vmatprep.mubr.f32.mxu0 %v1678
    %v1680 = vand.u32 %v1338, 4294901760
    %1681 = vmatmul.mubr.f32.gmra.mrb[0].mxu0 %v1680
    %v1682 = vpop.f32.mrb[0].mxu0
    %v1683 = vadd.f32 %v1451, %v1682
    %v1684 = vpop.f32.mrb[0].mxu0
    %1685 = vdwg.mxu0
    %1686 = vmatprep.subr.mxu0 0.0
    %v1687 = vand.u32 %v362, 4294901760
    %v1688 = vsub.f32 %v362, %v1687
    %1689 = vmatpush1.msra.mxu0 %v1688
    %1690 = vmatprep.subr.mxu0 0.0
    %v1691 = vand.u32 %v363, 4294901760
    %v1692 = vsub.f32 %v363, %v1691
    %1693 = vmatpush1.msra.mxu0 %v1692
    %1694 = vmatprep.subr.mxu0 0.0
    %v1695 = vand.u32 %v364, 4294901760
    %v1696 = vsub.f32 %v364, %v1695
    %1697 = vmatpush1.msra.mxu0 %v1696
    %1698 = vmatprep.subr.mxu0 0.0
    %v1699 = vand.u32 %v365, 4294901760
    %v1700 = vsub.f32 %v365, %v1699
    %1701 = vmatpush1.msra.mxu0 %v1700
    %1702 = vmatprep.subr.mxu0 0.0
    %v1703 = vand.u32 %v366, 4294901760
    %v1704 = vsub.f32 %v366, %v1703
    %1705 = vmatpush1.msra.mxu0 %v1704
    %1706 = vmatprep.subr.mxu0 0.0
    %v1707 = vand.u32 %v367, 4294901760
    %v1708 = vsub.f32 %v367, %v1707
    %1709 = vmatpush1.msra.mxu0 %v1708
    %1710 = vmatprep.subr.mxu0 0.0
    %v1711 = vand.u32 %v368, 4294901760
    %v1712 = vsub.f32 %v368, %v1711
    %1713 = vmatpush1.msra.mxu0 %v1712
    %1714 = vmatprep.subr.mxu0 0.0
    %v1715 = vand.u32 %v369, 4294901760
    %v1716 = vsub.f32 %v369, %v1715
    %1717 = vmatpush1.msra.mxu0 %v1716
    %1718 = vmatprep.subr.mxu0 0.0
    %v1719 = vand.u32 %v370, 4294901760
    %v1720 = vsub.f32 %v370, %v1719
    %1721 = vmatpush1.msra.mxu0 %v1720
    %1722 = vmatprep.subr.mxu0 0.0
    %v1723 = vand.u32 %v371, 4294901760
    %v1724 = vsub.f32 %v371, %v1723
    %1725 = vmatpush1.msra.mxu0 %v1724
    %1726 = vmatprep.subr.mxu0 0.0
    %v1727 = vand.u32 %v372, 4294901760
    %v1728 = vsub.f32 %v372, %v1727
    %1729 = vmatpush1.msra.mxu0 %v1728
    %1730 = vmatprep.subr.mxu0 0.0
    %v1731 = vand.u32 %v373, 4294901760
    %v1732 = vsub.f32 %v373, %v1731
    %1733 = vmatpush1.msra.mxu0 %v1732
    %1734 = vmatprep.subr.mxu0 0.0
    %v1735 = vand.u32 %v374, 4294901760
    %v1736 = vsub.f32 %v374, %v1735
    %1737 = vmatpush1.msra.mxu0 %v1736
    %1738 = vmatprep.subr.mxu0 0.0
    %v1739 = vand.u32 %v375, 4294901760
    %v1740 = vsub.f32 %v375, %v1739
    %1741 = vmatpush1.msra.mxu0 %v1740
    %1742 = vmatprep.subr.mxu0 0.0
    %v1743 = vand.u32 %v376, 4294901760
    %v1744 = vsub.f32 %v376, %v1743
    %1745 = vmatpush1.msra.mxu0 %v1744
    %1746 = vmatprep.subr.mxu0 0.0
    %v1747 = vand.u32 %v377, 4294901760
    %v1748 = vsub.f32 %v377, %v1747
    %1749 = vmatpush1.msra.mxu0 %v1748
    %1750 = vmatprep.subr.mxu0 0.0
    %v1751 = vand.u32 %v378, 4294901760
    %v1752 = vsub.f32 %v378, %v1751
    %1753 = vmatpush1.msra.mxu0 %v1752
    %1754 = vmatprep.subr.mxu0 0.0
    %v1755 = vand.u32 %v379, 4294901760
    %v1756 = vsub.f32 %v379, %v1755
    %1757 = vmatpush1.msra.mxu0 %v1756
    %1758 = vmatprep.subr.mxu0 0.0
    %v1759 = vand.u32 %v380, 4294901760
    %v1760 = vsub.f32 %v380, %v1759
    %1761 = vmatpush1.msra.mxu0 %v1760
    %1762 = vmatprep.subr.mxu0 0.0
    %v1763 = vand.u32 %v381, 4294901760
    %v1764 = vsub.f32 %v381, %v1763
    %1765 = vmatpush1.msra.mxu0 %v1764
    %1766 = vmatprep.subr.mxu0 0.0
    %v1767 = vand.u32 %v382, 4294901760
    %v1768 = vsub.f32 %v382, %v1767
    %1769 = vmatpush1.msra.mxu0 %v1768
    %1770 = vmatprep.subr.mxu0 0.0
    %v1771 = vand.u32 %v383, 4294901760
    %v1772 = vsub.f32 %v383, %v1771
    %1773 = vmatpush1.msra.mxu0 %v1772
    %1774 = vmatprep.subr.mxu0 0.0
    %v1775 = vand.u32 %v384, 4294901760
    %v1776 = vsub.f32 %v384, %v1775
    %1777 = vmatpush1.msra.mxu0 %v1776
    %1778 = vmatprep.subr.mxu0 0.0
    %v1779 = vand.u32 %v385, 4294901760
    %v1780 = vsub.f32 %v385, %v1779
    %1781 = vmatpush1.msra.mxu0 %v1780
    %1782 = vmatprep.subr.mxu0 0.0
    %v1783 = vand.u32 %v386, 4294901760
    %v1784 = vsub.f32 %v386, %v1783
    %1785 = vmatpush1.msra.mxu0 %v1784
    %1786 = vmatprep.subr.mxu0 0.0
    %v1787 = vand.u32 %v387, 4294901760
    %v1788 = vsub.f32 %v387, %v1787
    %1789 = vmatpush1.msra.mxu0 %v1788
    %1790 = vmatprep.subr.mxu0 0.0
    %v1791 = vand.u32 %v388, 4294901760
    %v1792 = vsub.f32 %v388, %v1791
    %1793 = vmatpush1.msra.mxu0 %v1792
    %1794 = vmatprep.subr.mxu0 0.0
    %v1795 = vand.u32 %v389, 4294901760
    %v1796 = vsub.f32 %v389, %v1795
    %1797 = vmatpush1.msra.mxu0 %v1796
    %1798 = vmatprep.subr.mxu0 0.0
    %v1799 = vand.u32 %v390, 4294901760
    %v1800 = vsub.f32 %v390, %v1799
    %1801 = vmatpush1.msra.mxu0 %v1800
    %1802 = vmatprep.subr.mxu0 0.0
    %v1803 = vand.u32 %v391, 4294901760
    %v1804 = vsub.f32 %v391, %v1803
    %1805 = vmatpush1.msra.mxu0 %v1804
    %1806 = vmatprep.subr.mxu0 0.0
    %v1807 = vand.u32 %v392, 4294901760
    %v1808 = vsub.f32 %v392, %v1807
    %1809 = vmatpush1.msra.mxu0 %v1808
    %1810 = vmatprep.subr.mxu0 0.0
    %v1811 = vand.u32 %v393, 4294901760
    %v1812 = vsub.f32 %v393, %v1811
    %1813 = vmatpush1.msra.mxu0 %v1812
    %v1814 = vand.u32 %v1339, 4294901760
    %v1815 = vsub.f32 %v1339, %v1814
    %1816 = vmatprep.mubr.f32.mxu0 %v1815
    %v1817 = vand.u32 %v1338, 4294901760
    %v1818 = vsub.f32 %v1338, %v1817
    %1819 = vmatmul.mubr.f32.gmra.mrb[0].mxu0 %v1818
    %v1820 = vpop.f32.mrb[0].mxu0
    %v1821 = vadd.f32 %v1683, %v1820
    %v1822 = vpop.f32.mrb[0].mxu0
    %1823 = vdwg.mxu0
    %1824 = vmatprep.subr.mxu0 0.0
    %v1825 = vand.u32 %v362, 4294901760
    %1826 = vmatpush1.msra.mxu0 %v1825
    %1827 = vmatprep.subr.mxu0 0.0
    %v1828 = vand.u32 %v363, 4294901760
    %1829 = vmatpush1.msra.mxu0 %v1828
    %1830 = vmatprep.subr.mxu0 0.0
    %v1831 = vand.u32 %v364, 4294901760
    %1832 = vmatpush1.msra.mxu0 %v1831
    %1833 = vmatprep.subr.mxu0 0.0
    %v1834 = vand.u32 %v365, 4294901760
    %1835 = vmatpush1.msra.mxu0 %v1834
    %1836 = vmatprep.subr.mxu0 0.0
    %v1837 = vand.u32 %v366, 4294901760
    %1838 = vmatpush1.msra.mxu0 %v1837
    %1839 = vmatprep.subr.mxu0 0.0
    %v1840 = vand.u32 %v367, 4294901760
    %1841 = vmatpush1.msra.mxu0 %v1840
    %1842 = vmatprep.subr.mxu0 0.0
    %v1843 = vand.u32 %v368, 4294901760
    %1844 = vmatpush1.msra.mxu0 %v1843
    %1845 = vmatprep.subr.mxu0 0.0
    %v1846 = vand.u32 %v369, 4294901760
    %1847 = vmatpush1.msra.mxu0 %v1846
    %1848 = vmatprep.subr.mxu0 0.0
    %v1849 = vand.u32 %v370, 4294901760
    %1850 = vmatpush1.msra.mxu0 %v1849
    %1851 = vmatprep.subr.mxu0 0.0
    %v1852 = vand.u32 %v371, 4294901760
    %1853 = vmatpush1.msra.mxu0 %v1852
    %1854 = vmatprep.subr.mxu0 0.0
    %v1855 = vand.u32 %v372, 4294901760
    %1856 = vmatpush1.msra.mxu0 %v1855
    %1857 = vmatprep.subr.mxu0 0.0
    %v1858 = vand.u32 %v373, 4294901760
    %1859 = vmatpush1.msra.mxu0 %v1858
    %1860 = vmatprep.subr.mxu0 0.0
    %v1861 = vand.u32 %v374, 4294901760
    %1862 = vmatpush1.msra.mxu0 %v1861
    %1863 = vmatprep.subr.mxu0 0.0
    %v1864 = vand.u32 %v375, 4294901760
    %1865 = vmatpush1.msra.mxu0 %v1864
    %1866 = vmatprep.subr.mxu0 0.0
    %v1867 = vand.u32 %v376, 4294901760
    %1868 = vmatpush1.msra.mxu0 %v1867
    %1869 = vmatprep.subr.mxu0 0.0
    %v1870 = vand.u32 %v377, 4294901760
    %1871 = vmatpush1.msra.mxu0 %v1870
    %1872 = vmatprep.subr.mxu0 0.0
    %v1873 = vand.u32 %v378, 4294901760
    %1874 = vmatpush1.msra.mxu0 %v1873
    %1875 = vmatprep.subr.mxu0 0.0
    %v1876 = vand.u32 %v379, 4294901760
    %1877 = vmatpush1.msra.mxu0 %v1876
    %1878 = vmatprep.subr.mxu0 0.0
    %v1879 = vand.u32 %v380, 4294901760
    %1880 = vmatpush1.msra.mxu0 %v1879
    %1881 = vmatprep.subr.mxu0 0.0
    %v1882 = vand.u32 %v381, 4294901760
    %1883 = vmatpush1.msra.mxu0 %v1882
    %1884 = vmatprep.subr.mxu0 0.0
    %v1885 = vand.u32 %v382, 4294901760
    %1886 = vmatpush1.msra.mxu0 %v1885
    %1887 = vmatprep.subr.mxu0 0.0
    %v1888 = vand.u32 %v383, 4294901760
    %1889 = vmatpush1.msra.mxu0 %v1888
    %1890 = vmatprep.subr.mxu0 0.0
    %v1891 = vand.u32 %v384, 4294901760
    %1892 = vmatpush1.msra.mxu0 %v1891
    %1893 = vmatprep.subr.mxu0 0.0
    %v1894 = vand.u32 %v385, 4294901760
    %1895 = vmatpush1.msra.mxu0 %v1894
    %1896 = vmatprep.subr.mxu0 0.0
    %v1897 = vand.u32 %v386, 4294901760
    %1898 = vmatpush1.msra.mxu0 %v1897
    %1899 = vmatprep.subr.mxu0 0.0
    %v1900 = vand.u32 %v387, 4294901760
    %1901 = vmatpush1.msra.mxu0 %v1900
    %1902 = vmatprep.subr.mxu0 0.0
    %v1903 = vand.u32 %v388, 4294901760
    %1904 = vmatpush1.msra.mxu0 %v1903
    %1905 = vmatprep.subr.mxu0 0.0
    %v1906 = vand.u32 %v389, 4294901760
    %1907 = vmatpush1.msra.mxu0 %v1906
    %1908 = vmatprep.subr.mxu0 0.0
    %v1909 = vand.u32 %v390, 4294901760
    %1910 = vmatpush1.msra.mxu0 %v1909
    %1911 = vmatprep.subr.mxu0 0.0
    %v1912 = vand.u32 %v391, 4294901760
    %1913 = vmatpush1.msra.mxu0 %v1912
    %1914 = vmatprep.subr.mxu0 0.0
    %v1915 = vand.u32 %v392, 4294901760
    %1916 = vmatpush1.msra.mxu0 %v1915
    %1917 = vmatprep.subr.mxu0 0.0
    %v1918 = vand.u32 %v393, 4294901760
    %1919 = vmatpush1.msra.mxu0 %v1918
    %v1920 = vand.u32 %v1339, 4294901760
    %v1921 = vsub.f32 %v1339, %v1920
    %v1922 = vand.u32 %v1921, 4294901760
    %1923 = vmatprep.mubr.f32.mxu0 %v1922
    %v1924 = vand.u32 %v1338, 4294901760
    %v1925 = vsub.f32 %v1338, %v1924
    %v1926 = vand.u32 %v1925, 4294901760
    %1927 = vmatmul.mubr.f32.gmra.mrb[0].mxu0 %v1926
    %v1928 = vpop.f32.mrb[0].mxu0
    %v1929 = vadd.f32 %v1821, %v1928
    %v1930 = vpop.f32.mrb[0].mxu0
    %1931 = vdwg.mxu0
    %1932 = vmatprep.subr.mxu0 0.0
    %v1933 = vand.u32 %v362, 4294901760
    %v1934 = vsub.f32 %v362, %v1933
    %v1935 = vand.u32 %v1934, 4294901760
    %1936 = vmatpush1.msra.mxu0 %v1935
    %1937 = vmatprep.subr.mxu0 0.0
    %v1938 = vand.u32 %v363, 4294901760
    %v1939 = vsub.f32 %v363, %v1938
    %v1940 = vand.u32 %v1939, 4294901760
    %1941 = vmatpush1.msra.mxu0 %v1940
    %1942 = vmatprep.subr.mxu0 0.0
    %v1943 = vand.u32 %v364, 4294901760
    %v1944 = vsub.f32 %v364, %v1943
    %v1945 = vand.u32 %v1944, 4294901760
    %1946 = vmatpush1.msra.mxu0 %v1945
    %1947 = vmatprep.subr.mxu0 0.0
    %v1948 = vand.u32 %v365, 4294901760
    %v1949 = vsub.f32 %v365, %v1948
    %v1950 = vand.u32 %v1949, 4294901760
    %1951 = vmatpush1.msra.mxu0 %v1950
    %1952 = vmatprep.subr.mxu0 0.0
    %v1953 = vand.u32 %v366, 4294901760
    %v1954 = vsub.f32 %v366, %v1953
    %v1955 = vand.u32 %v1954, 4294901760
    %1956 = vmatpush1.msra.mxu0 %v1955
    %1957 = vmatprep.subr.mxu0 0.0
    %v1958 = vand.u32 %v367, 4294901760
    %v1959 = vsub.f32 %v367, %v1958
    %v1960 = vand.u32 %v1959, 4294901760
    %1961 = vmatpush1.msra.mxu0 %v1960
    %1962 = vmatprep.subr.mxu0 0.0
    %v1963 = vand.u32 %v368, 4294901760
    %v1964 = vsub.f32 %v368, %v1963
    %v1965 = vand.u32 %v1964, 4294901760
    %1966 = vmatpush1.msra.mxu0 %v1965
    %1967 = vmatprep.subr.mxu0 0.0
    %v1968 = vand.u32 %v369, 4294901760
    %v1969 = vsub.f32 %v369, %v1968
    %v1970 = vand.u32 %v1969, 4294901760
    %1971 = vmatpush1.msra.mxu0 %v1970
    %1972 = vmatprep.subr.mxu0 0.0
    %v1973 = vand.u32 %v370, 4294901760
    %v1974 = vsub.f32 %v370, %v1973
    %v1975 = vand.u32 %v1974, 4294901760
    %1976 = vmatpush1.msra.mxu0 %v1975
    %1977 = vmatprep.subr.mxu0 0.0
    %v1978 = vand.u32 %v371, 4294901760
    %v1979 = vsub.f32 %v371, %v1978
    %v1980 = vand.u32 %v1979, 4294901760
    %1981 = vmatpush1.msra.mxu0 %v1980
    %1982 = vmatprep.subr.mxu0 0.0
    %v1983 = vand.u32 %v372, 4294901760
    %v1984 = vsub.f32 %v372, %v1983
    %v1985 = vand.u32 %v1984, 4294901760
    %1986 = vmatpush1.msra.mxu0 %v1985
    %1987 = vmatprep.subr.mxu0 0.0
    %v1988 = vand.u32 %v373, 4294901760
    %v1989 = vsub.f32 %v373, %v1988
    %v1990 = vand.u32 %v1989, 4294901760
    %1991 = vmatpush1.msra.mxu0 %v1990
    %1992 = vmatprep.subr.mxu0 0.0
    %v1993 = vand.u32 %v374, 4294901760
    %v1994 = vsub.f32 %v374, %v1993
    %v1995 = vand.u32 %v1994, 4294901760
    %1996 = vmatpush1.msra.mxu0 %v1995
    %1997 = vmatprep.subr.mxu0 0.0
    %v1998 = vand.u32 %v375, 4294901760
    %v1999 = vsub.f32 %v375, %v1998
    %v2000 = vand.u32 %v1999, 4294901760
    %2001 = vmatpush1.msra.mxu0 %v2000
    %2002 = vmatprep.subr.mxu0 0.0
    %v2003 = vand.u32 %v376, 4294901760
    %v2004 = vsub.f32 %v376, %v2003
    %v2005 = vand.u32 %v2004, 4294901760
    %2006 = vmatpush1.msra.mxu0 %v2005
    %2007 = vmatprep.subr.mxu0 0.0
    %v2008 = vand.u32 %v377, 4294901760
    %v2009 = vsub.f32 %v377, %v2008
    %v2010 = vand.u32 %v2009, 4294901760
    %2011 = vmatpush1.msra.mxu0 %v2010
    %2012 = vmatprep.subr.mxu0 0.0
    %v2013 = vand.u32 %v378, 4294901760
    %v2014 = vsub.f32 %v378, %v2013
    %v2015 = vand.u32 %v2014, 4294901760
    %2016 = vmatpush1.msra.mxu0 %v2015
    %2017 = vmatprep.subr.mxu0 0.0
    %v2018 = vand.u32 %v379, 4294901760
    %v2019 = vsub.f32 %v379, %v2018
    %v2020 = vand.u32 %v2019, 4294901760
    %2021 = vmatpush1.msra.mxu0 %v2020
    %2022 = vmatprep.subr.mxu0 0.0
    %v2023 = vand.u32 %v380, 4294901760
    %v2024 = vsub.f32 %v380, %v2023
    %v2025 = vand.u32 %v2024, 4294901760
    %2026 = vmatpush1.msra.mxu0 %v2025
    %2027 = vmatprep.subr.mxu0 0.0
    %v2028 = vand.u32 %v381, 4294901760
    %v2029 = vsub.f32 %v381, %v2028
    %v2030 = vand.u32 %v2029, 4294901760
    %2031 = vmatpush1.msra.mxu0 %v2030
    %2032 = vmatprep.subr.mxu0 0.0
    %v2033 = vand.u32 %v382, 4294901760
    %v2034 = vsub.f32 %v382, %v2033
    %v2035 = vand.u32 %v2034, 4294901760
    %2036 = vmatpush1.msra.mxu0 %v2035
    %2037 = vmatprep.subr.mxu0 0.0
    %v2038 = vand.u32 %v383, 4294901760
    %v2039 = vsub.f32 %v383, %v2038
    %v2040 = vand.u32 %v2039, 4294901760
    %2041 = vmatpush1.msra.mxu0 %v2040
    %2042 = vmatprep.subr.mxu0 0.0
    %v2043 = vand.u32 %v384, 4294901760
    %v2044 = vsub.f32 %v384, %v2043
    %v2045 = vand.u32 %v2044, 4294901760
    %2046 = vmatpush1.msra.mxu0 %v2045
    %2047 = vmatprep.subr.mxu0 0.0
    %v2048 = vand.u32 %v385, 4294901760
    %v2049 = vsub.f32 %v385, %v2048
    %v2050 = vand.u32 %v2049, 4294901760
    %2051 = vmatpush1.msra.mxu0 %v2050
    %2052 = vmatprep.subr.mxu0 0.0
    %v2053 = vand.u32 %v386, 4294901760
    %v2054 = vsub.f32 %v386, %v2053
    %v2055 = vand.u32 %v2054, 4294901760
    %2056 = vmatpush1.msra.mxu0 %v2055
    %2057 = vmatprep.subr.mxu0 0.0
    %v2058 = vand.u32 %v387, 4294901760
    %v2059 = vsub.f32 %v387, %v2058
    %v2060 = vand.u32 %v2059, 4294901760
    %2061 = vmatpush1.msra.mxu0 %v2060
    %2062 = vmatprep.subr.mxu0 0.0
    %v2063 = vand.u32 %v388, 4294901760
    %v2064 = vsub.f32 %v388, %v2063
    %v2065 = vand.u32 %v2064, 4294901760
    %2066 = vmatpush1.msra.mxu0 %v2065
    %2067 = vmatprep.subr.mxu0 0.0
    %v2068 = vand.u32 %v389, 4294901760
    %v2069 = vsub.f32 %v389, %v2068
    %v2070 = vand.u32 %v2069, 4294901760
    %2071 = vmatpush1.msra.mxu0 %v2070
    %2072 = vmatprep.subr.mxu0 0.0
    %v2073 = vand.u32 %v390, 4294901760
    %v2074 = vsub.f32 %v390, %v2073
    %v2075 = vand.u32 %v2074, 4294901760
    %2076 = vmatpush1.msra.mxu0 %v2075
    %2077 = vmatprep.subr.mxu0 0.0
    %v2078 = vand.u32 %v391, 4294901760
    %v2079 = vsub.f32 %v391, %v2078
    %v2080 = vand.u32 %v2079, 4294901760
    %2081 = vmatpush1.msra.mxu0 %v2080
    %2082 = vmatprep.subr.mxu0 0.0
    %v2083 = vand.u32 %v392, 4294901760
    %v2084 = vsub.f32 %v392, %v2083
    %v2085 = vand.u32 %v2084, 4294901760
    %2086 = vmatpush1.msra.mxu0 %v2085
    %2087 = vmatprep.subr.mxu0 0.0
    %v2088 = vand.u32 %v393, 4294901760
    %v2089 = vsub.f32 %v393, %v2088
    %v2090 = vand.u32 %v2089, 4294901760
    %2091 = vmatpush1.msra.mxu0 %v2090
    %v2092 = vand.u32 %v1339, 4294901760
    %2093 = vmatprep.mubr.f32.mxu0 %v2092
    %v2094 = vand.u32 %v1338, 4294901760
    %2095 = vmatmul.mubr.f32.gmra.mrb[0].mxu0 %v2094
    %v2096 = vpop.f32.mrb[0].mxu0
    %v2097 = vadd.f32 %v1929, %v2096
    %v2098 = vpop.f32.mrb[0].mxu0
    %2099 = vdwg.mxu0
    %2100 = vmatprep.subr.mxu0 0.0
    %v2101 = vand.u32 %v362, 4294901760
    %2102 = vmatpush1.msra.mxu0 %v2101
    %2103 = vmatprep.subr.mxu0 0.0
    %v2104 = vand.u32 %v363, 4294901760
    %2105 = vmatpush1.msra.mxu0 %v2104
    %2106 = vmatprep.subr.mxu0 0.0
    %v2107 = vand.u32 %v364, 4294901760
    %2108 = vmatpush1.msra.mxu0 %v2107
    %2109 = vmatprep.subr.mxu0 0.0
    %v2110 = vand.u32 %v365, 4294901760
    %2111 = vmatpush1.msra.mxu0 %v2110
    %2112 = vmatprep.subr.mxu0 0.0
    %v2113 = vand.u32 %v366, 4294901760
    %2114 = vmatpush1.msra.mxu0 %v2113
    %2115 = vmatprep.subr.mxu0 0.0
    %v2116 = vand.u32 %v367, 4294901760
    %2117 = vmatpush1.msra.mxu0 %v2116
    %2118 = vmatprep.subr.mxu0 0.0
    %v2119 = vand.u32 %v368, 4294901760
    %2120 = vmatpush1.msra.mxu0 %v2119
    %2121 = vmatprep.subr.mxu0 0.0
    %v2122 = vand.u32 %v369, 4294901760
    %2123 = vmatpush1.msra.mxu0 %v2122
    %2124 = vmatprep.subr.mxu0 0.0
    %v2125 = vand.u32 %v370, 4294901760
    %2126 = vmatpush1.msra.mxu0 %v2125
    %2127 = vmatprep.subr.mxu0 0.0
    %v2128 = vand.u32 %v371, 4294901760
    %2129 = vmatpush1.msra.mxu0 %v2128
    %2130 = vmatprep.subr.mxu0 0.0
    %v2131 = vand.u32 %v372, 4294901760
    %2132 = vmatpush1.msra.mxu0 %v2131
    %2133 = vmatprep.subr.mxu0 0.0
    %v2134 = vand.u32 %v373, 4294901760
    %2135 = vmatpush1.msra.mxu0 %v2134
    %2136 = vmatprep.subr.mxu0 0.0
    %v2137 = vand.u32 %v374, 4294901760
    %2138 = vmatpush1.msra.mxu0 %v2137
    %2139 = vmatprep.subr.mxu0 0.0
    %v2140 = vand.u32 %v375, 4294901760
    %2141 = vmatpush1.msra.mxu0 %v2140
    %2142 = vmatprep.subr.mxu0 0.0
    %v2143 = vand.u32 %v376, 4294901760
    %2144 = vmatpush1.msra.mxu0 %v2143
    %2145 = vmatprep.subr.mxu0 0.0
    %v2146 = vand.u32 %v377, 4294901760
    %2147 = vmatpush1.msra.mxu0 %v2146
    %2148 = vmatprep.subr.mxu0 0.0
    %v2149 = vand.u32 %v378, 4294901760
    %2150 = vmatpush1.msra.mxu0 %v2149
    %2151 = vmatprep.subr.mxu0 0.0
    %v2152 = vand.u32 %v379, 4294901760
    %2153 = vmatpush1.msra.mxu0 %v2152
    %2154 = vmatprep.subr.mxu0 0.0
    %v2155 = vand.u32 %v380, 4294901760
    %2156 = vmatpush1.msra.mxu0 %v2155
    %2157 = vmatprep.subr.mxu0 0.0
    %v2158 = vand.u32 %v381, 4294901760
    %2159 = vmatpush1.msra.mxu0 %v2158
    %2160 = vmatprep.subr.mxu0 0.0
    %v2161 = vand.u32 %v382, 4294901760
    %2162 = vmatpush1.msra.mxu0 %v2161
    %2163 = vmatprep.subr.mxu0 0.0
    %v2164 = vand.u32 %v383, 4294901760
    %2165 = vmatpush1.msra.mxu0 %v2164
    %2166 = vmatprep.subr.mxu0 0.0
    %v2167 = vand.u32 %v384, 4294901760
    %2168 = vmatpush1.msra.mxu0 %v2167
    %2169 = vmatprep.subr.mxu0 0.0
    %v2170 = vand.u32 %v385, 4294901760
    %2171 = vmatpush1.msra.mxu0 %v2170
    %2172 = vmatprep.subr.mxu0 0.0
    %v2173 = vand.u32 %v386, 4294901760
    %2174 = vmatpush1.msra.mxu0 %v2173
    %2175 = vmatprep.subr.mxu0 0.0
    %v2176 = vand.u32 %v387, 4294901760
    %2177 = vmatpush1.msra.mxu0 %v2176
    %2178 = vmatprep.subr.mxu0 0.0
    %v2179 = vand.u32 %v388, 4294901760
    %2180 = vmatpush1.msra.mxu0 %v2179
    %2181 = vmatprep.subr.mxu0 0.0
    %v2182 = vand.u32 %v389, 4294901760
    %2183 = vmatpush1.msra.mxu0 %v2182
    %2184 = vmatprep.subr.mxu0 0.0
    %v2185 = vand.u32 %v390, 4294901760
    %2186 = vmatpush1.msra.mxu0 %v2185
    %2187 = vmatprep.subr.mxu0 0.0
    %v2188 = vand.u32 %v391, 4294901760
    %2189 = vmatpush1.msra.mxu0 %v2188
    %2190 = vmatprep.subr.mxu0 0.0
    %v2191 = vand.u32 %v392, 4294901760
    %2192 = vmatpush1.msra.mxu0 %v2191
    %2193 = vmatprep.subr.mxu0 0.0
    %v2194 = vand.u32 %v393, 4294901760
    %2195 = vmatpush1.msra.mxu0 %v2194
    %v2196 = vand.u32 %v1339, 4294901760
    %2197 = vmatprep.mubr.f32.mxu0 %v2196
    %v2198 = vand.u32 %v1338, 4294901760
    %2199 = vmatmul.mubr.f32.gmra.mrb[0].mxu0 %v2198
    %v2200 = vpop.f32.mrb[0].mxu0
    %v2201 = vadd.f32 %v2097, %v2200
    %v2202 = vpop.f32.mrb[0].mxu0
    %2203 = vdwg.mxu0
    %v2206 = vunpack.c.l.s4 1983009808
    %v2207 = vunpack.c.0.s8 %v2206
    %v2208 = vlaneseq
    %v2209 = vshrl.u32 %v2208, 7
    %v2210 = vsub.s32 %v2207, %v2209
    %v2211 = vrot.slane %v328, %v2210
    %v2212 = vcombine.high %v2211, %v2211
    %2215 = vmatprep.subr.mxu0 0.0
    %v2216 = vand.u32 %v394, 4294901760
    %2217 = vmatpush1.msra.mxu0 %v2216
    %2218 = vmatprep.subr.mxu0 0.0
    %v2219 = vand.u32 %v395, 4294901760
    %2220 = vmatpush1.msra.mxu0 %v2219
    %2221 = vmatprep.subr.mxu0 0.0
    %v2222 = vand.u32 %v396, 4294901760
    %2223 = vmatpush1.msra.mxu0 %v2222
    %2224 = vmatprep.subr.mxu0 0.0
    %v2225 = vand.u32 %v397, 4294901760
    %2226 = vmatpush1.msra.mxu0 %v2225
    %2227 = vmatprep.subr.mxu0 0.0
    %v2228 = vand.u32 %v398, 4294901760
    %2229 = vmatpush1.msra.mxu0 %v2228
    %2230 = vmatprep.subr.mxu0 0.0
    %v2231 = vand.u32 %v399, 4294901760
    %2232 = vmatpush1.msra.mxu0 %v2231
    %2233 = vmatprep.subr.mxu0 0.0
    %v2234 = vand.u32 %v400, 4294901760
    %2235 = vmatpush1.msra.mxu0 %v2234
    %2236 = vmatprep.subr.mxu0 0.0
    %v2237 = vand.u32 %v401, 4294901760
    %2238 = vmatpush1.msra.mxu0 %v2237
    %2239 = vmatprep.subr.mxu0 0.0
    %v2240 = vand.u32 %v402, 4294901760
    %2241 = vmatpush1.msra.mxu0 %v2240
    %2242 = vmatprep.subr.mxu0 0.0
    %v2243 = vand.u32 %v403, 4294901760
    %2244 = vmatpush1.msra.mxu0 %v2243
    %2245 = vmatprep.subr.mxu0 0.0
    %v2246 = vand.u32 %v404, 4294901760
    %2247 = vmatpush1.msra.mxu0 %v2246
    %2248 = vmatprep.subr.mxu0 0.0
    %v2249 = vand.u32 %v405, 4294901760
    %2250 = vmatpush1.msra.mxu0 %v2249
    %2251 = vmatprep.subr.mxu0 0.0
    %v2252 = vand.u32 %v406, 4294901760
    %2253 = vmatpush1.msra.mxu0 %v2252
    %2254 = vmatprep.subr.mxu0 0.0
    %v2255 = vand.u32 %v407, 4294901760
    %2256 = vmatpush1.msra.mxu0 %v2255
    %2257 = vmatprep.subr.mxu0 0.0
    %v2258 = vand.u32 %v408, 4294901760
    %2259 = vmatpush1.msra.mxu0 %v2258
    %2260 = vmatprep.subr.mxu0 0.0
    %v2261 = vand.u32 %v409, 4294901760
    %2262 = vmatpush1.msra.mxu0 %v2261
    %2263 = vmatprep.subr.mxu0 0.0
    %v2264 = vand.u32 %v410, 4294901760
    %2265 = vmatpush1.msra.mxu0 %v2264
    %2266 = vmatprep.subr.mxu0 0.0
    %v2267 = vand.u32 %v411, 4294901760
    %2268 = vmatpush1.msra.mxu0 %v2267
    %2269 = vmatprep.subr.mxu0 0.0
    %v2270 = vand.u32 %v412, 4294901760
    %2271 = vmatpush1.msra.mxu0 %v2270
    %2272 = vmatprep.subr.mxu0 0.0
    %v2273 = vand.u32 %v413, 4294901760
    %2274 = vmatpush1.msra.mxu0 %v2273
    %2275 = vmatprep.subr.mxu0 0.0
    %v2276 = vand.u32 %v414, 4294901760
    %2277 = vmatpush1.msra.mxu0 %v2276
    %2278 = vmatprep.subr.mxu0 0.0
    %v2279 = vand.u32 %v415, 4294901760
    %2280 = vmatpush1.msra.mxu0 %v2279
    %2281 = vmatprep.subr.mxu0 0.0
    %v2282 = vand.u32 %v416, 4294901760
    %2283 = vmatpush1.msra.mxu0 %v2282
    %2284 = vmatprep.subr.mxu0 0.0
    %v2285 = vand.u32 %v417, 4294901760
    %2286 = vmatpush1.msra.mxu0 %v2285
    %2287 = vmatprep.subr.mxu0 0.0
    %v2288 = vand.u32 %v418, 4294901760
    %2289 = vmatpush1.msra.mxu0 %v2288
    %2290 = vmatprep.subr.mxu0 0.0
    %v2291 = vand.u32 %v419, 4294901760
    %2292 = vmatpush1.msra.mxu0 %v2291
    %2293 = vmatprep.subr.mxu0 0.0
    %v2294 = vand.u32 %v420, 4294901760
    %2295 = vmatpush1.msra.mxu0 %v2294
    %2296 = vmatprep.subr.mxu0 0.0
    %v2297 = vand.u32 %v421, 4294901760
    %2298 = vmatpush1.msra.mxu0 %v2297
    %2299 = vmatprep.subr.mxu0 0.0
    %v2300 = vand.u32 %v422, 4294901760
    %2301 = vmatpush1.msra.mxu0 %v2300
    %2302 = vmatprep.subr.mxu0 0.0
    %v2303 = vand.u32 %v423, 4294901760
    %2304 = vmatpush1.msra.mxu0 %v2303
    %2305 = vmatprep.subr.mxu0 0.0
    %v2306 = vand.u32 %v424, 4294901760
    %2307 = vmatpush1.msra.mxu0 %v2306
    %2308 = vmatprep.subr.mxu0 0.0
    %v2309 = vand.u32 %v425, 4294901760
    %2310 = vmatpush1.msra.mxu0 %v2309
    %v2311 = vand.u32 %v2212, 4294901760
    %v2312 = vsub.f32 %v2212, %v2311
    %v2313 = vand.u32 %v2312, 4294901760
    %v2314 = vsub.f32 %v2312, %v2313
    %v2315 = vand.u32 %v2314, 4294901760
    %2316 = vmatprep.mubr.f32.mxu0 %v2315
    %v2317 = vand.u32 %v2211, 4294901760
    %v2318 = vsub.f32 %v2211, %v2317
    %v2319 = vand.u32 %v2318, 4294901760
    %v2320 = vsub.f32 %v2318, %v2319
    %v2321 = vand.u32 %v2320, 4294901760
    %2322 = vmatmul.mubr.f32.gmra.mrb[0].mxu0 %v2321
    %v2323 = vpop.f32.mrb[0].mxu0
    %v2324 = vadd.f32 0.0, %v2323
    %v2325 = vpop.f32.mrb[0].mxu0
    %2326 = vdwg.mxu0
    %2327 = vmatprep.subr.mxu0 0.0
    %v2328 = vand.u32 %v394, 4294901760
    %v2329 = vsub.f32 %v394, %v2328
    %v2330 = vand.u32 %v2329, 4294901760
    %v2331 = vsub.f32 %v2329, %v2330
    %v2332 = vand.u32 %v2331, 4294901760
    %2333 = vmatpush1.msra.mxu0 %v2332
    %2334 = vmatprep.subr.mxu0 0.0
    %v2335 = vand.u32 %v395, 4294901760
    %v2336 = vsub.f32 %v395, %v2335
    %v2337 = vand.u32 %v2336, 4294901760
    %v2338 = vsub.f32 %v2336, %v2337
    %v2339 = vand.u32 %v2338, 4294901760
    %2340 = vmatpush1.msra.mxu0 %v2339
    %2341 = vmatprep.subr.mxu0 0.0
    %v2342 = vand.u32 %v396, 4294901760
    %v2343 = vsub.f32 %v396, %v2342
    %v2344 = vand.u32 %v2343, 4294901760
    %v2345 = vsub.f32 %v2343, %v2344
    %v2346 = vand.u32 %v2345, 4294901760
    %2347 = vmatpush1.msra.mxu0 %v2346
    %2348 = vmatprep.subr.mxu0 0.0
    %v2349 = vand.u32 %v397, 4294901760
    %v2350 = vsub.f32 %v397, %v2349
    %v2351 = vand.u32 %v2350, 4294901760
    %v2352 = vsub.f32 %v2350, %v2351
    %v2353 = vand.u32 %v2352, 4294901760
    %2354 = vmatpush1.msra.mxu0 %v2353
    %2355 = vmatprep.subr.mxu0 0.0
    %v2356 = vand.u32 %v398, 4294901760
    %v2357 = vsub.f32 %v398, %v2356
    %v2358 = vand.u32 %v2357, 4294901760
    %v2359 = vsub.f32 %v2357, %v2358
    %v2360 = vand.u32 %v2359, 4294901760
    %2361 = vmatpush1.msra.mxu0 %v2360
    %2362 = vmatprep.subr.mxu0 0.0
    %v2363 = vand.u32 %v399, 4294901760
    %v2364 = vsub.f32 %v399, %v2363
    %v2365 = vand.u32 %v2364, 4294901760
    %v2366 = vsub.f32 %v2364, %v2365
    %v2367 = vand.u32 %v2366, 4294901760
    %2368 = vmatpush1.msra.mxu0 %v2367
    %2369 = vmatprep.subr.mxu0 0.0
    %v2370 = vand.u32 %v400, 4294901760
    %v2371 = vsub.f32 %v400, %v2370
    %v2372 = vand.u32 %v2371, 4294901760
    %v2373 = vsub.f32 %v2371, %v2372
    %v2374 = vand.u32 %v2373, 4294901760
    %2375 = vmatpush1.msra.mxu0 %v2374
    %2376 = vmatprep.subr.mxu0 0.0
    %v2377 = vand.u32 %v401, 4294901760
    %v2378 = vsub.f32 %v401, %v2377
    %v2379 = vand.u32 %v2378, 4294901760
    %v2380 = vsub.f32 %v2378, %v2379
    %v2381 = vand.u32 %v2380, 4294901760
    %2382 = vmatpush1.msra.mxu0 %v2381
    %2383 = vmatprep.subr.mxu0 0.0
    %v2384 = vand.u32 %v402, 4294901760
    %v2385 = vsub.f32 %v402, %v2384
    %v2386 = vand.u32 %v2385, 4294901760
    %v2387 = vsub.f32 %v2385, %v2386
    %v2388 = vand.u32 %v2387, 4294901760
    %2389 = vmatpush1.msra.mxu0 %v2388
    %2390 = vmatprep.subr.mxu0 0.0
    %v2391 = vand.u32 %v403, 4294901760
    %v2392 = vsub.f32 %v403, %v2391
    %v2393 = vand.u32 %v2392, 4294901760
    %v2394 = vsub.f32 %v2392, %v2393
    %v2395 = vand.u32 %v2394, 4294901760
    %2396 = vmatpush1.msra.mxu0 %v2395
    %2397 = vmatprep.subr.mxu0 0.0
    %v2398 = vand.u32 %v404, 4294901760
    %v2399 = vsub.f32 %v404, %v2398
    %v2400 = vand.u32 %v2399, 4294901760
    %v2401 = vsub.f32 %v2399, %v2400
    %v2402 = vand.u32 %v2401, 4294901760
    %2403 = vmatpush1.msra.mxu0 %v2402
    %2404 = vmatprep.subr.mxu0 0.0
    %v2405 = vand.u32 %v405, 4294901760
    %v2406 = vsub.f32 %v405, %v2405
    %v2407 = vand.u32 %v2406, 4294901760
    %v2408 = vsub.f32 %v2406, %v2407
    %v2409 = vand.u32 %v2408, 4294901760
    %2410 = vmatpush1.msra.mxu0 %v2409
    %2411 = vmatprep.subr.mxu0 0.0
    %v2412 = vand.u32 %v406, 4294901760
    %v2413 = vsub.f32 %v406, %v2412
    %v2414 = vand.u32 %v2413, 4294901760
    %v2415 = vsub.f32 %v2413, %v2414
    %v2416 = vand.u32 %v2415, 4294901760
    %2417 = vmatpush1.msra.mxu0 %v2416
    %2418 = vmatprep.subr.mxu0 0.0
    %v2419 = vand.u32 %v407, 4294901760
    %v2420 = vsub.f32 %v407, %v2419
    %v2421 = vand.u32 %v2420, 4294901760
    %v2422 = vsub.f32 %v2420, %v2421
    %v2423 = vand.u32 %v2422, 4294901760
    %2424 = vmatpush1.msra.mxu0 %v2423
    %2425 = vmatprep.subr.mxu0 0.0
    %v2426 = vand.u32 %v408, 4294901760
    %v2427 = vsub.f32 %v408, %v2426
    %v2428 = vand.u32 %v2427, 4294901760
    %v2429 = vsub.f32 %v2427, %v2428
    %v2430 = vand.u32 %v2429, 4294901760
    %2431 = vmatpush1.msra.mxu0 %v2430
    %2432 = vmatprep.subr.mxu0 0.0
    %v2433 = vand.u32 %v409, 4294901760
    %v2434 = vsub.f32 %v409, %v2433
    %v2435 = vand.u32 %v2434, 4294901760
    %v2436 = vsub.f32 %v2434, %v2435
    %v2437 = vand.u32 %v2436, 4294901760
    %2438 = vmatpush1.msra.mxu0 %v2437
    %2439 = vmatprep.subr.mxu0 0.0
    %v2440 = vand.u32 %v410, 4294901760
    %v2441 = vsub.f32 %v410, %v2440
    %v2442 = vand.u32 %v2441, 4294901760
    %v2443 = vsub.f32 %v2441, %v2442
    %v2444 = vand.u32 %v2443, 4294901760
    %2445 = vmatpush1.msra.mxu0 %v2444
    %2446 = vmatprep.subr.mxu0 0.0
    %v2447 = vand.u32 %v411, 4294901760
    %v2448 = vsub.f32 %v411, %v2447
    %v2449 = vand.u32 %v2448, 4294901760
    %v2450 = vsub.f32 %v2448, %v2449
    %v2451 = vand.u32 %v2450, 4294901760
    %2452 = vmatpush1.msra.mxu0 %v2451
    %2453 = vmatprep.subr.mxu0 0.0
    %v2454 = vand.u32 %v412, 4294901760
    %v2455 = vsub.f32 %v412, %v2454
    %v2456 = vand.u32 %v2455, 4294901760
    %v2457 = vsub.f32 %v2455, %v2456
    %v2458 = vand.u32 %v2457, 4294901760
    %2459 = vmatpush1.msra.mxu0 %v2458
    %2460 = vmatprep.subr.mxu0 0.0
    %v2461 = vand.u32 %v413, 4294901760
    %v2462 = vsub.f32 %v413, %v2461
    %v2463 = vand.u32 %v2462, 4294901760
    %v2464 = vsub.f32 %v2462, %v2463
    %v2465 = vand.u32 %v2464, 4294901760
    %2466 = vmatpush1.msra.mxu0 %v2465
    %2467 = vmatprep.subr.mxu0 0.0
    %v2468 = vand.u32 %v414, 4294901760
    %v2469 = vsub.f32 %v414, %v2468
    %v2470 = vand.u32 %v2469, 4294901760
    %v2471 = vsub.f32 %v2469, %v2470
    %v2472 = vand.u32 %v2471, 4294901760
    %2473 = vmatpush1.msra.mxu0 %v2472
    %2474 = vmatprep.subr.mxu0 0.0
    %v2475 = vand.u32 %v415, 4294901760
    %v2476 = vsub.f32 %v415, %v2475
    %v2477 = vand.u32 %v2476, 4294901760
    %v2478 = vsub.f32 %v2476, %v2477
    %v2479 = vand.u32 %v2478, 4294901760
    %2480 = vmatpush1.msra.mxu0 %v2479
    %2481 = vmatprep.subr.mxu0 0.0
    %v2482 = vand.u32 %v416, 4294901760
    %v2483 = vsub.f32 %v416, %v2482
    %v2484 = vand.u32 %v2483, 4294901760
    %v2485 = vsub.f32 %v2483, %v2484
    %v2486 = vand.u32 %v2485, 4294901760
    %2487 = vmatpush1.msra.mxu0 %v2486
    %2488 = vmatprep.subr.mxu0 0.0
    %v2489 = vand.u32 %v417, 4294901760
    %v2490 = vsub.f32 %v417, %v2489
    %v2491 = vand.u32 %v2490, 4294901760
    %v2492 = vsub.f32 %v2490, %v2491
    %v2493 = vand.u32 %v2492, 4294901760
    %2494 = vmatpush1.msra.mxu0 %v2493
    %2495 = vmatprep.subr.mxu0 0.0
    %v2496 = vand.u32 %v418, 4294901760
    %v2497 = vsub.f32 %v418, %v2496
    %v2498 = vand.u32 %v2497, 4294901760
    %v2499 = vsub.f32 %v2497, %v2498
    %v2500 = vand.u32 %v2499, 4294901760
    %2501 = vmatpush1.msra.mxu0 %v2500
    %2502 = vmatprep.subr.mxu0 0.0
    %v2503 = vand.u32 %v419, 4294901760
    %v2504 = vsub.f32 %v419, %v2503
    %v2505 = vand.u32 %v2504, 4294901760
    %v2506 = vsub.f32 %v2504, %v2505
    %v2507 = vand.u32 %v2506, 4294901760
    %2508 = vmatpush1.msra.mxu0 %v2507
    %2509 = vmatprep.subr.mxu0 0.0
    %v2510 = vand.u32 %v420, 4294901760
    %v2511 = vsub.f32 %v420, %v2510
    %v2512 = vand.u32 %v2511, 4294901760
    %v2513 = vsub.f32 %v2511, %v2512
    %v2514 = vand.u32 %v2513, 4294901760
    %2515 = vmatpush1.msra.mxu0 %v2514
    %2516 = vmatprep.subr.mxu0 0.0
    %v2517 = vand.u32 %v421, 4294901760
    %v2518 = vsub.f32 %v421, %v2517
    %v2519 = vand.u32 %v2518, 4294901760
    %v2520 = vsub.f32 %v2518, %v2519
    %v2521 = vand.u32 %v2520, 4294901760
    %2522 = vmatpush1.msra.mxu0 %v2521
    %2523 = vmatprep.subr.mxu0 0.0
    %v2524 = vand.u32 %v422, 4294901760
    %v2525 = vsub.f32 %v422, %v2524
    %v2526 = vand.u32 %v2525, 4294901760
    %v2527 = vsub.f32 %v2525, %v2526
    %v2528 = vand.u32 %v2527, 4294901760
    %2529 = vmatpush1.msra.mxu0 %v2528
    %2530 = vmatprep.subr.mxu0 0.0
    %v2531 = vand.u32 %v423, 4294901760
    %v2532 = vsub.f32 %v423, %v2531
    %v2533 = vand.u32 %v2532, 4294901760
    %v2534 = vsub.f32 %v2532, %v2533
    %v2535 = vand.u32 %v2534, 4294901760
    %2536 = vmatpush1.msra.mxu0 %v2535
    %2537 = vmatprep.subr.mxu0 0.0
    %v2538 = vand.u32 %v424, 4294901760
    %v2539 = vsub.f32 %v424, %v2538
    %v2540 = vand.u32 %v2539, 4294901760
    %v2541 = vsub.f32 %v2539, %v2540
    %v2542 = vand.u32 %v2541, 4294901760
    %2543 = vmatpush1.msra.mxu0 %v2542
    %2544 = vmatprep.subr.mxu0 0.0
    %v2545 = vand.u32 %v425, 4294901760
    %v2546 = vsub.f32 %v425, %v2545
    %v2547 = vand.u32 %v2546, 4294901760
    %v2548 = vsub.f32 %v2546, %v2547
    %v2549 = vand.u32 %v2548, 4294901760
    %2550 = vmatpush1.msra.mxu0 %v2549
    %v2551 = vand.u32 %v2212, 4294901760
    %2552 = vmatprep.mubr.f32.mxu0 %v2551
    %v2553 = vand.u32 %v2211, 4294901760
    %2554 = vmatmul.mubr.f32.gmra.mrb[0].mxu0 %v2553
    %v2555 = vpop.f32.mrb[0].mxu0
    %v2556 = vadd.f32 %v2324, %v2555
    %v2557 = vpop.f32.mrb[0].mxu0
    %2558 = vdwg.mxu0
    %2559 = vmatprep.subr.mxu0 0.0
    %v2560 = vand.u32 %v394, 4294901760
    %v2561 = vsub.f32 %v394, %v2560
    %2562 = vmatpush1.msra.mxu0 %v2561
    %2563 = vmatprep.subr.mxu0 0.0
    %v2564 = vand.u32 %v395, 4294901760
    %v2565 = vsub.f32 %v395, %v2564
    %2566 = vmatpush1.msra.mxu0 %v2565
    %2567 = vmatprep.subr.mxu0 0.0
    %v2568 = vand.u32 %v396, 4294901760
    %v2569 = vsub.f32 %v396, %v2568
    %2570 = vmatpush1.msra.mxu0 %v2569
    %2571 = vmatprep.subr.mxu0 0.0
    %v2572 = vand.u32 %v397, 4294901760
    %v2573 = vsub.f32 %v397, %v2572
    %2574 = vmatpush1.msra.mxu0 %v2573
    %2575 = vmatprep.subr.mxu0 0.0
    %v2576 = vand.u32 %v398, 4294901760
    %v2577 = vsub.f32 %v398, %v2576
    %2578 = vmatpush1.msra.mxu0 %v2577
    %2579 = vmatprep.subr.mxu0 0.0
    %v2580 = vand.u32 %v399, 4294901760
    %v2581 = vsub.f32 %v399, %v2580
    %2582 = vmatpush1.msra.mxu0 %v2581
    %2583 = vmatprep.subr.mxu0 0.0
    %v2584 = vand.u32 %v400, 4294901760
    %v2585 = vsub.f32 %v400, %v2584
    %2586 = vmatpush1.msra.mxu0 %v2585
    %2587 = vmatprep.subr.mxu0 0.0
    %v2588 = vand.u32 %v401, 4294901760
    %v2589 = vsub.f32 %v401, %v2588
    %2590 = vmatpush1.msra.mxu0 %v2589
    %2591 = vmatprep.subr.mxu0 0.0
    %v2592 = vand.u32 %v402, 4294901760
    %v2593 = vsub.f32 %v402, %v2592
    %2594 = vmatpush1.msra.mxu0 %v2593
    %2595 = vmatprep.subr.mxu0 0.0
    %v2596 = vand.u32 %v403, 4294901760
    %v2597 = vsub.f32 %v403, %v2596
    %2598 = vmatpush1.msra.mxu0 %v2597
    %2599 = vmatprep.subr.mxu0 0.0
    %v2600 = vand.u32 %v404, 4294901760
    %v2601 = vsub.f32 %v404, %v2600
    %2602 = vmatpush1.msra.mxu0 %v2601
    %2603 = vmatprep.subr.mxu0 0.0
    %v2604 = vand.u32 %v405, 4294901760
    %v2605 = vsub.f32 %v405, %v2604
    %2606 = vmatpush1.msra.mxu0 %v2605
    %2607 = vmatprep.subr.mxu0 0.0
    %v2608 = vand.u32 %v406, 4294901760
    %v2609 = vsub.f32 %v406, %v2608
    %2610 = vmatpush1.msra.mxu0 %v2609
    %2611 = vmatprep.subr.mxu0 0.0
    %v2612 = vand.u32 %v407, 4294901760
    %v2613 = vsub.f32 %v407, %v2612
    %2614 = vmatpush1.msra.mxu0 %v2613
    %2615 = vmatprep.subr.mxu0 0.0
    %v2616 = vand.u32 %v408, 4294901760
    %v2617 = vsub.f32 %v408, %v2616
    %2618 = vmatpush1.msra.mxu0 %v2617
    %2619 = vmatprep.subr.mxu0 0.0
    %v2620 = vand.u32 %v409, 4294901760
    %v2621 = vsub.f32 %v409, %v2620
    %2622 = vmatpush1.msra.mxu0 %v2621
    %2623 = vmatprep.subr.mxu0 0.0
    %v2624 = vand.u32 %v410, 4294901760
    %v2625 = vsub.f32 %v410, %v2624
    %2626 = vmatpush1.msra.mxu0 %v2625
    %2627 = vmatprep.subr.mxu0 0.0
    %v2628 = vand.u32 %v411, 4294901760
    %v2629 = vsub.f32 %v411, %v2628
    %2630 = vmatpush1.msra.mxu0 %v2629
    %2631 = vmatprep.subr.mxu0 0.0
    %v2632 = vand.u32 %v412, 4294901760
    %v2633 = vsub.f32 %v412, %v2632
    %2634 = vmatpush1.msra.mxu0 %v2633
    %2635 = vmatprep.subr.mxu0 0.0
    %v2636 = vand.u32 %v413, 4294901760
    %v2637 = vsub.f32 %v413, %v2636
    %2638 = vmatpush1.msra.mxu0 %v2637
    %2639 = vmatprep.subr.mxu0 0.0
    %v2640 = vand.u32 %v414, 4294901760
    %v2641 = vsub.f32 %v414, %v2640
    %2642 = vmatpush1.msra.mxu0 %v2641
    %2643 = vmatprep.subr.mxu0 0.0
    %v2644 = vand.u32 %v415, 4294901760
    %v2645 = vsub.f32 %v415, %v2644
    %2646 = vmatpush1.msra.mxu0 %v2645
    %2647 = vmatprep.subr.mxu0 0.0
    %v2648 = vand.u32 %v416, 4294901760
    %v2649 = vsub.f32 %v416, %v2648
    %2650 = vmatpush1.msra.mxu0 %v2649
    %2651 = vmatprep.subr.mxu0 0.0
    %v2652 = vand.u32 %v417, 4294901760
    %v2653 = vsub.f32 %v417, %v2652
    %2654 = vmatpush1.msra.mxu0 %v2653
    %2655 = vmatprep.subr.mxu0 0.0
    %v2656 = vand.u32 %v418, 4294901760
    %v2657 = vsub.f32 %v418, %v2656
    %2658 = vmatpush1.msra.mxu0 %v2657
    %2659 = vmatprep.subr.mxu0 0.0
    %v2660 = vand.u32 %v419, 4294901760
    %v2661 = vsub.f32 %v419, %v2660
    %2662 = vmatpush1.msra.mxu0 %v2661
    %2663 = vmatprep.subr.mxu0 0.0
    %v2664 = vand.u32 %v420, 4294901760
    %v2665 = vsub.f32 %v420, %v2664
    %2666 = vmatpush1.msra.mxu0 %v2665
    %2667 = vmatprep.subr.mxu0 0.0
    %v2668 = vand.u32 %v421, 4294901760
    %v2669 = vsub.f32 %v421, %v2668
    %2670 = vmatpush1.msra.mxu0 %v2669
    %2671 = vmatprep.subr.mxu0 0.0
    %v2672 = vand.u32 %v422, 4294901760
    %v2673 = vsub.f32 %v422, %v2672
    %2674 = vmatpush1.msra.mxu0 %v2673
    %2675 = vmatprep.subr.mxu0 0.0
    %v2676 = vand.u32 %v423, 4294901760
    %v2677 = vsub.f32 %v423, %v2676
    %2678 = vmatpush1.msra.mxu0 %v2677
    %2679 = vmatprep.subr.mxu0 0.0
    %v2680 = vand.u32 %v424, 4294901760
    %v2681 = vsub.f32 %v424, %v2680
    %2682 = vmatpush1.msra.mxu0 %v2681
    %2683 = vmatprep.subr.mxu0 0.0
    %v2684 = vand.u32 %v425, 4294901760
    %v2685 = vsub.f32 %v425, %v2684
    %2686 = vmatpush1.msra.mxu0 %v2685
    %v2687 = vand.u32 %v2212, 4294901760
    %v2688 = vsub.f32 %v2212, %v2687
    %2689 = vmatprep.mubr.f32.mxu0 %v2688
    %v2690 = vand.u32 %v2211, 4294901760
    %v2691 = vsub.f32 %v2211, %v2690
    %2692 = vmatmul.mubr.f32.gmra.mrb[0].mxu0 %v2691
    %v2693 = vpop.f32.mrb[0].mxu0
    %v2694 = vadd.f32 %v2556, %v2693
    %v2695 = vpop.f32.mrb[0].mxu0
    %2696 = vdwg.mxu0
    %2697 = vmatprep.subr.mxu0 0.0
    %v2698 = vand.u32 %v394, 4294901760
    %2699 = vmatpush1.msra.mxu0 %v2698
    %2700 = vmatprep.subr.mxu0 0.0
    %v2701 = vand.u32 %v395, 4294901760
    %2702 = vmatpush1.msra.mxu0 %v2701
    %2703 = vmatprep.subr.mxu0 0.0
    %v2704 = vand.u32 %v396, 4294901760
    %2705 = vmatpush1.msra.mxu0 %v2704
    %2706 = vmatprep.subr.mxu0 0.0
    %v2707 = vand.u32 %v397, 4294901760
    %2708 = vmatpush1.msra.mxu0 %v2707
    %2709 = vmatprep.subr.mxu0 0.0
    %v2710 = vand.u32 %v398, 4294901760
    %2711 = vmatpush1.msra.mxu0 %v2710
    %2712 = vmatprep.subr.mxu0 0.0
    %v2713 = vand.u32 %v399, 4294901760
    %2714 = vmatpush1.msra.mxu0 %v2713
    %2715 = vmatprep.subr.mxu0 0.0
    %v2716 = vand.u32 %v400, 4294901760
    %2717 = vmatpush1.msra.mxu0 %v2716
    %2718 = vmatprep.subr.mxu0 0.0
    %v2719 = vand.u32 %v401, 4294901760
    %2720 = vmatpush1.msra.mxu0 %v2719
    %2721 = vmatprep.subr.mxu0 0.0
    %v2722 = vand.u32 %v402, 4294901760
    %2723 = vmatpush1.msra.mxu0 %v2722
    %2724 = vmatprep.subr.mxu0 0.0
    %v2725 = vand.u32 %v403, 4294901760
    %2726 = vmatpush1.msra.mxu0 %v2725
    %2727 = vmatprep.subr.mxu0 0.0
    %v2728 = vand.u32 %v404, 4294901760
    %2729 = vmatpush1.msra.mxu0 %v2728
    %2730 = vmatprep.subr.mxu0 0.0
    %v2731 = vand.u32 %v405, 4294901760
    %2732 = vmatpush1.msra.mxu0 %v2731
    %2733 = vmatprep.subr.mxu0 0.0
    %v2734 = vand.u32 %v406, 4294901760
    %2735 = vmatpush1.msra.mxu0 %v2734
    %2736 = vmatprep.subr.mxu0 0.0
    %v2737 = vand.u32 %v407, 4294901760
    %2738 = vmatpush1.msra.mxu0 %v2737
    %2739 = vmatprep.subr.mxu0 0.0
    %v2740 = vand.u32 %v408, 4294901760
    %2741 = vmatpush1.msra.mxu0 %v2740
    %2742 = vmatprep.subr.mxu0 0.0
    %v2743 = vand.u32 %v409, 4294901760
    %2744 = vmatpush1.msra.mxu0 %v2743
    %2745 = vmatprep.subr.mxu0 0.0
    %v2746 = vand.u32 %v410, 4294901760
    %2747 = vmatpush1.msra.mxu0 %v2746
    %2748 = vmatprep.subr.mxu0 0.0
    %v2749 = vand.u32 %v411, 4294901760
    %2750 = vmatpush1.msra.mxu0 %v2749
    %2751 = vmatprep.subr.mxu0 0.0
    %v2752 = vand.u32 %v412, 4294901760
    %2753 = vmatpush1.msra.mxu0 %v2752
    %2754 = vmatprep.subr.mxu0 0.0
    %v2755 = vand.u32 %v413, 4294901760
    %2756 = vmatpush1.msra.mxu0 %v2755
    %2757 = vmatprep.subr.mxu0 0.0
    %v2758 = vand.u32 %v414, 4294901760
    %2759 = vmatpush1.msra.mxu0 %v2758
    %2760 = vmatprep.subr.mxu0 0.0
    %v2761 = vand.u32 %v415, 4294901760
    %2762 = vmatpush1.msra.mxu0 %v2761
    %2763 = vmatprep.subr.mxu0 0.0
    %v2764 = vand.u32 %v416, 4294901760
    %2765 = vmatpush1.msra.mxu0 %v2764
    %2766 = vmatprep.subr.mxu0 0.0
    %v2767 = vand.u32 %v417, 4294901760
    %2768 = vmatpush1.msra.mxu0 %v2767
    %2769 = vmatprep.subr.mxu0 0.0
    %v2770 = vand.u32 %v418, 4294901760
    %2771 = vmatpush1.msra.mxu0 %v2770
    %2772 = vmatprep.subr.mxu0 0.0
    %v2773 = vand.u32 %v419, 4294901760
    %2774 = vmatpush1.msra.mxu0 %v2773
    %2775 = vmatprep.subr.mxu0 0.0
    %v2776 = vand.u32 %v420, 4294901760
    %2777 = vmatpush1.msra.mxu0 %v2776
    %2778 = vmatprep.subr.mxu0 0.0
    %v2779 = vand.u32 %v421, 4294901760
    %2780 = vmatpush1.msra.mxu0 %v2779
    %2781 = vmatprep.subr.mxu0 0.0
    %v2782 = vand.u32 %v422, 4294901760
    %2783 = vmatpush1.msra.mxu0 %v2782
    %2784 = vmatprep.subr.mxu0 0.0
    %v2785 = vand.u32 %v423, 4294901760
    %2786 = vmatpush1.msra.mxu0 %v2785
    %2787 = vmatprep.subr.mxu0 0.0
    %v2788 = vand.u32 %v424, 4294901760
    %2789 = vmatpush1.msra.mxu0 %v2788
    %2790 = vmatprep.subr.mxu0 0.0
    %v2791 = vand.u32 %v425, 4294901760
    %2792 = vmatpush1.msra.mxu0 %v2791
    %v2793 = vand.u32 %v2212, 4294901760
    %v2794 = vsub.f32 %v2212, %v2793
    %v2795 = vand.u32 %v2794, 4294901760
    %2796 = vmatprep.mubr.f32.mxu0 %v2795
    %v2797 = vand.u32 %v2211, 4294901760
    %v2798 = vsub.f32 %v2211, %v2797
    %v2799 = vand.u32 %v2798, 4294901760
    %2800 = vmatmul.mubr.f32.gmra.mrb[0].mxu0 %v2799
    %v2801 = vpop.f32.mrb[0].mxu0
    %v2802 = vadd.f32 %v2694, %v2801
    %v2803 = vpop.f32.mrb[0].mxu0
    %2804 = vdwg.mxu0
    %2805 = vmatprep.subr.mxu0 0.0
    %v2806 = vand.u32 %v394, 4294901760
    %v2807 = vsub.f32 %v394, %v2806
    %v2808 = vand.u32 %v2807, 4294901760
    %2809 = vmatpush1.msra.mxu0 %v2808
    %2810 = vmatprep.subr.mxu0 0.0
    %v2811 = vand.u32 %v395, 4294901760
    %v2812 = vsub.f32 %v395, %v2811
    %v2813 = vand.u32 %v2812, 4294901760
    %2814 = vmatpush1.msra.mxu0 %v2813
    %2815 = vmatprep.subr.mxu0 0.0
    %v2816 = vand.u32 %v396, 4294901760
    %v2817 = vsub.f32 %v396, %v2816
    %v2818 = vand.u32 %v2817, 4294901760
    %2819 = vmatpush1.msra.mxu0 %v2818
    %2820 = vmatprep.subr.mxu0 0.0
    %v2821 = vand.u32 %v397, 4294901760
    %v2822 = vsub.f32 %v397, %v2821
    %v2823 = vand.u32 %v2822, 4294901760
    %2824 = vmatpush1.msra.mxu0 %v2823
    %2825 = vmatprep.subr.mxu0 0.0
    %v2826 = vand.u32 %v398, 4294901760
    %v2827 = vsub.f32 %v398, %v2826
    %v2828 = vand.u32 %v2827, 4294901760
    %2829 = vmatpush1.msra.mxu0 %v2828
    %2830 = vmatprep.subr.mxu0 0.0
    %v2831 = vand.u32 %v399, 4294901760
    %v2832 = vsub.f32 %v399, %v2831
    %v2833 = vand.u32 %v2832, 4294901760
    %2834 = vmatpush1.msra.mxu0 %v2833
    %2835 = vmatprep.subr.mxu0 0.0
    %v2836 = vand.u32 %v400, 4294901760
    %v2837 = vsub.f32 %v400, %v2836
    %v2838 = vand.u32 %v2837, 4294901760
    %2839 = vmatpush1.msra.mxu0 %v2838
    %2840 = vmatprep.subr.mxu0 0.0
    %v2841 = vand.u32 %v401, 4294901760
    %v2842 = vsub.f32 %v401, %v2841
    %v2843 = vand.u32 %v2842, 4294901760
    %2844 = vmatpush1.msra.mxu0 %v2843
    %2845 = vmatprep.subr.mxu0 0.0
    %v2846 = vand.u32 %v402, 4294901760
    %v2847 = vsub.f32 %v402, %v2846
    %v2848 = vand.u32 %v2847, 4294901760
    %2849 = vmatpush1.msra.mxu0 %v2848
    %2850 = vmatprep.subr.mxu0 0.0
    %v2851 = vand.u32 %v403, 4294901760
    %v2852 = vsub.f32 %v403, %v2851
    %v2853 = vand.u32 %v2852, 4294901760
    %2854 = vmatpush1.msra.mxu0 %v2853
    %2855 = vmatprep.subr.mxu0 0.0
    %v2856 = vand.u32 %v404, 4294901760
    %v2857 = vsub.f32 %v404, %v2856
    %v2858 = vand.u32 %v2857, 4294901760
    %2859 = vmatpush1.msra.mxu0 %v2858
    %2860 = vmatprep.subr.mxu0 0.0
    %v2861 = vand.u32 %v405, 4294901760
    %v2862 = vsub.f32 %v405, %v2861
    %v2863 = vand.u32 %v2862, 4294901760
    %2864 = vmatpush1.msra.mxu0 %v2863
    %2865 = vmatprep.subr.mxu0 0.0
    %v2866 = vand.u32 %v406, 4294901760
    %v2867 = vsub.f32 %v406, %v2866
    %v2868 = vand.u32 %v2867, 4294901760
    %2869 = vmatpush1.msra.mxu0 %v2868
    %2870 = vmatprep.subr.mxu0 0.0
    %v2871 = vand.u32 %v407, 4294901760
    %v2872 = vsub.f32 %v407, %v2871
    %v2873 = vand.u32 %v2872, 4294901760
    %2874 = vmatpush1.msra.mxu0 %v2873
    %2875 = vmatprep.subr.mxu0 0.0
    %v2876 = vand.u32 %v408, 4294901760
    %v2877 = vsub.f32 %v408, %v2876
    %v2878 = vand.u32 %v2877, 4294901760
    %2879 = vmatpush1.msra.mxu0 %v2878
    %2880 = vmatprep.subr.mxu0 0.0
    %v2881 = vand.u32 %v409, 4294901760
    %v2882 = vsub.f32 %v409, %v2881
    %v2883 = vand.u32 %v2882, 4294901760
    %2884 = vmatpush1.msra.mxu0 %v2883
    %2885 = vmatprep.subr.mxu0 0.0
    %v2886 = vand.u32 %v410, 4294901760
    %v2887 = vsub.f32 %v410, %v2886
    %v2888 = vand.u32 %v2887, 4294901760
    %2889 = vmatpush1.msra.mxu0 %v2888
    %2890 = vmatprep.subr.mxu0 0.0
    %v2891 = vand.u32 %v411, 4294901760
    %v2892 = vsub.f32 %v411, %v2891
    %v2893 = vand.u32 %v2892, 4294901760
    %2894 = vmatpush1.msra.mxu0 %v2893
    %2895 = vmatprep.subr.mxu0 0.0
    %v2896 = vand.u32 %v412, 4294901760
    %v2897 = vsub.f32 %v412, %v2896
    %v2898 = vand.u32 %v2897, 4294901760
    %2899 = vmatpush1.msra.mxu0 %v2898
    %2900 = vmatprep.subr.mxu0 0.0
    %v2901 = vand.u32 %v413, 4294901760
    %v2902 = vsub.f32 %v413, %v2901
    %v2903 = vand.u32 %v2902, 4294901760
    %2904 = vmatpush1.msra.mxu0 %v2903
    %2905 = vmatprep.subr.mxu0 0.0
    %v2906 = vand.u32 %v414, 4294901760
    %v2907 = vsub.f32 %v414, %v2906
    %v2908 = vand.u32 %v2907, 4294901760
    %2909 = vmatpush1.msra.mxu0 %v2908
    %2910 = vmatprep.subr.mxu0 0.0
    %v2911 = vand.u32 %v415, 4294901760
    %v2912 = vsub.f32 %v415, %v2911
    %v2913 = vand.u32 %v2912, 4294901760
    %2914 = vmatpush1.msra.mxu0 %v2913
    %2915 = vmatprep.subr.mxu0 0.0
    %v2916 = vand.u32 %v416, 4294901760
    %v2917 = vsub.f32 %v416, %v2916
    %v2918 = vand.u32 %v2917, 4294901760
    %2919 = vmatpush1.msra.mxu0 %v2918
    %2920 = vmatprep.subr.mxu0 0.0
    %v2921 = vand.u32 %v417, 4294901760
    %v2922 = vsub.f32 %v417, %v2921
    %v2923 = vand.u32 %v2922, 4294901760
    %2924 = vmatpush1.msra.mxu0 %v2923
    %2925 = vmatprep.subr.mxu0 0.0
    %v2926 = vand.u32 %v418, 4294901760
    %v2927 = vsub.f32 %v418, %v2926
    %v2928 = vand.u32 %v2927, 4294901760
    %2929 = vmatpush1.msra.mxu0 %v2928
    %2930 = vmatprep.subr.mxu0 0.0
    %v2931 = vand.u32 %v419, 4294901760
    %v2932 = vsub.f32 %v419, %v2931
    %v2933 = vand.u32 %v2932, 4294901760
    %2934 = vmatpush1.msra.mxu0 %v2933
    %2935 = vmatprep.subr.mxu0 0.0
    %v2936 = vand.u32 %v420, 4294901760
    %v2937 = vsub.f32 %v420, %v2936
    %v2938 = vand.u32 %v2937, 4294901760
    %2939 = vmatpush1.msra.mxu0 %v2938
    %2940 = vmatprep.subr.mxu0 0.0
    %v2941 = vand.u32 %v421, 4294901760
    %v2942 = vsub.f32 %v421, %v2941
    %v2943 = vand.u32 %v2942, 4294901760
    %2944 = vmatpush1.msra.mxu0 %v2943
    %2945 = vmatprep.subr.mxu0 0.0
    %v2946 = vand.u32 %v422, 4294901760
    %v2947 = vsub.f32 %v422, %v2946
    %v2948 = vand.u32 %v2947, 4294901760
    %2949 = vmatpush1.msra.mxu0 %v2948
    %2950 = vmatprep.subr.mxu0 0.0
    %v2951 = vand.u32 %v423, 4294901760
    %v2952 = vsub.f32 %v423, %v2951
    %v2953 = vand.u32 %v2952, 4294901760
    %2954 = vmatpush1.msra.mxu0 %v2953
    %2955 = vmatprep.subr.mxu0 0.0
    %v2956 = vand.u32 %v424, 4294901760
    %v2957 = vsub.f32 %v424, %v2956
    %v2958 = vand.u32 %v2957, 4294901760
    %2959 = vmatpush1.msra.mxu0 %v2958
    %2960 = vmatprep.subr.mxu0 0.0
    %v2961 = vand.u32 %v425, 4294901760
    %v2962 = vsub.f32 %v425, %v2961
    %v2963 = vand.u32 %v2962, 4294901760
    %2964 = vmatpush1.msra.mxu0 %v2963
    %v2965 = vand.u32 %v2212, 4294901760
    %2966 = vmatprep.mubr.f32.mxu0 %v2965
    %v2967 = vand.u32 %v2211, 4294901760
    %2968 = vmatmul.mubr.f32.gmra.mrb[0].mxu0 %v2967
    %v2969 = vpop.f32.mrb[0].mxu0
    %v2970 = vadd.f32 %v2802, %v2969
    %v2971 = vpop.f32.mrb[0].mxu0
    %2972 = vdwg.mxu0
    %2973 = vmatprep.subr.mxu0 0.0
    %v2974 = vand.u32 %v394, 4294901760
    %2975 = vmatpush1.msra.mxu0 %v2974
    %2976 = vmatprep.subr.mxu0 0.0
    %v2977 = vand.u32 %v395, 4294901760
    %2978 = vmatpush1.msra.mxu0 %v2977
    %2979 = vmatprep.subr.mxu0 0.0
    %v2980 = vand.u32 %v396, 4294901760
    %2981 = vmatpush1.msra.mxu0 %v2980
    %2982 = vmatprep.subr.mxu0 0.0
    %v2983 = vand.u32 %v397, 4294901760
    %2984 = vmatpush1.msra.mxu0 %v2983
    %2985 = vmatprep.subr.mxu0 0.0
    %v2986 = vand.u32 %v398, 4294901760
    %2987 = vmatpush1.msra.mxu0 %v2986
    %2988 = vmatprep.subr.mxu0 0.0
    %v2989 = vand.u32 %v399, 4294901760
    %2990 = vmatpush1.msra.mxu0 %v2989
    %2991 = vmatprep.subr.mxu0 0.0
    %v2992 = vand.u32 %v400, 4294901760
    %2993 = vmatpush1.msra.mxu0 %v2992
    %2994 = vmatprep.subr.mxu0 0.0
    %v2995 = vand.u32 %v401, 4294901760
    %2996 = vmatpush1.msra.mxu0 %v2995
    %2997 = vmatprep.subr.mxu0 0.0
    %v2998 = vand.u32 %v402, 4294901760
    %2999 = vmatpush1.msra.mxu0 %v2998
    %3000 = vmatprep.subr.mxu0 0.0
    %v3001 = vand.u32 %v403, 4294901760
    %3002 = vmatpush1.msra.mxu0 %v3001
    %3003 = vmatprep.subr.mxu0 0.0
    %v3004 = vand.u32 %v404, 4294901760
    %3005 = vmatpush1.msra.mxu0 %v3004
    %3006 = vmatprep.subr.mxu0 0.0
    %v3007 = vand.u32 %v405, 4294901760
    %3008 = vmatpush1.msra.mxu0 %v3007
    %3009 = vmatprep.subr.mxu0 0.0
    %v3010 = vand.u32 %v406, 4294901760
    %3011 = vmatpush1.msra.mxu0 %v3010
    %3012 = vmatprep.subr.mxu0 0.0
    %v3013 = vand.u32 %v407, 4294901760
    %3014 = vmatpush1.msra.mxu0 %v3013
    %3015 = vmatprep.subr.mxu0 0.0
    %v3016 = vand.u32 %v408, 4294901760
    %3017 = vmatpush1.msra.mxu0 %v3016
    %3018 = vmatprep.subr.mxu0 0.0
    %v3019 = vand.u32 %v409, 4294901760
    %3020 = vmatpush1.msra.mxu0 %v3019
    %3021 = vmatprep.subr.mxu0 0.0
    %v3022 = vand.u32 %v410, 4294901760
    %3023 = vmatpush1.msra.mxu0 %v3022
    %3024 = vmatprep.subr.mxu0 0.0
    %v3025 = vand.u32 %v411, 4294901760
    %3026 = vmatpush1.msra.mxu0 %v3025
    %3027 = vmatprep.subr.mxu0 0.0
    %v3028 = vand.u32 %v412, 4294901760
    %3029 = vmatpush1.msra.mxu0 %v3028
    %3030 = vmatprep.subr.mxu0 0.0
    %v3031 = vand.u32 %v413, 4294901760
    %3032 = vmatpush1.msra.mxu0 %v3031
    %3033 = vmatprep.subr.mxu0 0.0
    %v3034 = vand.u32 %v414, 4294901760
    %3035 = vmatpush1.msra.mxu0 %v3034
    %3036 = vmatprep.subr.mxu0 0.0
    %v3037 = vand.u32 %v415, 4294901760
    %3038 = vmatpush1.msra.mxu0 %v3037
    %3039 = vmatprep.subr.mxu0 0.0
    %v3040 = vand.u32 %v416, 4294901760
    %3041 = vmatpush1.msra.mxu0 %v3040
    %3042 = vmatprep.subr.mxu0 0.0
    %v3043 = vand.u32 %v417, 4294901760
    %3044 = vmatpush1.msra.mxu0 %v3043
    %3045 = vmatprep.subr.mxu0 0.0
    %v3046 = vand.u32 %v418, 4294901760
    %3047 = vmatpush1.msra.mxu0 %v3046
    %3048 = vmatprep.subr.mxu0 0.0
    %v3049 = vand.u32 %v419, 4294901760
    %3050 = vmatpush1.msra.mxu0 %v3049
    %3051 = vmatprep.subr.mxu0 0.0
    %v3052 = vand.u32 %v420, 4294901760
    %3053 = vmatpush1.msra.mxu0 %v3052
    %3054 = vmatprep.subr.mxu0 0.0
    %v3055 = vand.u32 %v421, 4294901760
    %3056 = vmatpush1.msra.mxu0 %v3055
    %3057 = vmatprep.subr.mxu0 0.0
    %v3058 = vand.u32 %v422, 4294901760
    %3059 = vmatpush1.msra.mxu0 %v3058
    %3060 = vmatprep.subr.mxu0 0.0
    %v3061 = vand.u32 %v423, 4294901760
    %3062 = vmatpush1.msra.mxu0 %v3061
    %3063 = vmatprep.subr.mxu0 0.0
    %v3064 = vand.u32 %v424, 4294901760
    %3065 = vmatpush1.msra.mxu0 %v3064
    %3066 = vmatprep.subr.mxu0 0.0
    %v3067 = vand.u32 %v425, 4294901760
    %3068 = vmatpush1.msra.mxu0 %v3067
    %v3069 = vand.u32 %v2212, 4294901760
    %3070 = vmatprep.mubr.f32.mxu0 %v3069
    %v3071 = vand.u32 %v2211, 4294901760
    %3072 = vmatmul.mubr.f32.gmra.mrb[0].mxu0 %v3071
    %v3073 = vpop.f32.mrb[0].mxu0
    %v3074 = vadd.f32 %v2970, %v3073
    %v3075 = vpop.f32.mrb[0].mxu0
    %3076 = vdwg.mxu0
    %v3079 = vunpack.c.l.s4 1983009808
    %v3080 = vunpack.c.0.s8 %v3079
    %v3081 = vlaneseq
    %v3082 = vshrl.u32 %v3081, 7
    %v3083 = vsub.s32 %v3080, %v3082
    %v3084 = vrot.slane %v329, %v3083
    %v3085 = vcombine.high %v3084, %v3084
    %3088 = vmatprep.subr.mxu0 0.0
    %v3089 = vand.u32 %v426, 4294901760
    %3090 = vmatpush1.msra.mxu0 %v3089
    %3091 = vmatprep.subr.mxu0 0.0
    %v3092 = vand.u32 %v427, 4294901760
    %3093 = vmatpush1.msra.mxu0 %v3092
    %3094 = vmatprep.subr.mxu0 0.0
    %v3095 = vand.u32 %v428, 4294901760
    %3096 = vmatpush1.msra.mxu0 %v3095
    %3097 = vmatprep.subr.mxu0 0.0
    %v3098 = vand.u32 %v429, 4294901760
    %3099 = vmatpush1.msra.mxu0 %v3098
    %3100 = vmatprep.subr.mxu0 0.0
    %v3101 = vand.u32 %v430, 4294901760
    %3102 = vmatpush1.msra.mxu0 %v3101
    %3103 = vmatprep.subr.mxu0 0.0
    %v3104 = vand.u32 %v431, 4294901760
    %3105 = vmatpush1.msra.mxu0 %v3104
    %3106 = vmatprep.subr.mxu0 0.0
    %v3107 = vand.u32 %v432, 4294901760
    %3108 = vmatpush1.msra.mxu0 %v3107
    %3109 = vmatprep.subr.mxu0 0.0
    %v3110 = vand.u32 %v433, 4294901760
    %3111 = vmatpush1.msra.mxu0 %v3110
    %3112 = vmatprep.subr.mxu0 0.0
    %v3113 = vand.u32 %v434, 4294901760
    %3114 = vmatpush1.msra.mxu0 %v3113
    %3115 = vmatprep.subr.mxu0 0.0
    %v3116 = vand.u32 %v435, 4294901760
    %3117 = vmatpush1.msra.mxu0 %v3116
    %3118 = vmatprep.subr.mxu0 0.0
    %v3119 = vand.u32 %v436, 4294901760
    %3120 = vmatpush1.msra.mxu0 %v3119
    %3121 = vmatprep.subr.mxu0 0.0
    %v3122 = vand.u32 %v437, 4294901760
    %3123 = vmatpush1.msra.mxu0 %v3122
    %3124 = vmatprep.subr.mxu0 0.0
    %v3125 = vand.u32 %v438, 4294901760
    %3126 = vmatpush1.msra.mxu0 %v3125
    %3127 = vmatprep.subr.mxu0 0.0
    %v3128 = vand.u32 %v439, 4294901760
    %3129 = vmatpush1.msra.mxu0 %v3128
    %3130 = vmatprep.subr.mxu0 0.0
    %v3131 = vand.u32 %v440, 4294901760
    %3132 = vmatpush1.msra.mxu0 %v3131
    %3133 = vmatprep.subr.mxu0 0.0
    %v3134 = vand.u32 %v441, 4294901760
    %3135 = vmatpush1.msra.mxu0 %v3134
    %3136 = vmatprep.subr.mxu0 0.0
    %v3137 = vand.u32 %v442, 4294901760
    %3138 = vmatpush1.msra.mxu0 %v3137
    %3139 = vmatprep.subr.mxu0 0.0
    %v3140 = vand.u32 %v443, 4294901760
    %3141 = vmatpush1.msra.mxu0 %v3140
    %3142 = vmatprep.subr.mxu0 0.0
    %v3143 = vand.u32 %v444, 4294901760
    %3144 = vmatpush1.msra.mxu0 %v3143
    %3145 = vmatprep.subr.mxu0 0.0
    %v3146 = vand.u32 %v445, 4294901760
    %3147 = vmatpush1.msra.mxu0 %v3146
    %3148 = vmatprep.subr.mxu0 0.0
    %v3149 = vand.u32 %v446, 4294901760
    %3150 = vmatpush1.msra.mxu0 %v3149
    %3151 = vmatprep.subr.mxu0 0.0
    %v3152 = vand.u32 %v447, 4294901760
    %3153 = vmatpush1.msra.mxu0 %v3152
    %3154 = vmatprep.subr.mxu0 0.0
    %v3155 = vand.u32 %v448, 4294901760
    %3156 = vmatpush1.msra.mxu0 %v3155
    %3157 = vmatprep.subr.mxu0 0.0
    %v3158 = vand.u32 %v449, 4294901760
    %3159 = vmatpush1.msra.mxu0 %v3158
    %3160 = vmatprep.subr.mxu0 0.0
    %v3161 = vand.u32 %v450, 4294901760
    %3162 = vmatpush1.msra.mxu0 %v3161
    %3163 = vmatprep.subr.mxu0 0.0
    %v3164 = vand.u32 %v451, 4294901760
    %3165 = vmatpush1.msra.mxu0 %v3164
    %3166 = vmatprep.subr.mxu0 0.0
    %v3167 = vand.u32 %v452, 4294901760
    %3168 = vmatpush1.msra.mxu0 %v3167
    %3169 = vmatprep.subr.mxu0 0.0
    %v3170 = vand.u32 %v453, 4294901760
    %3171 = vmatpush1.msra.mxu0 %v3170
    %3172 = vmatprep.subr.mxu0 0.0
    %v3173 = vand.u32 %v454, 4294901760
    %3174 = vmatpush1.msra.mxu0 %v3173
    %3175 = vmatprep.subr.mxu0 0.0
    %v3176 = vand.u32 %v455, 4294901760
    %3177 = vmatpush1.msra.mxu0 %v3176
    %3178 = vmatprep.subr.mxu0 0.0
    %v3179 = vand.u32 %v456, 4294901760
    %3180 = vmatpush1.msra.mxu0 %v3179
    %3181 = vmatprep.subr.mxu0 0.0
    %v3182 = vand.u32 %v457, 4294901760
    %3183 = vmatpush1.msra.mxu0 %v3182
    %v3184 = vand.u32 %v3085, 4294901760
    %v3185 = vsub.f32 %v3085, %v3184
    %v3186 = vand.u32 %v3185, 4294901760
    %v3187 = vsub.f32 %v3185, %v3186
    %v3188 = vand.u32 %v3187, 4294901760
    %3189 = vmatprep.mubr.f32.mxu0 %v3188
    %v3190 = vand.u32 %v3084, 4294901760
    %v3191 = vsub.f32 %v3084, %v3190
    %v3192 = vand.u32 %v3191, 4294901760
    %v3193 = vsub.f32 %v3191, %v3192
    %v3194 = vand.u32 %v3193, 4294901760
    %3195 = vmatmul.mubr.f32.gmra.mrb[0].mxu0 %v3194
    %v3196 = vpop.f32.mrb[0].mxu0
    %v3197 = vadd.f32 0.0, %v3196
    %v3198 = vpop.f32.mrb[0].mxu0
    %3199 = vdwg.mxu0
    %3200 = vmatprep.subr.mxu0 0.0
    %v3201 = vand.u32 %v426, 4294901760
    %v3202 = vsub.f32 %v426, %v3201
    %v3203 = vand.u32 %v3202, 4294901760
    %v3204 = vsub.f32 %v3202, %v3203
    %v3205 = vand.u32 %v3204, 4294901760
    %3206 = vmatpush1.msra.mxu0 %v3205
    %3207 = vmatprep.subr.mxu0 0.0
    %v3208 = vand.u32 %v427, 4294901760
    %v3209 = vsub.f32 %v427, %v3208
    %v3210 = vand.u32 %v3209, 4294901760
    %v3211 = vsub.f32 %v3209, %v3210
    %v3212 = vand.u32 %v3211, 4294901760
    %3213 = vmatpush1.msra.mxu0 %v3212
    %3214 = vmatprep.subr.mxu0 0.0
    %v3215 = vand.u32 %v428, 4294901760
    %v3216 = vsub.f32 %v428, %v3215
    %v3217 = vand.u32 %v3216, 4294901760
    %v3218 = vsub.f32 %v3216, %v3217
    %v3219 = vand.u32 %v3218, 4294901760
    %3220 = vmatpush1.msra.mxu0 %v3219
    %3221 = vmatprep.subr.mxu0 0.0
    %v3222 = vand.u32 %v429, 4294901760
    %v3223 = vsub.f32 %v429, %v3222
    %v3224 = vand.u32 %v3223, 4294901760
    %v3225 = vsub.f32 %v3223, %v3224
    %v3226 = vand.u32 %v3225, 4294901760
    %3227 = vmatpush1.msra.mxu0 %v3226
    %3228 = vmatprep.subr.mxu0 0.0
    %v3229 = vand.u32 %v430, 4294901760
    %v3230 = vsub.f32 %v430, %v3229
    %v3231 = vand.u32 %v3230, 4294901760
    %v3232 = vsub.f32 %v3230, %v3231
    %v3233 = vand.u32 %v3232, 4294901760
    %3234 = vmatpush1.msra.mxu0 %v3233
    %3235 = vmatprep.subr.mxu0 0.0
    %v3236 = vand.u32 %v431, 4294901760
    %v3237 = vsub.f32 %v431, %v3236
    %v3238 = vand.u32 %v3237, 4294901760
    %v3239 = vsub.f32 %v3237, %v3238
    %v3240 = vand.u32 %v3239, 4294901760
    %3241 = vmatpush1.msra.mxu0 %v3240
    %3242 = vmatprep.subr.mxu0 0.0
    %v3243 = vand.u32 %v432, 4294901760
    %v3244 = vsub.f32 %v432, %v3243
    %v3245 = vand.u32 %v3244, 4294901760
    %v3246 = vsub.f32 %v3244, %v3245
    %v3247 = vand.u32 %v3246, 4294901760
    %3248 = vmatpush1.msra.mxu0 %v3247
    %3249 = vmatprep.subr.mxu0 0.0
    %v3250 = vand.u32 %v433, 4294901760
    %v3251 = vsub.f32 %v433, %v3250
    %v3252 = vand.u32 %v3251, 4294901760
    %v3253 = vsub.f32 %v3251, %v3252
    %v3254 = vand.u32 %v3253, 4294901760
    %3255 = vmatpush1.msra.mxu0 %v3254
    %3256 = vmatprep.subr.mxu0 0.0
    %v3257 = vand.u32 %v434, 4294901760
    %v3258 = vsub.f32 %v434, %v3257
    %v3259 = vand.u32 %v3258, 4294901760
    %v3260 = vsub.f32 %v3258, %v3259
    %v3261 = vand.u32 %v3260, 4294901760
    %3262 = vmatpush1.msra.mxu0 %v3261
    %3263 = vmatprep.subr.mxu0 0.0
    %v3264 = vand.u32 %v435, 4294901760
    %v3265 = vsub.f32 %v435, %v3264
    %v3266 = vand.u32 %v3265, 4294901760
    %v3267 = vsub.f32 %v3265, %v3266
    %v3268 = vand.u32 %v3267, 4294901760
    %3269 = vmatpush1.msra.mxu0 %v3268
    %3270 = vmatprep.subr.mxu0 0.0
    %v3271 = vand.u32 %v436, 4294901760
    %v3272 = vsub.f32 %v436, %v3271
    %v3273 = vand.u32 %v3272, 4294901760
    %v3274 = vsub.f32 %v3272, %v3273
    %v3275 = vand.u32 %v3274, 4294901760
    %3276 = vmatpush1.msra.mxu0 %v3275
    %3277 = vmatprep.subr.mxu0 0.0
    %v3278 = vand.u32 %v437, 4294901760
    %v3279 = vsub.f32 %v437, %v3278
    %v3280 = vand.u32 %v3279, 4294901760
    %v3281 = vsub.f32 %v3279, %v3280
    %v3282 = vand.u32 %v3281, 4294901760
    %3283 = vmatpush1.msra.mxu0 %v3282
    %3284 = vmatprep.subr.mxu0 0.0
    %v3285 = vand.u32 %v438, 4294901760
    %v3286 = vsub.f32 %v438, %v3285
    %v3287 = vand.u32 %v3286, 4294901760
    %v3288 = vsub.f32 %v3286, %v3287
    %v3289 = vand.u32 %v3288, 4294901760
    %3290 = vmatpush1.msra.mxu0 %v3289
    %3291 = vmatprep.subr.mxu0 0.0
    %v3292 = vand.u32 %v439, 4294901760
    %v3293 = vsub.f32 %v439, %v3292
    %v3294 = vand.u32 %v3293, 4294901760
    %v3295 = vsub.f32 %v3293, %v3294
    %v3296 = vand.u32 %v3295, 4294901760
    %3297 = vmatpush1.msra.mxu0 %v3296
    %3298 = vmatprep.subr.mxu0 0.0
    %v3299 = vand.u32 %v440, 4294901760
    %v3300 = vsub.f32 %v440, %v3299
    %v3301 = vand.u32 %v3300, 4294901760
    %v3302 = vsub.f32 %v3300, %v3301
    %v3303 = vand.u32 %v3302, 4294901760
    %3304 = vmatpush1.msra.mxu0 %v3303
    %3305 = vmatprep.subr.mxu0 0.0
    %v3306 = vand.u32 %v441, 4294901760
    %v3307 = vsub.f32 %v441, %v3306
    %v3308 = vand.u32 %v3307, 4294901760
    %v3309 = vsub.f32 %v3307, %v3308
    %v3310 = vand.u32 %v3309, 4294901760
    %3311 = vmatpush1.msra.mxu0 %v3310
    %3312 = vmatprep.subr.mxu0 0.0
    %v3313 = vand.u32 %v442, 4294901760
    %v3314 = vsub.f32 %v442, %v3313
    %v3315 = vand.u32 %v3314, 4294901760
    %v3316 = vsub.f32 %v3314, %v3315
    %v3317 = vand.u32 %v3316, 4294901760
    %3318 = vmatpush1.msra.mxu0 %v3317
    %3319 = vmatprep.subr.mxu0 0.0
    %v3320 = vand.u32 %v443, 4294901760
    %v3321 = vsub.f32 %v443, %v3320
    %v3322 = vand.u32 %v3321, 4294901760
    %v3323 = vsub.f32 %v3321, %v3322
    %v3324 = vand.u32 %v3323, 4294901760
    %3325 = vmatpush1.msra.mxu0 %v3324
    %3326 = vmatprep.subr.mxu0 0.0
    %v3327 = vand.u32 %v444, 4294901760
    %v3328 = vsub.f32 %v444, %v3327
    %v3329 = vand.u32 %v3328, 4294901760
    %v3330 = vsub.f32 %v3328, %v3329
    %v3331 = vand.u32 %v3330, 4294901760
    %3332 = vmatpush1.msra.mxu0 %v3331
    %3333 = vmatprep.subr.mxu0 0.0
    %v3334 = vand.u32 %v445, 4294901760
    %v3335 = vsub.f32 %v445, %v3334
    %v3336 = vand.u32 %v3335, 4294901760
    %v3337 = vsub.f32 %v3335, %v3336
    %v3338 = vand.u32 %v3337, 4294901760
    %3339 = vmatpush1.msra.mxu0 %v3338
    %3340 = vmatprep.subr.mxu0 0.0
    %v3341 = vand.u32 %v446, 4294901760
    %v3342 = vsub.f32 %v446, %v3341
    %v3343 = vand.u32 %v3342, 4294901760
    %v3344 = vsub.f32 %v3342, %v3343
    %v3345 = vand.u32 %v3344, 4294901760
    %3346 = vmatpush1.msra.mxu0 %v3345
    %3347 = vmatprep.subr.mxu0 0.0
    %v3348 = vand.u32 %v447, 4294901760
    %v3349 = vsub.f32 %v447, %v3348
    %v3350 = vand.u32 %v3349, 4294901760
    %v3351 = vsub.f32 %v3349, %v3350
    %v3352 = vand.u32 %v3351, 4294901760
    %3353 = vmatpush1.msra.mxu0 %v3352
    %3354 = vmatprep.subr.mxu0 0.0
    %v3355 = vand.u32 %v448, 4294901760
    %v3356 = vsub.f32 %v448, %v3355
    %v3357 = vand.u32 %v3356, 4294901760
    %v3358 = vsub.f32 %v3356, %v3357
    %v3359 = vand.u32 %v3358, 4294901760
    %3360 = vmatpush1.msra.mxu0 %v3359
    %3361 = vmatprep.subr.mxu0 0.0
    %v3362 = vand.u32 %v449, 4294901760
    %v3363 = vsub.f32 %v449, %v3362
    %v3364 = vand.u32 %v3363, 4294901760
    %v3365 = vsub.f32 %v3363, %v3364
    %v3366 = vand.u32 %v3365, 4294901760
    %3367 = vmatpush1.msra.mxu0 %v3366
    %3368 = vmatprep.subr.mxu0 0.0
    %v3369 = vand.u32 %v450, 4294901760
    %v3370 = vsub.f32 %v450, %v3369
    %v3371 = vand.u32 %v3370, 4294901760
    %v3372 = vsub.f32 %v3370, %v3371
    %v3373 = vand.u32 %v3372, 4294901760
    %3374 = vmatpush1.msra.mxu0 %v3373
    %3375 = vmatprep.subr.mxu0 0.0
    %v3376 = vand.u32 %v451, 4294901760
    %v3377 = vsub.f32 %v451, %v3376
    %v3378 = vand.u32 %v3377, 4294901760
    %v3379 = vsub.f32 %v3377, %v3378
    %v3380 = vand.u32 %v3379, 4294901760
    %3381 = vmatpush1.msra.mxu0 %v3380
    %3382 = vmatprep.subr.mxu0 0.0
    %v3383 = vand.u32 %v452, 4294901760
    %v3384 = vsub.f32 %v452, %v3383
    %v3385 = vand.u32 %v3384, 4294901760
    %v3386 = vsub.f32 %v3384, %v3385
    %v3387 = vand.u32 %v3386, 4294901760
    %3388 = vmatpush1.msra.mxu0 %v3387
    %3389 = vmatprep.subr.mxu0 0.0
    %v3390 = vand.u32 %v453, 4294901760
    %v3391 = vsub.f32 %v453, %v3390
    %v3392 = vand.u32 %v3391, 4294901760
    %v3393 = vsub.f32 %v3391, %v3392
    %v3394 = vand.u32 %v3393, 4294901760
    %3395 = vmatpush1.msra.mxu0 %v3394
    %3396 = vmatprep.subr.mxu0 0.0
    %v3397 = vand.u32 %v454, 4294901760
    %v3398 = vsub.f32 %v454, %v3397
    %v3399 = vand.u32 %v3398, 4294901760
    %v3400 = vsub.f32 %v3398, %v3399
    %v3401 = vand.u32 %v3400, 4294901760
    %3402 = vmatpush1.msra.mxu0 %v3401
    %3403 = vmatprep.subr.mxu0 0.0
    %v3404 = vand.u32 %v455, 4294901760
    %v3405 = vsub.f32 %v455, %v3404
    %v3406 = vand.u32 %v3405, 4294901760
    %v3407 = vsub.f32 %v3405, %v3406
    %v3408 = vand.u32 %v3407, 4294901760
    %3409 = vmatpush1.msra.mxu0 %v3408
    %3410 = vmatprep.subr.mxu0 0.0
    %v3411 = vand.u32 %v456, 4294901760
    %v3412 = vsub.f32 %v456, %v3411
    %v3413 = vand.u32 %v3412, 4294901760
    %v3414 = vsub.f32 %v3412, %v3413
    %v3415 = vand.u32 %v3414, 4294901760
    %3416 = vmatpush1.msra.mxu0 %v3415
    %3417 = vmatprep.subr.mxu0 0.0
    %v3418 = vand.u32 %v457, 4294901760
    %v3419 = vsub.f32 %v457, %v3418
    %v3420 = vand.u32 %v3419, 4294901760
    %v3421 = vsub.f32 %v3419, %v3420
    %v3422 = vand.u32 %v3421, 4294901760
    %3423 = vmatpush1.msra.mxu0 %v3422
    %v3424 = vand.u32 %v3085, 4294901760
    %3425 = vmatprep.mubr.f32.mxu0 %v3424
    %v3426 = vand.u32 %v3084, 4294901760
    %3427 = vmatmul.mubr.f32.gmra.mrb[0].mxu0 %v3426
    %v3428 = vpop.f32.mrb[0].mxu0
    %v3429 = vadd.f32 %v3197, %v3428
    %v3430 = vpop.f32.mrb[0].mxu0
    %3431 = vdwg.mxu0
    %3432 = vmatprep.subr.mxu0 0.0
    %v3433 = vand.u32 %v426, 4294901760
    %v3434 = vsub.f32 %v426, %v3433
    %3435 = vmatpush1.msra.mxu0 %v3434
    %3436 = vmatprep.subr.mxu0 0.0
    %v3437 = vand.u32 %v427, 4294901760
    %v3438 = vsub.f32 %v427, %v3437
    %3439 = vmatpush1.msra.mxu0 %v3438
    %3440 = vmatprep.subr.mxu0 0.0
    %v3441 = vand.u32 %v428, 4294901760
    %v3442 = vsub.f32 %v428, %v3441
    %3443 = vmatpush1.msra.mxu0 %v3442
    %3444 = vmatprep.subr.mxu0 0.0
    %v3445 = vand.u32 %v429, 4294901760
    %v3446 = vsub.f32 %v429, %v3445
    %3447 = vmatpush1.msra.mxu0 %v3446
    %3448 = vmatprep.subr.mxu0 0.0
    %v3449 = vand.u32 %v430, 4294901760
    %v3450 = vsub.f32 %v430, %v3449
    %3451 = vmatpush1.msra.mxu0 %v3450
    %3452 = vmatprep.subr.mxu0 0.0
    %v3453 = vand.u32 %v431, 4294901760
    %v3454 = vsub.f32 %v431, %v3453
    %3455 = vmatpush1.msra.mxu0 %v3454
    %3456 = vmatprep.subr.mxu0 0.0
    %v3457 = vand.u32 %v432, 4294901760
    %v3458 = vsub.f32 %v432, %v3457
    %3459 = vmatpush1.msra.mxu0 %v3458
    %3460 = vmatprep.subr.mxu0 0.0
    %v3461 = vand.u32 %v433, 4294901760
    %v3462 = vsub.f32 %v433, %v3461
    %3463 = vmatpush1.msra.mxu0 %v3462
    %3464 = vmatprep.subr.mxu0 0.0
    %v3465 = vand.u32 %v434, 4294901760
    %v3466 = vsub.f32 %v434, %v3465
    %3467 = vmatpush1.msra.mxu0 %v3466
    %3468 = vmatprep.subr.mxu0 0.0
    %v3469 = vand.u32 %v435, 4294901760
    %v3470 = vsub.f32 %v435, %v3469
    %3471 = vmatpush1.msra.mxu0 %v3470
    %3472 = vmatprep.subr.mxu0 0.0
    %v3473 = vand.u32 %v436, 4294901760
    %v3474 = vsub.f32 %v436, %v3473
    %3475 = vmatpush1.msra.mxu0 %v3474
    %3476 = vmatprep.subr.mxu0 0.0
    %v3477 = vand.u32 %v437, 4294901760
    %v3478 = vsub.f32 %v437, %v3477
    %3479 = vmatpush1.msra.mxu0 %v3478
    %3480 = vmatprep.subr.mxu0 0.0
    %v3481 = vand.u32 %v438, 4294901760
    %v3482 = vsub.f32 %v438, %v3481
    %3483 = vmatpush1.msra.mxu0 %v3482
    %3484 = vmatprep.subr.mxu0 0.0
    %v3485 = vand.u32 %v439, 4294901760
    %v3486 = vsub.f32 %v439, %v3485
    %3487 = vmatpush1.msra.mxu0 %v3486
    %3488 = vmatprep.subr.mxu0 0.0
    %v3489 = vand.u32 %v440, 4294901760
    %v3490 = vsub.f32 %v440, %v3489
    %3491 = vmatpush1.msra.mxu0 %v3490
    %3492 = vmatprep.subr.mxu0 0.0
    %v3493 = vand.u32 %v441, 4294901760
    %v3494 = vsub.f32 %v441, %v3493
    %3495 = vmatpush1.msra.mxu0 %v3494
    %3496 = vmatprep.subr.mxu0 0.0
    %v3497 = vand.u32 %v442, 4294901760
    %v3498 = vsub.f32 %v442, %v3497
    %3499 = vmatpush1.msra.mxu0 %v3498
    %3500 = vmatprep.subr.mxu0 0.0
    %v3501 = vand.u32 %v443, 4294901760
    %v3502 = vsub.f32 %v443, %v3501
    %3503 = vmatpush1.msra.mxu0 %v3502
    %3504 = vmatprep.subr.mxu0 0.0
    %v3505 = vand.u32 %v444, 4294901760
    %v3506 = vsub.f32 %v444, %v3505
    %3507 = vmatpush1.msra.mxu0 %v3506
    %3508 = vmatprep.subr.mxu0 0.0
    %v3509 = vand.u32 %v445, 4294901760
    %v3510 = vsub.f32 %v445, %v3509
    %3511 = vmatpush1.msra.mxu0 %v3510
    %3512 = vmatprep.subr.mxu0 0.0
    %v3513 = vand.u32 %v446, 4294901760
    %v3514 = vsub.f32 %v446, %v3513
    %3515 = vmatpush1.msra.mxu0 %v3514
    %3516 = vmatprep.subr.mxu0 0.0
    %v3517 = vand.u32 %v447, 4294901760
    %v3518 = vsub.f32 %v447, %v3517
    %3519 = vmatpush1.msra.mxu0 %v3518
    %3520 = vmatprep.subr.mxu0 0.0
    %v3521 = vand.u32 %v448, 4294901760
    %v3522 = vsub.f32 %v448, %v3521
    %3523 = vmatpush1.msra.mxu0 %v3522
    %3524 = vmatprep.subr.mxu0 0.0
    %v3525 = vand.u32 %v449, 4294901760
    %v3526 = vsub.f32 %v449, %v3525
    %3527 = vmatpush1.msra.mxu0 %v3526
    %3528 = vmatprep.subr.mxu0 0.0
    %v3529 = vand.u32 %v450, 4294901760
    %v3530 = vsub.f32 %v450, %v3529
    %3531 = vmatpush1.msra.mxu0 %v3530
    %3532 = vmatprep.subr.mxu0 0.0
    %v3533 = vand.u32 %v451, 4294901760
    %v3534 = vsub.f32 %v451, %v3533
    %3535 = vmatpush1.msra.mxu0 %v3534
    %3536 = vmatprep.subr.mxu0 0.0
    %v3537 = vand.u32 %v452, 4294901760
    %v3538 = vsub.f32 %v452, %v3537
    %3539 = vmatpush1.msra.mxu0 %v3538
    %3540 = vmatprep.subr.mxu0 0.0
    %v3541 = vand.u32 %v453, 4294901760
    %v3542 = vsub.f32 %v453, %v3541
    %3543 = vmatpush1.msra.mxu0 %v3542
    %3544 = vmatprep.subr.mxu0 0.0
    %v3545 = vand.u32 %v454, 4294901760
    %v3546 = vsub.f32 %v454, %v3545
    %3547 = vmatpush1.msra.mxu0 %v3546
    %3548 = vmatprep.subr.mxu0 0.0
    %v3549 = vand.u32 %v455, 4294901760
    %v3550 = vsub.f32 %v455, %v3549
    %3551 = vmatpush1.msra.mxu0 %v3550
    %3552 = vmatprep.subr.mxu0 0.0
    %v3553 = vand.u32 %v456, 4294901760
    %v3554 = vsub.f32 %v456, %v3553
    %3555 = vmatpush1.msra.mxu0 %v3554
    %3556 = vmatprep.subr.mxu0 0.0
    %v3557 = vand.u32 %v457, 4294901760
    %v3558 = vsub.f32 %v457, %v3557
    %3559 = vmatpush1.msra.mxu0 %v3558
    %v3560 = vand.u32 %v3085, 4294901760
    %v3561 = vsub.f32 %v3085, %v3560
    %3562 = vmatprep.mubr.f32.mxu0 %v3561
    %v3563 = vand.u32 %v3084, 4294901760
    %v3564 = vsub.f32 %v3084, %v3563
    %3565 = vmatmul.mubr.f32.gmra.mrb[0].mxu0 %v3564
    %v3566 = vpop.f32.mrb[0].mxu0
    %v3567 = vadd.f32 %v3429, %v3566
    %v3568 = vpop.f32.mrb[0].mxu0
    %3569 = vdwg.mxu0
    %3570 = vmatprep.subr.mxu0 0.0
    %v3571 = vand.u32 %v426, 4294901760
    %3572 = vmatpush1.msra.mxu0 %v3571
    %3573 = vmatprep.subr.mxu0 0.0
    %v3574 = vand.u32 %v427, 4294901760
    %3575 = vmatpush1.msra.mxu0 %v3574
    %3576 = vmatprep.subr.mxu0 0.0
    %v3577 = vand.u32 %v428, 4294901760
    %3578 = vmatpush1.msra.mxu0 %v3577
    %3579 = vmatprep.subr.mxu0 0.0
    %v3580 = vand.u32 %v429, 4294901760
    %3581 = vmatpush1.msra.mxu0 %v3580
    %3582 = vmatprep.subr.mxu0 0.0
    %v3583 = vand.u32 %v430, 4294901760
    %3584 = vmatpush1.msra.mxu0 %v3583
    %3585 = vmatprep.subr.mxu0 0.0
    %v3586 = vand.u32 %v431, 4294901760
    %3587 = vmatpush1.msra.mxu0 %v3586
    %3588 = vmatprep.subr.mxu0 0.0
    %v3589 = vand.u32 %v432, 4294901760
    %3590 = vmatpush1.msra.mxu0 %v3589
    %3591 = vmatprep.subr.mxu0 0.0
    %v3592 = vand.u32 %v433, 4294901760
    %3593 = vmatpush1.msra.mxu0 %v3592
    %3594 = vmatprep.subr.mxu0 0.0
    %v3595 = vand.u32 %v434, 4294901760
    %3596 = vmatpush1.msra.mxu0 %v3595
    %3597 = vmatprep.subr.mxu0 0.0
    %v3598 = vand.u32 %v435, 4294901760
    %3599 = vmatpush1.msra.mxu0 %v3598
    %3600 = vmatprep.subr.mxu0 0.0
    %v3601 = vand.u32 %v436, 4294901760
    %3602 = vmatpush1.msra.mxu0 %v3601
    %3603 = vmatprep.subr.mxu0 0.0
    %v3604 = vand.u32 %v437, 4294901760
    %3605 = vmatpush1.msra.mxu0 %v3604
    %3606 = vmatprep.subr.mxu0 0.0
    %v3607 = vand.u32 %v438, 4294901760
    %3608 = vmatpush1.msra.mxu0 %v3607
    %3609 = vmatprep.subr.mxu0 0.0
    %v3610 = vand.u32 %v439, 4294901760
    %3611 = vmatpush1.msra.mxu0 %v3610
    %3612 = vmatprep.subr.mxu0 0.0
    %v3613 = vand.u32 %v440, 4294901760
    %3614 = vmatpush1.msra.mxu0 %v3613
    %3615 = vmatprep.subr.mxu0 0.0
    %v3616 = vand.u32 %v441, 4294901760
    %3617 = vmatpush1.msra.mxu0 %v3616
    %3618 = vmatprep.subr.mxu0 0.0
    %v3619 = vand.u32 %v442, 4294901760
    %3620 = vmatpush1.msra.mxu0 %v3619
    %3621 = vmatprep.subr.mxu0 0.0
    %v3622 = vand.u32 %v443, 4294901760
    %3623 = vmatpush1.msra.mxu0 %v3622
    %3624 = vmatprep.subr.mxu0 0.0
    %v3625 = vand.u32 %v444, 4294901760
    %3626 = vmatpush1.msra.mxu0 %v3625
    %3627 = vmatprep.subr.mxu0 0.0
    %v3628 = vand.u32 %v445, 4294901760
    %3629 = vmatpush1.msra.mxu0 %v3628
    %3630 = vmatprep.subr.mxu0 0.0
    %v3631 = vand.u32 %v446, 4294901760
    %3632 = vmatpush1.msra.mxu0 %v3631
    %3633 = vmatprep.subr.mxu0 0.0
    %v3634 = vand.u32 %v447, 4294901760
    %3635 = vmatpush1.msra.mxu0 %v3634
    %3636 = vmatprep.subr.mxu0 0.0
    %v3637 = vand.u32 %v448, 4294901760
    %3638 = vmatpush1.msra.mxu0 %v3637
    %3639 = vmatprep.subr.mxu0 0.0
    %v3640 = vand.u32 %v449, 4294901760
    %3641 = vmatpush1.msra.mxu0 %v3640
    %3642 = vmatprep.subr.mxu0 0.0
    %v3643 = vand.u32 %v450, 4294901760
    %3644 = vmatpush1.msra.mxu0 %v3643
    %3645 = vmatprep.subr.mxu0 0.0
    %v3646 = vand.u32 %v451, 4294901760
    %3647 = vmatpush1.msra.mxu0 %v3646
    %3648 = vmatprep.subr.mxu0 0.0
    %v3649 = vand.u32 %v452, 4294901760
    %3650 = vmatpush1.msra.mxu0 %v3649
    %3651 = vmatprep.subr.mxu0 0.0
    %v3652 = vand.u32 %v453, 4294901760
    %3653 = vmatpush1.msra.mxu0 %v3652
    %3654 = vmatprep.subr.mxu0 0.0
    %v3655 = vand.u32 %v454, 4294901760
    %3656 = vmatpush1.msra.mxu0 %v3655
    %3657 = vmatprep.subr.mxu0 0.0
    %v3658 = vand.u32 %v455, 4294901760
    %3659 = vmatpush1.msra.mxu0 %v3658
    %3660 = vmatprep.subr.mxu0 0.0
    %v3661 = vand.u32 %v456, 4294901760
    %3662 = vmatpush1.msra.mxu0 %v3661
    %3663 = vmatprep.subr.mxu0 0.0
    %v3664 = vand.u32 %v457, 4294901760
    %3665 = vmatpush1.msra.mxu0 %v3664
    %v3666 = vand.u32 %v3085, 4294901760
    %v3667 = vsub.f32 %v3085, %v3666
    %v3668 = vand.u32 %v3667, 4294901760
    %3669 = vmatprep.mubr.f32.mxu0 %v3668
    %v3670 = vand.u32 %v3084, 4294901760
    %v3671 = vsub.f32 %v3084, %v3670
    %v3672 = vand.u32 %v3671, 4294901760
    %3673 = vmatmul.mubr.f32.gmra.mrb[0].mxu0 %v3672
    %v3674 = vpop.f32.mrb[0].mxu0
    %v3675 = vadd.f32 %v3567, %v3674
    %v3676 = vpop.f32.mrb[0].mxu0
    %3677 = vdwg.mxu0
    %3678 = vmatprep.subr.mxu0 0.0
    %v3679 = vand.u32 %v426, 4294901760
    %v3680 = vsub.f32 %v426, %v3679
    %v3681 = vand.u32 %v3680, 4294901760
    %3682 = vmatpush1.msra.mxu0 %v3681
    %3683 = vmatprep.subr.mxu0 0.0
    %v3684 = vand.u32 %v427, 4294901760
    %v3685 = vsub.f32 %v427, %v3684
    %v3686 = vand.u32 %v3685, 4294901760
    %3687 = vmatpush1.msra.mxu0 %v3686
    %3688 = vmatprep.subr.mxu0 0.0
    %v3689 = vand.u32 %v428, 4294901760
    %v3690 = vsub.f32 %v428, %v3689
    %v3691 = vand.u32 %v3690, 4294901760
    %3692 = vmatpush1.msra.mxu0 %v3691
    %3693 = vmatprep.subr.mxu0 0.0
    %v3694 = vand.u32 %v429, 4294901760
    %v3695 = vsub.f32 %v429, %v3694
    %v3696 = vand.u32 %v3695, 4294901760
    %3697 = vmatpush1.msra.mxu0 %v3696
    %3698 = vmatprep.subr.mxu0 0.0
    %v3699 = vand.u32 %v430, 4294901760
    %v3700 = vsub.f32 %v430, %v3699
    %v3701 = vand.u32 %v3700, 4294901760
    %3702 = vmatpush1.msra.mxu0 %v3701
    %3703 = vmatprep.subr.mxu0 0.0
    %v3704 = vand.u32 %v431, 4294901760
    %v3705 = vsub.f32 %v431, %v3704
    %v3706 = vand.u32 %v3705, 4294901760
    %3707 = vmatpush1.msra.mxu0 %v3706
    %3708 = vmatprep.subr.mxu0 0.0
    %v3709 = vand.u32 %v432, 4294901760
    %v3710 = vsub.f32 %v432, %v3709
    %v3711 = vand.u32 %v3710, 4294901760
    %3712 = vmatpush1.msra.mxu0 %v3711
    %3713 = vmatprep.subr.mxu0 0.0
    %v3714 = vand.u32 %v433, 4294901760
    %v3715 = vsub.f32 %v433, %v3714
    %v3716 = vand.u32 %v3715, 4294901760
    %3717 = vmatpush1.msra.mxu0 %v3716
    %3718 = vmatprep.subr.mxu0 0.0
    %v3719 = vand.u32 %v434, 4294901760
    %v3720 = vsub.f32 %v434, %v3719
    %v3721 = vand.u32 %v3720, 4294901760
    %3722 = vmatpush1.msra.mxu0 %v3721
    %3723 = vmatprep.subr.mxu0 0.0
    %v3724 = vand.u32 %v435, 4294901760
    %v3725 = vsub.f32 %v435, %v3724
    %v3726 = vand.u32 %v3725, 4294901760
    %3727 = vmatpush1.msra.mxu0 %v3726
    %3728 = vmatprep.subr.mxu0 0.0
    %v3729 = vand.u32 %v436, 4294901760
    %v3730 = vsub.f32 %v436, %v3729
    %v3731 = vand.u32 %v3730, 4294901760
    %3732 = vmatpush1.msra.mxu0 %v3731
    %3733 = vmatprep.subr.mxu0 0.0
    %v3734 = vand.u32 %v437, 4294901760
    %v3735 = vsub.f32 %v437, %v3734
    %v3736 = vand.u32 %v3735, 4294901760
    %3737 = vmatpush1.msra.mxu0 %v3736
    %3738 = vmatprep.subr.mxu0 0.0
    %v3739 = vand.u32 %v438, 4294901760
    %v3740 = vsub.f32 %v438, %v3739
    %v3741 = vand.u32 %v3740, 4294901760
    %3742 = vmatpush1.msra.mxu0 %v3741
    %3743 = vmatprep.subr.mxu0 0.0
    %v3744 = vand.u32 %v439, 4294901760
    %v3745 = vsub.f32 %v439, %v3744
    %v3746 = vand.u32 %v3745, 4294901760
    %3747 = vmatpush1.msra.mxu0 %v3746
    %3748 = vmatprep.subr.mxu0 0.0
    %v3749 = vand.u32 %v440, 4294901760
    %v3750 = vsub.f32 %v440, %v3749
    %v3751 = vand.u32 %v3750, 4294901760
    %3752 = vmatpush1.msra.mxu0 %v3751
    %3753 = vmatprep.subr.mxu0 0.0
    %v3754 = vand.u32 %v441, 4294901760
    %v3755 = vsub.f32 %v441, %v3754
    %v3756 = vand.u32 %v3755, 4294901760
    %3757 = vmatpush1.msra.mxu0 %v3756
    %3758 = vmatprep.subr.mxu0 0.0
    %v3759 = vand.u32 %v442, 4294901760
    %v3760 = vsub.f32 %v442, %v3759
    %v3761 = vand.u32 %v3760, 4294901760
    %3762 = vmatpush1.msra.mxu0 %v3761
    %3763 = vmatprep.subr.mxu0 0.0
    %v3764 = vand.u32 %v443, 4294901760
    %v3765 = vsub.f32 %v443, %v3764
    %v3766 = vand.u32 %v3765, 4294901760
    %3767 = vmatpush1.msra.mxu0 %v3766
    %3768 = vmatprep.subr.mxu0 0.0
    %v3769 = vand.u32 %v444, 4294901760
    %v3770 = vsub.f32 %v444, %v3769
    %v3771 = vand.u32 %v3770, 4294901760
    %3772 = vmatpush1.msra.mxu0 %v3771
    %3773 = vmatprep.subr.mxu0 0.0
    %v3774 = vand.u32 %v445, 4294901760
    %v3775 = vsub.f32 %v445, %v3774
    %v3776 = vand.u32 %v3775, 4294901760
    %3777 = vmatpush1.msra.mxu0 %v3776
    %3778 = vmatprep.subr.mxu0 0.0
    %v3779 = vand.u32 %v446, 4294901760
    %v3780 = vsub.f32 %v446, %v3779
    %v3781 = vand.u32 %v3780, 4294901760
    %3782 = vmatpush1.msra.mxu0 %v3781
    %3783 = vmatprep.subr.mxu0 0.0
    %v3784 = vand.u32 %v447, 4294901760
    %v3785 = vsub.f32 %v447, %v3784
    %v3786 = vand.u32 %v3785, 4294901760
    %3787 = vmatpush1.msra.mxu0 %v3786
    %3788 = vmatprep.subr.mxu0 0.0
    %v3789 = vand.u32 %v448, 4294901760
    %v3790 = vsub.f32 %v448, %v3789
    %v3791 = vand.u32 %v3790, 4294901760
    %3792 = vmatpush1.msra.mxu0 %v3791
    %3793 = vmatprep.subr.mxu0 0.0
    %v3794 = vand.u32 %v449, 4294901760
    %v3795 = vsub.f32 %v449, %v3794
    %v3796 = vand.u32 %v3795, 4294901760
    %3797 = vmatpush1.msra.mxu0 %v3796
    %3798 = vmatprep.subr.mxu0 0.0
    %v3799 = vand.u32 %v450, 4294901760
    %v3800 = vsub.f32 %v450, %v3799
    %v3801 = vand.u32 %v3800, 4294901760
    %3802 = vmatpush1.msra.mxu0 %v3801
    %3803 = vmatprep.subr.mxu0 0.0
    %v3804 = vand.u32 %v451, 4294901760
    %v3805 = vsub.f32 %v451, %v3804
    %v3806 = vand.u32 %v3805, 4294901760
    %3807 = vmatpush1.msra.mxu0 %v3806
    %3808 = vmatprep.subr.mxu0 0.0
    %v3809 = vand.u32 %v452, 4294901760
    %v3810 = vsub.f32 %v452, %v3809
    %v3811 = vand.u32 %v3810, 4294901760
    %3812 = vmatpush1.msra.mxu0 %v3811
    %3813 = vmatprep.subr.mxu0 0.0
    %v3814 = vand.u32 %v453, 4294901760
    %v3815 = vsub.f32 %v453, %v3814
    %v3816 = vand.u32 %v3815, 4294901760
    %3817 = vmatpush1.msra.mxu0 %v3816
    %3818 = vmatprep.subr.mxu0 0.0
    %v3819 = vand.u32 %v454, 4294901760
    %v3820 = vsub.f32 %v454, %v3819
    %v3821 = vand.u32 %v3820, 4294901760
    %3822 = vmatpush1.msra.mxu0 %v3821
    %3823 = vmatprep.subr.mxu0 0.0
    %v3824 = vand.u32 %v455, 4294901760
    %v3825 = vsub.f32 %v455, %v3824
    %v3826 = vand.u32 %v3825, 4294901760
    %3827 = vmatpush1.msra.mxu0 %v3826
    %3828 = vmatprep.subr.mxu0 0.0
    %v3829 = vand.u32 %v456, 4294901760
    %v3830 = vsub.f32 %v456, %v3829
    %v3831 = vand.u32 %v3830, 4294901760
    %3832 = vmatpush1.msra.mxu0 %v3831
    %3833 = vmatprep.subr.mxu0 0.0
    %v3834 = vand.u32 %v457, 4294901760
    %v3835 = vsub.f32 %v457, %v3834
    %v3836 = vand.u32 %v3835, 4294901760
    %3837 = vmatpush1.msra.mxu0 %v3836
    %v3838 = vand.u32 %v3085, 4294901760
    %3839 = vmatprep.mubr.f32.mxu0 %v3838
    %v3840 = vand.u32 %v3084, 4294901760
    %3841 = vmatmul.mubr.f32.gmra.mrb[0].mxu0 %v3840
    %v3842 = vpop.f32.mrb[0].mxu0
    %v3843 = vadd.f32 %v3675, %v3842
    %v3844 = vpop.f32.mrb[0].mxu0
    %3845 = vdwg.mxu0
    %3846 = vmatprep.subr.mxu0 0.0
    %v3847 = vand.u32 %v426, 4294901760
    %3848 = vmatpush1.msra.mxu0 %v3847
    %3849 = vmatprep.subr.mxu0 0.0
    %v3850 = vand.u32 %v427, 4294901760
    %3851 = vmatpush1.msra.mxu0 %v3850
    %3852 = vmatprep.subr.mxu0 0.0
    %v3853 = vand.u32 %v428, 4294901760
    %3854 = vmatpush1.msra.mxu0 %v3853
    %3855 = vmatprep.subr.mxu0 0.0
    %v3856 = vand.u32 %v429, 4294901760
    %3857 = vmatpush1.msra.mxu0 %v3856
    %3858 = vmatprep.subr.mxu0 0.0
    %v3859 = vand.u32 %v430, 4294901760
    %3860 = vmatpush1.msra.mxu0 %v3859
    %3861 = vmatprep.subr.mxu0 0.0
    %v3862 = vand.u32 %v431, 4294901760
    %3863 = vmatpush1.msra.mxu0 %v3862
    %3864 = vmatprep.subr.mxu0 0.0
    %v3865 = vand.u32 %v432, 4294901760
    %3866 = vmatpush1.msra.mxu0 %v3865
    %3867 = vmatprep.subr.mxu0 0.0
    %v3868 = vand.u32 %v433, 4294901760
    %3869 = vmatpush1.msra.mxu0 %v3868
    %3870 = vmatprep.subr.mxu0 0.0
    %v3871 = vand.u32 %v434, 4294901760
    %3872 = vmatpush1.msra.mxu0 %v3871
    %3873 = vmatprep.subr.mxu0 0.0
    %v3874 = vand.u32 %v435, 4294901760
    %3875 = vmatpush1.msra.mxu0 %v3874
    %3876 = vmatprep.subr.mxu0 0.0
    %v3877 = vand.u32 %v436, 4294901760
    %3878 = vmatpush1.msra.mxu0 %v3877
    %3879 = vmatprep.subr.mxu0 0.0
    %v3880 = vand.u32 %v437, 4294901760
    %3881 = vmatpush1.msra.mxu0 %v3880
    %3882 = vmatprep.subr.mxu0 0.0
    %v3883 = vand.u32 %v438, 4294901760
    %3884 = vmatpush1.msra.mxu0 %v3883
    %3885 = vmatprep.subr.mxu0 0.0
    %v3886 = vand.u32 %v439, 4294901760
    %3887 = vmatpush1.msra.mxu0 %v3886
    %3888 = vmatprep.subr.mxu0 0.0
    %v3889 = vand.u32 %v440, 4294901760
    %3890 = vmatpush1.msra.mxu0 %v3889
    %3891 = vmatprep.subr.mxu0 0.0
    %v3892 = vand.u32 %v441, 4294901760
    %3893 = vmatpush1.msra.mxu0 %v3892
    %3894 = vmatprep.subr.mxu0 0.0
    %v3895 = vand.u32 %v442, 4294901760
    %3896 = vmatpush1.msra.mxu0 %v3895
    %3897 = vmatprep.subr.mxu0 0.0
    %v3898 = vand.u32 %v443, 4294901760
    %3899 = vmatpush1.msra.mxu0 %v3898
    %3900 = vmatprep.subr.mxu0 0.0
    %v3901 = vand.u32 %v444, 4294901760
    %3902 = vmatpush1.msra.mxu0 %v3901
    %3903 = vmatprep.subr.mxu0 0.0
    %v3904 = vand.u32 %v445, 4294901760
    %3905 = vmatpush1.msra.mxu0 %v3904
    %3906 = vmatprep.subr.mxu0 0.0
    %v3907 = vand.u32 %v446, 4294901760
    %3908 = vmatpush1.msra.mxu0 %v3907
    %3909 = vmatprep.subr.mxu0 0.0
    %v3910 = vand.u32 %v447, 4294901760
    %3911 = vmatpush1.msra.mxu0 %v3910
    %3912 = vmatprep.subr.mxu0 0.0
    %v3913 = vand.u32 %v448, 4294901760
    %3914 = vmatpush1.msra.mxu0 %v3913
    %3915 = vmatprep.subr.mxu0 0.0
    %v3916 = vand.u32 %v449, 4294901760
    %3917 = vmatpush1.msra.mxu0 %v3916
    %3918 = vmatprep.subr.mxu0 0.0
    %v3919 = vand.u32 %v450, 4294901760
    %3920 = vmatpush1.msra.mxu0 %v3919
    %3921 = vmatprep.subr.mxu0 0.0
    %v3922 = vand.u32 %v451, 4294901760
    %3923 = vmatpush1.msra.mxu0 %v3922
    %3924 = vmatprep.subr.mxu0 0.0
    %v3925 = vand.u32 %v452, 4294901760
    %3926 = vmatpush1.msra.mxu0 %v3925
    %3927 = vmatprep.subr.mxu0 0.0
    %v3928 = vand.u32 %v453, 4294901760
    %3929 = vmatpush1.msra.mxu0 %v3928
    %3930 = vmatprep.subr.mxu0 0.0
    %v3931 = vand.u32 %v454, 4294901760
    %3932 = vmatpush1.msra.mxu0 %v3931
    %3933 = vmatprep.subr.mxu0 0.0
    %v3934 = vand.u32 %v455, 4294901760
    %3935 = vmatpush1.msra.mxu0 %v3934
    %3936 = vmatprep.subr.mxu0 0.0
    %v3937 = vand.u32 %v456, 4294901760
    %3938 = vmatpush1.msra.mxu0 %v3937
    %3939 = vmatprep.subr.mxu0 0.0
    %v3940 = vand.u32 %v457, 4294901760
    %3941 = vmatpush1.msra.mxu0 %v3940
    %v3942 = vand.u32 %v3085, 4294901760
    %3943 = vmatprep.mubr.f32.mxu0 %v3942
    %v3944 = vand.u32 %v3084, 4294901760
    %3945 = vmatmul.mubr.f32.gmra.mrb[0].mxu0 %v3944
    %v3946 = vpop.f32.mrb[0].mxu0
    %v3947 = vadd.f32 %v3843, %v3946
    %v3948 = vpop.f32.mrb[0].mxu0
    %3949 = vdwg.mxu0
    %vm3950 = vcmask 74752
    %v3951 = vsel %vm3950, %v1328, 0.0
    %v3952 = vsel %vm3950, %v2201, 0.0
    %v3953 = vadd.f32 %v3951, %v3952
    %v3954 = vsel %vm3950, %v3074, 0.0
    %v3955 = vadd.f32 %v3953, %v3954
    %v3956 = vsel %vm3950, %v3947, 0.0
    %v3957 = vadd.f32 %v3955, %v3956
    %v3958 = vld [vmem:[%s4] sm:$0x1]
    %v3960 = vlaneseq
    %v3961 = vshrl.u32 %v3960, 7
    %v3962 = vsub.s32 0, %v3961
    %v3963 = vrot.slane %v3958, %v3962
    %v3965 = vadd.f32 %v3957, %v3963
    %3966 = vst.msk [vmem:[#allocation2] sm:$0x3] %vm3950, %v3965
    // Predicated region
    $region22: #{resnet_classifier_forward.1} parent=1 // pred_check
      _
    $region23: #{resnet_classifier_forward.1} parent=1 // pred_check_branch
      %3968 = sbr.rel (0) target = $region25
    $region24: #{resnet_classifier_forward.1} parent=1 // pred_region
      %s3970 = ssub.s32 32, 32
      %3971 = vsyncadd [#allocation3], %s3970
      %s3973 = sshll.u32 [#allocation2], 4
      %s3974 = int_to_ptr.vmem [resolvable:$true] %s3973
      %3976 = dma.vmem_to_hbm [thread:$0]  %s3974, 32, %s5, [#allocation3]
    $region25: #{resnet_classifier_forward.1} parent=1 // pred_fallthru
      _
    // Predicated region
    $region26: #{resnet_classifier_forward.1} parent=1 // pred_check
      _
    $region27: #{resnet_classifier_forward.1} parent=1 // pred_check_branch
      %3978 = sbr.rel (0) target = $region29
    $region28: #{resnet_classifier_forward.1} parent=1 // pred_region
      %3979 = dma.done [#allocation3], 32
    $region29: #{resnet_classifier_forward.1} parent=1 // pred_fallthru
      _
    %3980 = vsyncpa [#allocation3], 1

</llo_original>
